<compile_context>
chip_gen: v7x
topology: tpu7x:2x2x1
jax: 0.10.0
libtpu: 0.0.40
codegen_flags: <defaults>
</compile_context>

<pallas_src>
import jax
import jax.numpy as jnp
from jax.experimental import pallas as pl
from jax.experimental.pallas import tpu as pltpu

# ---------------- model hyper-parameters (small, synthetic) ----------------
BATCH = 2
CHANNELS = 3
IMG = 16
PATCH = 8
NUM_PATCHES = (IMG // PATCH) ** 2          # 4
SEQ = NUM_PATCHES + 1                      # 5 (CLS + patches)
HIDDEN = 32
NUM_HEADS = 2
HEAD_DIM = HIDDEN // NUM_HEADS             # 16
INTERMEDIATE = 64
BOTTLENECK = 8                             # adapter bottleneck_dim
NUM_LAYERS = 2
LN_EPS = 1e-12                             # HF ViT layer_norm_eps

# Row indices inside the per-layer vector slab (L, 10, HIDDEN)
_LN1_G, _LN1_B, _BO, _A1_BD, _A1_BU, _LN2_G, _LN2_B, _BOUT, _A2_BD, _A2_BU = range(10)
# Row indices inside the global vector slab (3, HIDDEN)
_G_FLN_G, _G_FLN_B, _G_POOL_B = range(3)

VMEM_SPEC = pl.BlockSpec(memory_space=pltpu.MemorySpace.VMEM)


# ------------------------------ the fused kernel ------------------------------
def vit_forward_kernel(patches_ref, patch_w_ref, embed_add_ref, gvecs_ref,
                       wqkv_ref, bqkv_ref, wo_ref, wi_ref, bi_ref, wout_ref,
                       wad_ref, wau_ref, lvecs_ref, pool_w_ref,
                       seq_ref, pool_ref):
    f32 = jnp.float32
    b = patches_ref.shape[0] // SEQ

    def ln(x, g, bb):
        m = jnp.mean(x, axis=-1, keepdims=True)
        v = jnp.mean((x - m) ** 2, axis=-1, keepdims=True)
        return (x - m) * jax.lax.rsqrt(v + LN_EPS) * g + bb

    def gelu(x):
        # TODO(synk): HF ViT's default 'gelu' is the exact erf GELU and the
        # adapter activation is unspecified in adapter_config; tanh-GELU is
        # used for both (Mosaic-safe, ~1e-3 from erf).
        return jax.nn.gelu(x, approximate=True)

    gvecs = gvecs_ref[...].astype(f32)
    fln_g = gvecs[_G_FLN_G:_G_FLN_G + 1]
    fln_b = gvecs[_G_FLN_B:_G_FLN_B + 1]
    pool_b = gvecs[_G_POOL_B:_G_POOL_B + 1]

    # ---- patch embedding (Conv2d k=s=PATCH == flatten + matmul) + CLS + pos ----
    # CLS rows of `patches` are zero; CLS token, position embeddings and the
    # conv bias are all folded into `embed_add`, so this is one matmul + add.
    h2d = jnp.dot(patches_ref[...].astype(f32), patch_w_ref[...].astype(f32),
                  preferred_element_type=f32)                              # (B*S, H)
    h2d = (h2d.reshape(b, SEQ, HIDDEN)
           + embed_add_ref[...].astype(f32)[None]).reshape(b * SEQ, HIDDEN)

    scale = 1.0 / (HEAD_DIM ** 0.5)

    for l in range(NUM_LAYERS):                      # tiny, fully unrolled
        lv = lvecs_ref[l].astype(f32)                # (10, H) per-layer vector slab
        ln1_g, ln1_b = lv[_LN1_G:_LN1_G + 1], lv[_LN1_B:_LN1_B + 1]
        bo = lv[_BO:_BO + 1]
        a1_bd = lv[_A1_BD:_A1_BD + 1, :BOTTLENECK]
        a1_bu = lv[_A1_BU:_A1_BU + 1]
        ln2_g, ln2_b = lv[_LN2_G:_LN2_G + 1], lv[_LN2_B:_LN2_B + 1]
        bout = lv[_BOUT:_BOUT + 1]
        a2_bd = lv[_A2_BD:_A2_BD + 1, :BOTTLENECK]
        a2_bu = lv[_A2_BU:_A2_BU + 1]

        # -------- self-attention: layernorm_before -> MHSA -> output dense --------
        x = ln(h2d, ln1_g, ln1_b)                                          # (B*S, H)
        qkv = jnp.dot(x, wqkv_ref[l].astype(f32),
                      preferred_element_type=f32) + bqkv_ref[l].astype(f32)  # (B*S, 3H)
        qkv3 = qkv.reshape(b, SEQ, 3 * HIDDEN)
        wo_l = wo_ref[l].astype(f32)

        attn = None
        for hd in range(NUM_HEADS):                  # static unroll (2 heads)
            lo = hd * HEAD_DIM
            qh = qkv3[:, :, lo:lo + HEAD_DIM]
            kh = qkv3[:, :, HIDDEN + lo:HIDDEN + lo + HEAD_DIM]
            vh = qkv3[:, :, 2 * HIDDEN + lo:2 * HIDDEN + lo + HEAD_DIM]
            s = jnp.einsum('bqd,bkd->bqk', qh, kh,
                           preferred_element_type=f32) * scale
            s = s - jnp.max(s, axis=-1, keepdims=True)
            p = jnp.exp(s)
            p = p * pl.reciprocal(jnp.sum(p, axis=-1, keepdims=True), approx=True)
            ctx = jnp.einsum('bqk,bkd->bqd', p, vh,
                             preferred_element_type=f32)                   # (B, S, HD)
            # fold the head-concat into the output projection: per-head matmul
            # against a sublane slice of Wo (no lane-dim concatenate).
            proj = jnp.dot(ctx.reshape(b * SEQ, HEAD_DIM),
                           wo_l[lo:lo + HEAD_DIM, :],
                           preferred_element_type=f32)
            attn = proj if attn is None else attn + proj
        attn_out = attn + bo                           # attention.output.dense (+ id dropout)

        # -------- adapter after attention + residual --------
        a1 = gelu(jnp.dot(attn_out, wad_ref[l, 0].astype(f32),
                          preferred_element_type=f32) + a1_bd)
        ad1 = jnp.dot(a1, wau_ref[l, 0].astype(f32),
                      preferred_element_type=f32) + a1_bu + attn_out
        h_mid = ad1 + h2d

        # -------- MLP block: LN -> intermediate -> output dense -> adapter -> residual --------
        x2 = ln(h_mid, ln2_g, ln2_b)
        inter = gelu(jnp.dot(x2, wi_ref[l].astype(f32),
                             preferred_element_type=f32) + bi_ref[l].astype(f32))
        mlp = jnp.dot(inter, wout_ref[l].astype(f32),
                      preferred_element_type=f32) + bout
        a2 = gelu(jnp.dot(mlp, wad_ref[l, 1].astype(f32),
                          preferred_element_type=f32) + a2_bd)
        ad2 = jnp.dot(a2, wau_ref[l, 1].astype(f32),
                      preferred_element_type=f32) + a2_bu + mlp
        h2d = ad2 + h_mid

    # -------- final layernorm + pooler (fused; no extra launches / HBM trips) --------
    seq = ln(h2d, fln_g, fln_b)                                            # (B*S, H)
    seq3 = seq.reshape(b, SEQ, HIDDEN)
    seq_ref[...] = seq3.astype(seq_ref.dtype)

    cls_rows = seq3[:, 0:1, :].reshape(b, HIDDEN)
    pooled = jnp.tanh(jnp.dot(cls_rows, pool_w_ref[...].astype(f32),
                              preferred_element_type=f32) + pool_b)
    pool_ref[...] = pooled.astype(pool_ref.dtype)


# ------------------------------ parameter init ------------------------------
def init_params(key):
    ks = iter(jax.random.split(key, 256))

    def nrm(shape, std):
        return std * jax.random.normal(next(ks), shape, jnp.float32)

    params = {
        # patch embedding: conv(H, C, ps, ps) flattened -> (C*ps*ps, H)
        'patch_w': nrm((CHANNELS * PATCH * PATCH, HIDDEN), 0.02),
        'patch_b': jnp.zeros((1, HIDDEN), jnp.float32),
        'cls': nrm((1, HIDDEN), 0.02),
        'pos': nrm((SEQ, HIDDEN), 0.02),
        'final_ln_g': jnp.ones((HIDDEN,), jnp.float32),
        'final_ln_b': jnp.zeros((HIDDEN,), jnp.float32),
        'pool_w': nrm((HIDDEN, HIDDEN), 0.02),
        'pool_b': jnp.zeros((HIDDEN,), jnp.float32),
        'layers': [],
    }
    for _ in range(NUM_LAYERS):
        params['layers'].append(dict(
            ln1_g=jnp.ones((HIDDEN,), jnp.float32),
            ln1_b=jnp.zeros((HIDDEN,), jnp.float32),
            wq=nrm((HIDDEN, HIDDEN), 0.02), bq=jnp.zeros((HIDDEN,), jnp.float32),
            wk=nrm((HIDDEN, HIDDEN), 0.02), bk=jnp.zeros((HIDDEN,), jnp.float32),
            wv=nrm((HIDDEN, HIDDEN), 0.02), bv=jnp.zeros((HIDDEN,), jnp.float32),
            wo=nrm((HIDDEN, HIDDEN), 0.02), bo=jnp.zeros((HIDDEN,), jnp.float32),
            # adapters: N(0, 1e-5) on weights AND biases (as in Adapter._init_params)
            a1_wd=nrm((HIDDEN, BOTTLENECK), 1e-5), a1_bd=nrm((BOTTLENECK,), 1e-5),
            a1_wu=nrm((BOTTLENECK, HIDDEN), 1e-5), a1_bu=nrm((HIDDEN,), 1e-5),
            ln2_g=jnp.ones((HIDDEN,), jnp.float32),
            ln2_b=jnp.zeros((HIDDEN,), jnp.float32),
            wi=nrm((HIDDEN, INTERMEDIATE), 0.02), bi=jnp.zeros((INTERMEDIATE,), jnp.float32),
            wout=nrm((INTERMEDIATE, HIDDEN), 0.02), bout=jnp.zeros((HIDDEN,), jnp.float32),
            a2_wd=nrm((HIDDEN, BOTTLENECK), 1e-5), a2_bd=nrm((BOTTLENECK,), 1e-5),
            a2_wu=nrm((BOTTLENECK, HIDDEN), 1e-5), a2_bu=nrm((HIDDEN,), 1e-5),
        ))
    return params


def pack_params(params):
    """Pack the many tiny per-layer tensors into a few stacked, lane-dense slabs."""
    L = params['layers']
    pad_bn = lambda v: jnp.pad(v, (0, HIDDEN - BOTTLENECK))

    wqkv = jnp.stack([jnp.concatenate([l['wq'], l['wk'], l['wv']], axis=1) for l in L])
    bqkv = jnp.stack([jnp.concatenate([l['bq'], l['bk'], l['bv']])[None, :] for l in L])
    wo = jnp.stack([l['wo'] for l in L])
    wi = jnp.stack([l['wi'] for l in L])
    bi = jnp.stack([l['bi'][None, :] for l in L])
    wout = jnp.stack([l['wout'] for l in L])
    wad = jnp.stack([jnp.stack([l['a1_wd'], l['a2_wd']]) for l in L])
    wau = jnp.stack([jnp.stack([l['a1_wu'], l['a2_wu']]) for l in L])
    lvecs = jnp.stack([
        jnp.stack([l['ln1_g'], l['ln1_b'], l['bo'], pad_bn(l['a1_bd']), l['a1_bu'],
                   l['ln2_g'], l['ln2_b'], l['bout'], pad_bn(l['a2_bd']), l['a2_bu']])
        for l in L])
    gvecs = jnp.stack([params['final_ln_g'], params['final_ln_b'], params['pool_b']])
    # fold CLS token, position embeddings and conv bias into one additive map:
    # row 0 = cls + pos[0], rows 1.. = pos[1..] + patch_b
    embed_add = jnp.concatenate(
        [params['cls'] + params['pos'][0:1],
         params['pos'][1:] + params['patch_b']], axis=0)           # (SEQ, H)
    return dict(patch_w=params['patch_w'], embed_add=embed_add, gvecs=gvecs,
                wqkv=wqkv, bqkv=bqkv, wo=wo, wi=wi, bi=bi, wout=wout,
                wad=wad, wau=wau, lvecs=lvecs, pool_w=params['pool_w'])


# ------------------------------ forward pass ------------------------------
@jax.jit
def vit_with_adapter_forward(packed, pixel_values):
    """pixel_values: (B, C, H, W) in NCHW, like the PyTorch module."""
    B = pixel_values.shape[0]
    gh = gw = IMG // PATCH

    # Conv2d(kernel=stride=PATCH) == patch-extract + matmul: build a lane-dense
    # (B*SEQ, C*ps*ps) slab with an all-zero row per image at the CLS position
    # (layout plumbing only; the kernel then does the whole forward).
    patches = pixel_values.reshape(B, CHANNELS, gh, PATCH, gw, PATCH)
    patches = patches.transpose(0, 2, 4, 1, 3, 5).reshape(
        B, NUM_PATCHES, CHANNELS * PATCH * PATCH)
    ext = jnp.concatenate(
        [jnp.zeros((B, 1, CHANNELS * PATCH * PATCH), patches.dtype), patches], axis=1)
    ext = ext.reshape(B * SEQ, CHANNELS * PATCH * PATCH)

    seq, pooled = pl.pallas_call(
        vit_forward_kernel,
        out_shape=(jax.ShapeDtypeStruct((B, SEQ, HIDDEN), jnp.float32),
                   jax.ShapeDtypeStruct((B, HIDDEN), jnp.float32)),
        in_specs=[VMEM_SPEC] * 14,
        out_specs=(VMEM_SPEC, VMEM_SPEC),
    )(ext, packed['patch_w'], packed['embed_add'], packed['gvecs'],
      packed['wqkv'], packed['bqkv'], packed['wo'], packed['wi'], packed['bi'],
      packed['wout'], packed['wad'], packed['wau'], packed['lvecs'],
      packed['pool_w'])
    return seq, pooled


# ------------------------------------ main ------------------------------------
if __name__ == "__main__":
    key = jax.random.PRNGKey(0)
    k_param, k_input = jax.random.split(key)

    params = init_params(k_param)
    packed = pack_params(params)
    pixel_values = jax.random.normal(k_input, (BATCH, CHANNELS, IMG, IMG), jnp.float32)

    last_hidden_state, pooler_output = vit_with_adapter_forward(packed, pixel_values)
    jax.block_until_ready(last_hidden_state)
    jax.block_until_ready(pooler_output)

    assert last_hidden_state.shape == (BATCH, SEQ, HIDDEN)
    assert pooler_output.shape == (BATCH, HIDDEN)
    assert jnp.all(jnp.isfinite(last_hidden_state)) and jnp.all(jnp.isfinite(pooler_output))
    print("KERNEL_OK")
</pallas_src>

<mosaic_0001>
module attributes {stable_mosaic.version = 11 : i64} {
  func.func @vit_forward_kernel(%arg0: memref<10x192xf32, #tpu.memory_space<vmem>>, %arg1: memref<192x32xf32, #tpu.memory_space<vmem>>, %arg2: memref<5x32xf32, #tpu.memory_space<vmem>>, %arg3: memref<3x32xf32, #tpu.memory_space<vmem>>, %arg4: memref<2x32x96xf32, #tpu.memory_space<vmem>>, %arg5: memref<2x1x96xf32, #tpu.memory_space<vmem>>, %arg6: memref<2x32x32xf32, #tpu.memory_space<vmem>>, %arg7: memref<2x32x64xf32, #tpu.memory_space<vmem>>, %arg8: memref<2x1x64xf32, #tpu.memory_space<vmem>>, %arg9: memref<2x64x32xf32, #tpu.memory_space<vmem>>, %arg10: memref<2x2x32x8xf32, #tpu.memory_space<vmem>>, %arg11: memref<2x2x8x32xf32, #tpu.memory_space<vmem>>, %arg12: memref<2x10x32xf32, #tpu.memory_space<vmem>>, %arg13: memref<32x32xf32, #tpu.memory_space<vmem>>, %arg14: memref<2x5x32xf32, #tpu.memory_space<vmem>>, %arg15: memref<2x32xf32, #tpu.memory_space<vmem>>) attributes {dimension_semantics = [], scalar_prefetch = 0 : i64, scratch_operands = 0 : i64, tpu.core_type = #tpu.core_type<tc>} {
    %c0 = arith.constant 0 : index
    %c0_0 = arith.constant 0 : index
    %0 = vector.load %arg3[%c0, %c0_0] : memref<3x32xf32, #tpu.memory_space<vmem>>, vector<3x32xf32>
    %1 = vector.extract_strided_slice %0 {offsets = [0, 0], sizes = [1, 32], strides = [1, 1]} : vector<3x32xf32> to vector<1x32xf32>
    %2 = vector.extract_strided_slice %0 {offsets = [1, 0], sizes = [1, 32], strides = [1, 1]} : vector<3x32xf32> to vector<1x32xf32>
    %3 = vector.extract_strided_slice %0 {offsets = [2, 0], sizes = [1, 32], strides = [1, 1]} : vector<3x32xf32> to vector<1x32xf32>
    %c0_1 = arith.constant 0 : index
    %c0_2 = arith.constant 0 : index
    %4 = vector.load %arg0[%c0_1, %c0_2] : memref<10x192xf32, #tpu.memory_space<vmem>>, vector<10x192xf32>
    %c0_3 = arith.constant 0 : index
    %c0_4 = arith.constant 0 : index
    %5 = vector.load %arg1[%c0_3, %c0_4] : memref<192x32xf32, #tpu.memory_space<vmem>>, vector<192x32xf32>
    %cst = arith.constant dense<0.000000e+00> : vector<10x32xf32>
    %6 = tpu.matmul %4, %5, %cst {dimension_numbers = #tpu.dot_dimension_numbers<[1], [0], [0], [1], [0, 0, 1, 1], [], []>} : vector<10x192xf32>, vector<192x32xf32>, vector<10x32xf32> -> vector<10x32xf32>
    %7 = vector.shape_cast %6 : vector<10x32xf32> to vector<2x5x32xf32>
    %c0_5 = arith.constant 0 : index
    %c0_6 = arith.constant 0 : index
    %8 = vector.load %arg2[%c0_5, %c0_6] : memref<5x32xf32, #tpu.memory_space<vmem>>, vector<5x32xf32>
    %9 = vector.shape_cast %8 : vector<5x32xf32> to vector<1x5x32xf32>
    %10 = vector.broadcast %9 : vector<1x5x32xf32> to vector<2x5x32xf32>
    %11 = arith.addf %7, %10 : vector<2x5x32xf32>
    %12 = vector.shape_cast %11 : vector<2x5x32xf32> to vector<10x32xf32>
    %c0_7 = arith.constant 0 : index
    %c0_8 = arith.constant 0 : index
    %c0_9 = arith.constant 0 : index
    %13 = vector.load %arg12[%c0_7, %c0_8, %c0_9] : memref<2x10x32xf32, #tpu.memory_space<vmem>>, vector<1x10x32xf32>
    %14 = vector.shape_cast %13 : vector<1x10x32xf32> to vector<10x32xf32>
    %15 = vector.extract_strided_slice %14 {offsets = [0, 0], sizes = [1, 32], strides = [1, 1]} : vector<10x32xf32> to vector<1x32xf32>
    %16 = vector.extract_strided_slice %14 {offsets = [1, 0], sizes = [1, 32], strides = [1, 1]} : vector<10x32xf32> to vector<1x32xf32>
    %17 = vector.extract_strided_slice %14 {offsets = [2, 0], sizes = [1, 32], strides = [1, 1]} : vector<10x32xf32> to vector<1x32xf32>
    %18 = vector.extract_strided_slice %14 {offsets = [3, 0], sizes = [1, 8], strides = [1, 1]} : vector<10x32xf32> to vector<1x8xf32>
    %19 = vector.extract_strided_slice %14 {offsets = [4, 0], sizes = [1, 32], strides = [1, 1]} : vector<10x32xf32> to vector<1x32xf32>
    %20 = vector.extract_strided_slice %14 {offsets = [5, 0], sizes = [1, 32], strides = [1, 1]} : vector<10x32xf32> to vector<1x32xf32>
    %21 = vector.extract_strided_slice %14 {offsets = [6, 0], sizes = [1, 32], strides = [1, 1]} : vector<10x32xf32> to vector<1x32xf32>
    %22 = vector.extract_strided_slice %14 {offsets = [7, 0], sizes = [1, 32], strides = [1, 1]} : vector<10x32xf32> to vector<1x32xf32>
    %23 = vector.extract_strided_slice %14 {offsets = [8, 0], sizes = [1, 8], strides = [1, 1]} : vector<10x32xf32> to vector<1x8xf32>
    %24 = vector.extract_strided_slice %14 {offsets = [9, 0], sizes = [1, 32], strides = [1, 1]} : vector<10x32xf32> to vector<1x32xf32>
    %cst_10 = arith.constant dense<0.000000e+00> : vector<10xf32>
    %25 = vector.multi_reduction <add>, %12, %cst_10 [1] : vector<10x32xf32> to vector<10xf32>
    %26 = vector.shape_cast %25 : vector<10xf32> to vector<10x1xf32>
    %cst_11 = arith.constant 3.200000e+01 : f32
    %27 = vector.broadcast %cst_11 : f32 to vector<10x1xf32>
    %28 = arith.divf %26, %27 : vector<10x1xf32>
    %29 = vector.broadcast %28 : vector<10x1xf32> to vector<10x32xf32>
    %30 = arith.subf %12, %29 : vector<10x32xf32>
    %31 = arith.mulf %30, %30 : vector<10x32xf32>
    %cst_12 = arith.constant dense<0.000000e+00> : vector<10xf32>
    %32 = vector.multi_reduction <add>, %31, %cst_12 [1] : vector<10x32xf32> to vector<10xf32>
    %33 = vector.shape_cast %32 : vector<10xf32> to vector<10x1xf32>
    %cst_13 = arith.constant 3.200000e+01 : f32
    %34 = vector.broadcast %cst_13 : f32 to vector<10x1xf32>
    %35 = arith.divf %33, %34 : vector<10x1xf32>
    %36 = vector.broadcast %28 : vector<10x1xf32> to vector<10x32xf32>
    %37 = arith.subf %12, %36 : vector<10x32xf32>
    %cst_14 = arith.constant 9.99999996E-13 : f32
    %38 = vector.broadcast %cst_14 : f32 to vector<10x1xf32>
    %39 = arith.addf %35, %38 : vector<10x1xf32>
    %40 = math.rsqrt %39 : vector<10x1xf32>
    %41 = vector.broadcast %40 : vector<10x1xf32> to vector<10x32xf32>
    %42 = arith.mulf %37, %41 : vector<10x32xf32>
    %43 = vector.broadcast %15 : vector<1x32xf32> to vector<10x32xf32>
    %44 = arith.mulf %42, %43 : vector<10x32xf32>
    %45 = vector.broadcast %16 : vector<1x32xf32> to vector<10x32xf32>
    %46 = arith.addf %44, %45 : vector<10x32xf32>
    %c0_15 = arith.constant 0 : index
    %c0_16 = arith.constant 0 : index
    %c0_17 = arith.constant 0 : index
    %47 = vector.load %arg4[%c0_15, %c0_16, %c0_17] : memref<2x32x96xf32, #tpu.memory_space<vmem>>, vector<1x32x96xf32>
    %48 = vector.shape_cast %47 : vector<1x32x96xf32> to vector<32x96xf32>
    %cst_18 = arith.constant dense<0.000000e+00> : vector<10x96xf32>
    %49 = tpu.matmul %46, %48, %cst_18 {dimension_numbers = #tpu.dot_dimension_numbers<[1], [0], [0], [1], [0, 0, 1, 1], [], []>} : vector<10x32xf32>, vector<32x96xf32>, vector<10x96xf32> -> vector<10x96xf32>
    %c0_19 = arith.constant 0 : index
    %c0_20 = arith.constant 0 : index
    %c0_21 = arith.constant 0 : index
    %50 = vector.load %arg5[%c0_19, %c0_20, %c0_21] : memref<2x1x96xf32, #tpu.memory_space<vmem>>, vector<1x1x96xf32>
    %51 = vector.shape_cast %50 : vector<1x1x96xf32> to vector<1x96xf32>
    %52 = vector.broadcast %51 : vector<1x96xf32> to vector<10x96xf32>
    %53 = arith.addf %49, %52 : vector<10x96xf32>
    %54 = vector.shape_cast %53 : vector<10x96xf32> to vector<2x5x96xf32>
    %c0_22 = arith.constant 0 : index
    %c0_23 = arith.constant 0 : index
    %c0_24 = arith.constant 0 : index
    %55 = vector.load %arg6[%c0_22, %c0_23, %c0_24] : memref<2x32x32xf32, #tpu.memory_space<vmem>>, vector<1x32x32xf32>
    %56 = vector.shape_cast %55 : vector<1x32x32xf32> to vector<32x32xf32>
    %57 = vector.extract_strided_slice %54 {offsets = [0, 0, 0], sizes = [2, 5, 16], strides = [1, 1, 1]} : vector<2x5x96xf32> to vector<2x5x16xf32>
    %58 = vector.extract_strided_slice %54 {offsets = [0, 0, 32], sizes = [2, 5, 16], strides = [1, 1, 1]} : vector<2x5x96xf32> to vector<2x5x16xf32>
    %59 = vector.extract_strided_slice %54 {offsets = [0, 0, 64], sizes = [2, 5, 16], strides = [1, 1, 1]} : vector<2x5x96xf32> to vector<2x5x16xf32>
    "tpu.trace_start"() <{level = 10 : i32, message = "bqd,bkd->bqk"}> : () -> ()
    %cst_25 = arith.constant dense<0.000000e+00> : vector<2x5x5xf32>
    %60 = tpu.matmul %57, %58, %cst_25 {dimension_numbers = #tpu.dot_dimension_numbers<[2], [2], [1], [1], [0, 0, 0, 1, 1, 1], [0], [0]>} : vector<2x5x16xf32>, vector<2x5x16xf32>, vector<2x5x5xf32> -> vector<2x5x5xf32>
    "tpu.trace_stop"() : () -> ()
    %cst_26 = arith.constant 2.500000e-01 : f32
    %61 = vector.broadcast %cst_26 : f32 to vector<2x5x5xf32>
    %62 = arith.mulf %60, %61 : vector<2x5x5xf32>
    %cst_27 = arith.constant dense<0xFF800000> : vector<2x5xf32>
    %63 = vector.multi_reduction <maximumf>, %62, %cst_27 [2] : vector<2x5x5xf32> to vector<2x5xf32>
    %64 = vector.shape_cast %63 : vector<2x5xf32> to vector<2x5x1xf32>
    %65 = vector.broadcast %64 : vector<2x5x1xf32> to vector<2x5x5xf32>
    %66 = arith.subf %62, %65 : vector<2x5x5xf32>
    %67 = math.exp %66 : vector<2x5x5xf32>
    %cst_28 = arith.constant dense<0.000000e+00> : vector<2x5xf32>
    %68 = vector.multi_reduction <add>, %67, %cst_28 [2] : vector<2x5x5xf32> to vector<2x5xf32>
    %69 = vector.shape_cast %68 : vector<2x5xf32> to vector<2x5x1xf32>
    %70 = tpu.reciprocal %69 {approx = true} : vector<2x5x1xf32> -> vector<2x5x1xf32>
    %71 = vector.broadcast %70 : vector<2x5x1xf32> to vector<2x5x5xf32>
    %72 = arith.mulf %67, %71 : vector<2x5x5xf32>
    "tpu.trace_start"() <{level = 10 : i32, message = "bqk,bkd->bqd"}> : () -> ()
    %cst_29 = arith.constant dense<0.000000e+00> : vector<2x5x16xf32>
    %73 = tpu.matmul %72, %59, %cst_29 {dimension_numbers = #tpu.dot_dimension_numbers<[2], [1], [1], [2], [0, 0, 0, 1, 1, 2], [0], [0]>} : vector<2x5x5xf32>, vector<2x5x16xf32>, vector<2x5x16xf32> -> vector<2x5x16xf32>
    "tpu.trace_stop"() : () -> ()
    %74 = vector.shape_cast %73 : vector<2x5x16xf32> to vector<10x16xf32>
    %75 = vector.extract_strided_slice %56 {offsets = [0, 0], sizes = [16, 32], strides = [1, 1]} : vector<32x32xf32> to vector<16x32xf32>
    %cst_30 = arith.constant dense<0.000000e+00> : vector<10x32xf32>
    %76 = tpu.matmul %74, %75, %cst_30 {dimension_numbers = #tpu.dot_dimension_numbers<[1], [0], [0], [1], [0, 0, 1, 1], [], []>} : vector<10x16xf32>, vector<16x32xf32>, vector<10x32xf32> -> vector<10x32xf32>
    %77 = vector.extract_strided_slice %54 {offsets = [0, 0, 16], sizes = [2, 5, 16], strides = [1, 1, 1]} : vector<2x5x96xf32> to vector<2x5x16xf32>
    %78 = vector.extract_strided_slice %54 {offsets = [0, 0, 48], sizes = [2, 5, 16], strides = [1, 1, 1]} : vector<2x5x96xf32> to vector<2x5x16xf32>
    %79 = vector.extract_strided_slice %54 {offsets = [0, 0, 80], sizes = [2, 5, 16], strides = [1, 1, 1]} : vector<2x5x96xf32> to vector<2x5x16xf32>
    "tpu.trace_start"() <{level = 10 : i32, message = "bqd,bkd->bqk"}> : () -> ()
    %cst_31 = arith.constant dense<0.000000e+00> : vector<2x5x5xf32>
    %80 = tpu.matmul %77, %78, %cst_31 {dimension_numbers = #tpu.dot_dimension_numbers<[2], [2], [1], [1], [0, 0, 0, 1, 1, 1], [0], [0]>} : vector<2x5x16xf32>, vector<2x5x16xf32>, vector<2x5x5xf32> -> vector<2x5x5xf32>
    "tpu.trace_stop"() : () -> ()
    %cst_32 = arith.constant 2.500000e-01 : f32
    %81 = vector.broadcast %cst_32 : f32 to vector<2x5x5xf32>
    %82 = arith.mulf %80, %81 : vector<2x5x5xf32>
    %cst_33 = arith.constant dense<0xFF800000> : vector<2x5xf32>
    %83 = vector.multi_reduction <maximumf>, %82, %cst_33 [2] : vector<2x5x5xf32> to vector<2x5xf32>
    %84 = vector.shape_cast %83 : vector<2x5xf32> to vector<2x5x1xf32>
    %85 = vector.broadcast %84 : vector<2x5x1xf32> to vector<2x5x5xf32>
    %86 = arith.subf %82, %85 : vector<2x5x5xf32>
    %87 = math.exp %86 : vector<2x5x5xf32>
    %cst_34 = arith.constant dense<0.000000e+00> : vector<2x5xf32>
    %88 = vector.multi_reduction <add>, %87, %cst_34 [2] : vector<2x5x5xf32> to vector<2x5xf32>
    %89 = vector.shape_cast %88 : vector<2x5xf32> to vector<2x5x1xf32>
    %90 = tpu.reciprocal %89 {approx = true} : vector<2x5x1xf32> -> vector<2x5x1xf32>
    %91 = vector.broadcast %90 : vector<2x5x1xf32> to vector<2x5x5xf32>
    %92 = arith.mulf %87, %91 : vector<2x5x5xf32>
    "tpu.trace_start"() <{level = 10 : i32, message = "bqk,bkd->bqd"}> : () -> ()
    %cst_35 = arith.constant dense<0.000000e+00> : vector<2x5x16xf32>
    %93 = tpu.matmul %92, %79, %cst_35 {dimension_numbers = #tpu.dot_dimension_numbers<[2], [1], [1], [2], [0, 0, 0, 1, 1, 2], [0], [0]>} : vector<2x5x5xf32>, vector<2x5x16xf32>, vector<2x5x16xf32> -> vector<2x5x16xf32>
    "tpu.trace_stop"() : () -> ()
    %94 = vector.shape_cast %93 : vector<2x5x16xf32> to vector<10x16xf32>
    %95 = vector.extract_strided_slice %56 {offsets = [16, 0], sizes = [16, 32], strides = [1, 1]} : vector<32x32xf32> to vector<16x32xf32>
    %cst_36 = arith.constant dense<0.000000e+00> : vector<10x32xf32>
    %96 = tpu.matmul %94, %95, %cst_36 {dimension_numbers = #tpu.dot_dimension_numbers<[1], [0], [0], [1], [0, 0, 1, 1], [], []>} : vector<10x16xf32>, vector<16x32xf32>, vector<10x32xf32> -> vector<10x32xf32>
    %97 = arith.addf %76, %96 : vector<10x32xf32>
    %98 = vector.broadcast %17 : vector<1x32xf32> to vector<10x32xf32>
    %99 = arith.addf %97, %98 : vector<10x32xf32>
    %c0_37 = arith.constant 0 : index
    %c0_38 = arith.constant 0 : index
    %c0_39 = arith.constant 0 : index
    %c0_40 = arith.constant 0 : index
    %100 = vector.load %arg10[%c0_37, %c0_38, %c0_39, %c0_40] : memref<2x2x32x8xf32, #tpu.memory_space<vmem>>, vector<1x1x32x8xf32>
    %101 = vector.shape_cast %100 : vector<1x1x32x8xf32> to vector<32x8xf32>
    %cst_41 = arith.constant dense<0.000000e+00> : vector<10x8xf32>
    %102 = tpu.matmul %99, %101, %cst_41 {dimension_numbers = #tpu.dot_dimension_numbers<[1], [0], [0], [1], [0, 0, 1, 1], [], []>} : vector<10x32xf32>, vector<32x8xf32>, vector<10x8xf32> -> vector<10x8xf32>
    %103 = vector.broadcast %18 : vector<1x8xf32> to vector<10x8xf32>
    %104 = arith.addf %102, %103 : vector<10x8xf32>
    %105 = arith.mulf %104, %104 : vector<10x8xf32>
    %106 = arith.mulf %104, %105 : vector<10x8xf32>
    %cst_42 = arith.constant 4.471500e-02 : f32
    %107 = vector.broadcast %cst_42 : f32 to vector<10x8xf32>
    %108 = arith.mulf %107, %106 : vector<10x8xf32>
    %109 = arith.addf %104, %108 : vector<10x8xf32>
    %cst_43 = arith.constant 0.797884583 : f32
    %110 = vector.broadcast %cst_43 : f32 to vector<10x8xf32>
    %111 = arith.mulf %110, %109 : vector<10x8xf32>
    %112 = math.tanh %111 : vector<10x8xf32>
    %cst_44 = arith.constant 1.000000e+00 : f32
    %113 = vector.broadcast %cst_44 : f32 to vector<10x8xf32>
    %114 = arith.addf %113, %112 : vector<10x8xf32>
    %cst_45 = arith.constant 5.000000e-01 : f32
    %115 = vector.broadcast %cst_45 : f32 to vector<10x8xf32>
    %116 = arith.mulf %115, %114 : vector<10x8xf32>
    %117 = arith.mulf %104, %116 : vector<10x8xf32>
    %c0_46 = arith.constant 0 : index
    %c0_47 = arith.constant 0 : index
    %c0_48 = arith.constant 0 : index
    %c0_49 = arith.constant 0 : index
    %118 = vector.load %arg11[%c0_46, %c0_47, %c0_48, %c0_49] : memref<2x2x8x32xf32, #tpu.memory_space<vmem>>, vector<1x1x8x32xf32>
    %119 = vector.shape_cast %118 : vector<1x1x8x32xf32> to vector<8x32xf32>
    %cst_50 = arith.constant dense<0.000000e+00> : vector<10x32xf32>
    %120 = tpu.matmul %117, %119, %cst_50 {dimension_numbers = #tpu.dot_dimension_numbers<[1], [0], [0], [1], [0, 0, 1, 1], [], []>} : vector<10x8xf32>, vector<8x32xf32>, vector<10x32xf32> -> vector<10x32xf32>
    %121 = vector.broadcast %19 : vector<1x32xf32> to vector<10x32xf32>
    %122 = arith.addf %120, %121 : vector<10x32xf32>
    %123 = arith.addf %122, %99 : vector<10x32xf32>
    %124 = arith.addf %123, %12 : vector<10x32xf32>
    %cst_51 = arith.constant dense<0.000000e+00> : vector<10xf32>
    %125 = vector.multi_reduction <add>, %124, %cst_51 [1] : vector<10x32xf32> to vector<10xf32>
    %126 = vector.shape_cast %125 : vector<10xf32> to vector<10x1xf32>
    %cst_52 = arith.constant 3.200000e+01 : f32
    %127 = vector.broadcast %cst_52 : f32 to vector<10x1xf32>
    %128 = arith.divf %126, %127 : vector<10x1xf32>
    %129 = vector.broadcast %128 : vector<10x1xf32> to vector<10x32xf32>
    %130 = arith.subf %124, %129 : vector<10x32xf32>
    %131 = arith.mulf %130, %130 : vector<10x32xf32>
    %cst_53 = arith.constant dense<0.000000e+00> : vector<10xf32>
    %132 = vector.multi_reduction <add>, %131, %cst_53 [1] : vector<10x32xf32> to vector<10xf32>
    %133 = vector.shape_cast %132 : vector<10xf32> to vector<10x1xf32>
    %cst_54 = arith.constant 3.200000e+01 : f32
    %134 = vector.broadcast %cst_54 : f32 to vector<10x1xf32>
    %135 = arith.divf %133, %134 : vector<10x1xf32>
    %136 = vector.broadcast %128 : vector<10x1xf32> to vector<10x32xf32>
    %137 = arith.subf %124, %136 : vector<10x32xf32>
    %cst_55 = arith.constant 9.99999996E-13 : f32
    %138 = vector.broadcast %cst_55 : f32 to vector<10x1xf32>
    %139 = arith.addf %135, %138 : vector<10x1xf32>
    %140 = math.rsqrt %139 : vector<10x1xf32>
    %141 = vector.broadcast %140 : vector<10x1xf32> to vector<10x32xf32>
    %142 = arith.mulf %137, %141 : vector<10x32xf32>
    %143 = vector.broadcast %20 : vector<1x32xf32> to vector<10x32xf32>
    %144 = arith.mulf %142, %143 : vector<10x32xf32>
    %145 = vector.broadcast %21 : vector<1x32xf32> to vector<10x32xf32>
    %146 = arith.addf %144, %145 : vector<10x32xf32>
    %c0_56 = arith.constant 0 : index
    %c0_57 = arith.constant 0 : index
    %c0_58 = arith.constant 0 : index
    %147 = vector.load %arg7[%c0_56, %c0_57, %c0_58] : memref<2x32x64xf32, #tpu.memory_space<vmem>>, vector<1x32x64xf32>
    %148 = vector.shape_cast %147 : vector<1x32x64xf32> to vector<32x64xf32>
    %cst_59 = arith.constant dense<0.000000e+00> : vector<10x64xf32>
    %149 = tpu.matmul %146, %148, %cst_59 {dimension_numbers = #tpu.dot_dimension_numbers<[1], [0], [0], [1], [0, 0, 1, 1], [], []>} : vector<10x32xf32>, vector<32x64xf32>, vector<10x64xf32> -> vector<10x64xf32>
    %c0_60 = arith.constant 0 : index
    %c0_61 = arith.constant 0 : index
    %c0_62 = arith.constant 0 : index
    %150 = vector.load %arg8[%c0_60, %c0_61, %c0_62] : memref<2x1x64xf32, #tpu.memory_space<vmem>>, vector<1x1x64xf32>
    %151 = vector.shape_cast %150 : vector<1x1x64xf32> to vector<1x64xf32>
    %152 = vector.broadcast %151 : vector<1x64xf32> to vector<10x64xf32>
    %153 = arith.addf %149, %152 : vector<10x64xf32>
    %154 = arith.mulf %153, %153 : vector<10x64xf32>
    %155 = arith.mulf %153, %154 : vector<10x64xf32>
    %cst_63 = arith.constant 4.471500e-02 : f32
    %156 = vector.broadcast %cst_63 : f32 to vector<10x64xf32>
    %157 = arith.mulf %156, %155 : vector<10x64xf32>
    %158 = arith.addf %153, %157 : vector<10x64xf32>
    %cst_64 = arith.constant 0.797884583 : f32
    %159 = vector.broadcast %cst_64 : f32 to vector<10x64xf32>
    %160 = arith.mulf %159, %158 : vector<10x64xf32>
    %161 = math.tanh %160 : vector<10x64xf32>
    %cst_65 = arith.constant 1.000000e+00 : f32
    %162 = vector.broadcast %cst_65 : f32 to vector<10x64xf32>
    %163 = arith.addf %162, %161 : vector<10x64xf32>
    %cst_66 = arith.constant 5.000000e-01 : f32
    %164 = vector.broadcast %cst_66 : f32 to vector<10x64xf32>
    %165 = arith.mulf %164, %163 : vector<10x64xf32>
    %166 = arith.mulf %153, %165 : vector<10x64xf32>
    %c0_67 = arith.constant 0 : index
    %c0_68 = arith.constant 0 : index
    %c0_69 = arith.constant 0 : index
    %167 = vector.load %arg9[%c0_67, %c0_68, %c0_69] : memref<2x64x32xf32, #tpu.memory_space<vmem>>, vector<1x64x32xf32>
    %168 = vector.shape_cast %167 : vector<1x64x32xf32> to vector<64x32xf32>
    %cst_70 = arith.constant dense<0.000000e+00> : vector<10x32xf32>
    %169 = tpu.matmul %166, %168, %cst_70 {dimension_numbers = #tpu.dot_dimension_numbers<[1], [0], [0], [1], [0, 0, 1, 1], [], []>} : vector<10x64xf32>, vector<64x32xf32>, vector<10x32xf32> -> vector<10x32xf32>
    %170 = vector.broadcast %22 : vector<1x32xf32> to vector<10x32xf32>
    %171 = arith.addf %169, %170 : vector<10x32xf32>
    %c0_71 = arith.constant 0 : index
    %c1 = arith.constant 1 : index
    %c0_72 = arith.constant 0 : index
    %c0_73 = arith.constant 0 : index
    %172 = vector.load %arg10[%c0_71, %c1, %c0_72, %c0_73] : memref<2x2x32x8xf32, #tpu.memory_space<vmem>>, vector<1x1x32x8xf32>
    %173 = vector.shape_cast %172 : vector<1x1x32x8xf32> to vector<32x8xf32>
    %cst_74 = arith.constant dense<0.000000e+00> : vector<10x8xf32>
    %174 = tpu.matmul %171, %173, %cst_74 {dimension_numbers = #tpu.dot_dimension_numbers<[1], [0], [0], [1], [0, 0, 1, 1], [], []>} : vector<10x32xf32>, vector<32x8xf32>, vector<10x8xf32> -> vector<10x8xf32>
    %175 = vector.broadcast %23 : vector<1x8xf32> to vector<10x8xf32>
    %176 = arith.addf %174, %175 : vector<10x8xf32>
    %177 = arith.mulf %176, %176 : vector<10x8xf32>
    %178 = arith.mulf %176, %177 : vector<10x8xf32>
    %cst_75 = arith.constant 4.471500e-02 : f32
    %179 = vector.broadcast %cst_75 : f32 to vector<10x8xf32>
    %180 = arith.mulf %179, %178 : vector<10x8xf32>
    %181 = arith.addf %176, %180 : vector<10x8xf32>
    %cst_76 = arith.constant 0.797884583 : f32
    %182 = vector.broadcast %cst_76 : f32 to vector<10x8xf32>
    %183 = arith.mulf %182, %181 : vector<10x8xf32>
    %184 = math.tanh %183 : vector<10x8xf32>
    %cst_77 = arith.constant 1.000000e+00 : f32
    %185 = vector.broadcast %cst_77 : f32 to vector<10x8xf32>
    %186 = arith.addf %185, %184 : vector<10x8xf32>
    %cst_78 = arith.constant 5.000000e-01 : f32
    %187 = vector.broadcast %cst_78 : f32 to vector<10x8xf32>
    %188 = arith.mulf %187, %186 : vector<10x8xf32>
    %189 = arith.mulf %176, %188 : vector<10x8xf32>
    %c0_79 = arith.constant 0 : index
    %c1_80 = arith.constant 1 : index
    %c0_81 = arith.constant 0 : index
    %c0_82 = arith.constant 0 : index
    %190 = vector.load %arg11[%c0_79, %c1_80, %c0_81, %c0_82] : memref<2x2x8x32xf32, #tpu.memory_space<vmem>>, vector<1x1x8x32xf32>
    %191 = vector.shape_cast %190 : vector<1x1x8x32xf32> to vector<8x32xf32>
    %cst_83 = arith.constant dense<0.000000e+00> : vector<10x32xf32>
    %192 = tpu.matmul %189, %191, %cst_83 {dimension_numbers = #tpu.dot_dimension_numbers<[1], [0], [0], [1], [0, 0, 1, 1], [], []>} : vector<10x8xf32>, vector<8x32xf32>, vector<10x32xf32> -> vector<10x32xf32>
    %193 = vector.broadcast %24 : vector<1x32xf32> to vector<10x32xf32>
    %194 = arith.addf %192, %193 : vector<10x32xf32>
    %195 = arith.addf %194, %171 : vector<10x32xf32>
    %196 = arith.addf %195, %124 : vector<10x32xf32>
    %c1_84 = arith.constant 1 : index
    %c0_85 = arith.constant 0 : index
    %c0_86 = arith.constant 0 : index
    %197 = vector.load %arg12[%c1_84, %c0_85, %c0_86] : memref<2x10x32xf32, #tpu.memory_space<vmem>>, vector<1x10x32xf32>
    %198 = vector.shape_cast %197 : vector<1x10x32xf32> to vector<10x32xf32>
    %199 = vector.extract_strided_slice %198 {offsets = [0, 0], sizes = [1, 32], strides = [1, 1]} : vector<10x32xf32> to vector<1x32xf32>
    %200 = vector.extract_strided_slice %198 {offsets = [1, 0], sizes = [1, 32], strides = [1, 1]} : vector<10x32xf32> to vector<1x32xf32>
    %201 = vector.extract_strided_slice %198 {offsets = [2, 0], sizes = [1, 32], strides = [1, 1]} : vector<10x32xf32> to vector<1x32xf32>
    %202 = vector.extract_strided_slice %198 {offsets = [3, 0], sizes = [1, 8], strides = [1, 1]} : vector<10x32xf32> to vector<1x8xf32>
    %203 = vector.extract_strided_slice %198 {offsets = [4, 0], sizes = [1, 32], strides = [1, 1]} : vector<10x32xf32> to vector<1x32xf32>
    %204 = vector.extract_strided_slice %198 {offsets = [5, 0], sizes = [1, 32], strides = [1, 1]} : vector<10x32xf32> to vector<1x32xf32>
    %205 = vector.extract_strided_slice %198 {offsets = [6, 0], sizes = [1, 32], strides = [1, 1]} : vector<10x32xf32> to vector<1x32xf32>
    %206 = vector.extract_strided_slice %198 {offsets = [7, 0], sizes = [1, 32], strides = [1, 1]} : vector<10x32xf32> to vector<1x32xf32>
    %207 = vector.extract_strided_slice %198 {offsets = [8, 0], sizes = [1, 8], strides = [1, 1]} : vector<10x32xf32> to vector<1x8xf32>
    %208 = vector.extract_strided_slice %198 {offsets = [9, 0], sizes = [1, 32], strides = [1, 1]} : vector<10x32xf32> to vector<1x32xf32>
    %cst_87 = arith.constant dense<0.000000e+00> : vector<10xf32>
    %209 = vector.multi_reduction <add>, %196, %cst_87 [1] : vector<10x32xf32> to vector<10xf32>
    %210 = vector.shape_cast %209 : vector<10xf32> to vector<10x1xf32>
    %cst_88 = arith.constant 3.200000e+01 : f32
    %211 = vector.broadcast %cst_88 : f32 to vector<10x1xf32>
    %212 = arith.divf %210, %211 : vector<10x1xf32>
    %213 = vector.broadcast %212 : vector<10x1xf32> to vector<10x32xf32>
    %214 = arith.subf %196, %213 : vector<10x32xf32>
    %215 = arith.mulf %214, %214 : vector<10x32xf32>
    %cst_89 = arith.constant dense<0.000000e+00> : vector<10xf32>
    %216 = vector.multi_reduction <add>, %215, %cst_89 [1] : vector<10x32xf32> to vector<10xf32>
    %217 = vector.shape_cast %216 : vector<10xf32> to vector<10x1xf32>
    %cst_90 = arith.constant 3.200000e+01 : f32
    %218 = vector.broadcast %cst_90 : f32 to vector<10x1xf32>
    %219 = arith.divf %217, %218 : vector<10x1xf32>
    %220 = vector.broadcast %212 : vector<10x1xf32> to vector<10x32xf32>
    %221 = arith.subf %196, %220 : vector<10x32xf32>
    %cst_91 = arith.constant 9.99999996E-13 : f32
    %222 = vector.broadcast %cst_91 : f32 to vector<10x1xf32>
    %223 = arith.addf %219, %222 : vector<10x1xf32>
    %224 = math.rsqrt %223 : vector<10x1xf32>
    %225 = vector.broadcast %224 : vector<10x1xf32> to vector<10x32xf32>
    %226 = arith.mulf %221, %225 : vector<10x32xf32>
    %227 = vector.broadcast %199 : vector<1x32xf32> to vector<10x32xf32>
    %228 = arith.mulf %226, %227 : vector<10x32xf32>
    %229 = vector.broadcast %200 : vector<1x32xf32> to vector<10x32xf32>
    %230 = arith.addf %228, %229 : vector<10x32xf32>
    %c1_92 = arith.constant 1 : index
    %c0_93 = arith.constant 0 : index
    %c0_94 = arith.constant 0 : index
    %231 = vector.load %arg4[%c1_92, %c0_93, %c0_94] : memref<2x32x96xf32, #tpu.memory_space<vmem>>, vector<1x32x96xf32>
    %232 = vector.shape_cast %231 : vector<1x32x96xf32> to vector<32x96xf32>
    %cst_95 = arith.constant dense<0.000000e+00> : vector<10x96xf32>
    %233 = tpu.matmul %230, %232, %cst_95 {dimension_numbers = #tpu.dot_dimension_numbers<[1], [0], [0], [1], [0, 0, 1, 1], [], []>} : vector<10x32xf32>, vector<32x96xf32>, vector<10x96xf32> -> vector<10x96xf32>
    %c1_96 = arith.constant 1 : index
    %c0_97 = arith.constant 0 : index
    %c0_98 = arith.constant 0 : index
    %234 = vector.load %arg5[%c1_96, %c0_97, %c0_98] : memref<2x1x96xf32, #tpu.memory_space<vmem>>, vector<1x1x96xf32>
    %235 = vector.shape_cast %234 : vector<1x1x96xf32> to vector<1x96xf32>
    %236 = vector.broadcast %235 : vector<1x96xf32> to vector<10x96xf32>
    %237 = arith.addf %233, %236 : vector<10x96xf32>
    %238 = vector.shape_cast %237 : vector<10x96xf32> to vector<2x5x96xf32>
    %c1_99 = arith.constant 1 : index
    %c0_100 = arith.constant 0 : index
    %c0_101 = arith.constant 0 : index
    %239 = vector.load %arg6[%c1_99, %c0_100, %c0_101] : memref<2x32x32xf32, #tpu.memory_space<vmem>>, vector<1x32x32xf32>
    %240 = vector.shape_cast %239 : vector<1x32x32xf32> to vector<32x32xf32>
    %241 = vector.extract_strided_slice %238 {offsets = [0, 0, 0], sizes = [2, 5, 16], strides = [1, 1, 1]} : vector<2x5x96xf32> to vector<2x5x16xf32>
    %242 = vector.extract_strided_slice %238 {offsets = [0, 0, 32], sizes = [2, 5, 16], strides = [1, 1, 1]} : vector<2x5x96xf32> to vector<2x5x16xf32>
    %243 = vector.extract_strided_slice %238 {offsets = [0, 0, 64], sizes = [2, 5, 16], strides = [1, 1, 1]} : vector<2x5x96xf32> to vector<2x5x16xf32>
    "tpu.trace_start"() <{level = 10 : i32, message = "bqd,bkd->bqk"}> : () -> ()
    %cst_102 = arith.constant dense<0.000000e+00> : vector<2x5x5xf32>
    %244 = tpu.matmul %241, %242, %cst_102 {dimension_numbers = #tpu.dot_dimension_numbers<[2], [2], [1], [1], [0, 0, 0, 1, 1, 1], [0], [0]>} : vector<2x5x16xf32>, vector<2x5x16xf32>, vector<2x5x5xf32> -> vector<2x5x5xf32>
    "tpu.trace_stop"() : () -> ()
    %cst_103 = arith.constant 2.500000e-01 : f32
    %245 = vector.broadcast %cst_103 : f32 to vector<2x5x5xf32>
    %246 = arith.mulf %244, %245 : vector<2x5x5xf32>
    %cst_104 = arith.constant dense<0xFF800000> : vector<2x5xf32>
    %247 = vector.multi_reduction <maximumf>, %246, %cst_104 [2] : vector<2x5x5xf32> to vector<2x5xf32>
    %248 = vector.shape_cast %247 : vector<2x5xf32> to vector<2x5x1xf32>
    %249 = vector.broadcast %248 : vector<2x5x1xf32> to vector<2x5x5xf32>
    %250 = arith.subf %246, %249 : vector<2x5x5xf32>
    %251 = math.exp %250 : vector<2x5x5xf32>
    %cst_105 = arith.constant dense<0.000000e+00> : vector<2x5xf32>
    %252 = vector.multi_reduction <add>, %251, %cst_105 [2] : vector<2x5x5xf32> to vector<2x5xf32>
    %253 = vector.shape_cast %252 : vector<2x5xf32> to vector<2x5x1xf32>
    %254 = tpu.reciprocal %253 {approx = true} : vector<2x5x1xf32> -> vector<2x5x1xf32>
    %255 = vector.broadcast %254 : vector<2x5x1xf32> to vector<2x5x5xf32>
    %256 = arith.mulf %251, %255 : vector<2x5x5xf32>
    "tpu.trace_start"() <{level = 10 : i32, message = "bqk,bkd->bqd"}> : () -> ()
    %cst_106 = arith.constant dense<0.000000e+00> : vector<2x5x16xf32>
    %257 = tpu.matmul %256, %243, %cst_106 {dimension_numbers = #tpu.dot_dimension_numbers<[2], [1], [1], [2], [0, 0, 0, 1, 1, 2], [0], [0]>} : vector<2x5x5xf32>, vector<2x5x16xf32>, vector<2x5x16xf32> -> vector<2x5x16xf32>
    "tpu.trace_stop"() : () -> ()
    %258 = vector.shape_cast %257 : vector<2x5x16xf32> to vector<10x16xf32>
    %259 = vector.extract_strided_slice %240 {offsets = [0, 0], sizes = [16, 32], strides = [1, 1]} : vector<32x32xf32> to vector<16x32xf32>
    %cst_107 = arith.constant dense<0.000000e+00> : vector<10x32xf32>
    %260 = tpu.matmul %258, %259, %cst_107 {dimension_numbers = #tpu.dot_dimension_numbers<[1], [0], [0], [1], [0, 0, 1, 1], [], []>} : vector<10x16xf32>, vector<16x32xf32>, vector<10x32xf32> -> vector<10x32xf32>
    %261 = vector.extract_strided_slice %238 {offsets = [0, 0, 16], sizes = [2, 5, 16], strides = [1, 1, 1]} : vector<2x5x96xf32> to vector<2x5x16xf32>
    %262 = vector.extract_strided_slice %238 {offsets = [0, 0, 48], sizes = [2, 5, 16], strides = [1, 1, 1]} : vector<2x5x96xf32> to vector<2x5x16xf32>
    %263 = vector.extract_strided_slice %238 {offsets = [0, 0, 80], sizes = [2, 5, 16], strides = [1, 1, 1]} : vector<2x5x96xf32> to vector<2x5x16xf32>
    "tpu.trace_start"() <{level = 10 : i32, message = "bqd,bkd->bqk"}> : () -> ()
    %cst_108 = arith.constant dense<0.000000e+00> : vector<2x5x5xf32>
    %264 = tpu.matmul %261, %262, %cst_108 {dimension_numbers = #tpu.dot_dimension_numbers<[2], [2], [1], [1], [0, 0, 0, 1, 1, 1], [0], [0]>} : vector<2x5x16xf32>, vector<2x5x16xf32>, vector<2x5x5xf32> -> vector<2x5x5xf32>
    "tpu.trace_stop"() : () -> ()
    %cst_109 = arith.constant 2.500000e-01 : f32
    %265 = vector.broadcast %cst_109 : f32 to vector<2x5x5xf32>
    %266 = arith.mulf %264, %265 : vector<2x5x5xf32>
    %cst_110 = arith.constant dense<0xFF800000> : vector<2x5xf32>
    %267 = vector.multi_reduction <maximumf>, %266, %cst_110 [2] : vector<2x5x5xf32> to vector<2x5xf32>
    %268 = vector.shape_cast %267 : vector<2x5xf32> to vector<2x5x1xf32>
    %269 = vector.broadcast %268 : vector<2x5x1xf32> to vector<2x5x5xf32>
    %270 = arith.subf %266, %269 : vector<2x5x5xf32>
    %271 = math.exp %270 : vector<2x5x5xf32>
    %cst_111 = arith.constant dense<0.000000e+00> : vector<2x5xf32>
    %272 = vector.multi_reduction <add>, %271, %cst_111 [2] : vector<2x5x5xf32> to vector<2x5xf32>
    %273 = vector.shape_cast %272 : vector<2x5xf32> to vector<2x5x1xf32>
    %274 = tpu.reciprocal %273 {approx = true} : vector<2x5x1xf32> -> vector<2x5x1xf32>
    %275 = vector.broadcast %274 : vector<2x5x1xf32> to vector<2x5x5xf32>
    %276 = arith.mulf %271, %275 : vector<2x5x5xf32>
    "tpu.trace_start"() <{level = 10 : i32, message = "bqk,bkd->bqd"}> : () -> ()
    %cst_112 = arith.constant dense<0.000000e+00> : vector<2x5x16xf32>
    %277 = tpu.matmul %276, %263, %cst_112 {dimension_numbers = #tpu.dot_dimension_numbers<[2], [1], [1], [2], [0, 0, 0, 1, 1, 2], [0], [0]>} : vector<2x5x5xf32>, vector<2x5x16xf32>, vector<2x5x16xf32> -> vector<2x5x16xf32>
    "tpu.trace_stop"() : () -> ()
    %278 = vector.shape_cast %277 : vector<2x5x16xf32> to vector<10x16xf32>
    %279 = vector.extract_strided_slice %240 {offsets = [16, 0], sizes = [16, 32], strides = [1, 1]} : vector<32x32xf32> to vector<16x32xf32>
    %cst_113 = arith.constant dense<0.000000e+00> : vector<10x32xf32>
    %280 = tpu.matmul %278, %279, %cst_113 {dimension_numbers = #tpu.dot_dimension_numbers<[1], [0], [0], [1], [0, 0, 1, 1], [], []>} : vector<10x16xf32>, vector<16x32xf32>, vector<10x32xf32> -> vector<10x32xf32>
    %281 = arith.addf %260, %280 : vector<10x32xf32>
    %282 = vector.broadcast %201 : vector<1x32xf32> to vector<10x32xf32>
    %283 = arith.addf %281, %282 : vector<10x32xf32>
    %c1_114 = arith.constant 1 : index
    %c0_115 = arith.constant 0 : index
    %c0_116 = arith.constant 0 : index
    %c0_117 = arith.constant 0 : index
    %284 = vector.load %arg10[%c1_114, %c0_115, %c0_116, %c0_117] : memref<2x2x32x8xf32, #tpu.memory_space<vmem>>, vector<1x1x32x8xf32>
    %285 = vector.shape_cast %284 : vector<1x1x32x8xf32> to vector<32x8xf32>
    %cst_118 = arith.constant dense<0.000000e+00> : vector<10x8xf32>
    %286 = tpu.matmul %283, %285, %cst_118 {dimension_numbers = #tpu.dot_dimension_numbers<[1], [0], [0], [1], [0, 0, 1, 1], [], []>} : vector<10x32xf32>, vector<32x8xf32>, vector<10x8xf32> -> vector<10x8xf32>
    %287 = vector.broadcast %202 : vector<1x8xf32> to vector<10x8xf32>
    %288 = arith.addf %286, %287 : vector<10x8xf32>
    %289 = arith.mulf %288, %288 : vector<10x8xf32>
    %290 = arith.mulf %288, %289 : vector<10x8xf32>
    %cst_119 = arith.constant 4.471500e-02 : f32
    %291 = vector.broadcast %cst_119 : f32 to vector<10x8xf32>
    %292 = arith.mulf %291, %290 : vector<10x8xf32>
    %293 = arith.addf %288, %292 : vector<10x8xf32>
    %cst_120 = arith.constant 0.797884583 : f32
    %294 = vector.broadcast %cst_120 : f32 to vector<10x8xf32>
    %295 = arith.mulf %294, %293 : vector<10x8xf32>
    %296 = math.tanh %295 : vector<10x8xf32>
    %cst_121 = arith.constant 1.000000e+00 : f32
    %297 = vector.broadcast %cst_121 : f32 to vector<10x8xf32>
    %298 = arith.addf %297, %296 : vector<10x8xf32>
    %cst_122 = arith.constant 5.000000e-01 : f32
    %299 = vector.broadcast %cst_122 : f32 to vector<10x8xf32>
    %300 = arith.mulf %299, %298 : vector<10x8xf32>
    %301 = arith.mulf %288, %300 : vector<10x8xf32>
    %c1_123 = arith.constant 1 : index
    %c0_124 = arith.constant 0 : index
    %c0_125 = arith.constant 0 : index
    %c0_126 = arith.constant 0 : index
    %302 = vector.load %arg11[%c1_123, %c0_124, %c0_125, %c0_126] : memref<2x2x8x32xf32, #tpu.memory_space<vmem>>, vector<1x1x8x32xf32>
    %303 = vector.shape_cast %302 : vector<1x1x8x32xf32> to vector<8x32xf32>
    %cst_127 = arith.constant dense<0.000000e+00> : vector<10x32xf32>
    %304 = tpu.matmul %301, %303, %cst_127 {dimension_numbers = #tpu.dot_dimension_numbers<[1], [0], [0], [1], [0, 0, 1, 1], [], []>} : vector<10x8xf32>, vector<8x32xf32>, vector<10x32xf32> -> vector<10x32xf32>
    %305 = vector.broadcast %203 : vector<1x32xf32> to vector<10x32xf32>
    %306 = arith.addf %304, %305 : vector<10x32xf32>
    %307 = arith.addf %306, %283 : vector<10x32xf32>
    %308 = arith.addf %307, %196 : vector<10x32xf32>
    %cst_128 = arith.constant dense<0.000000e+00> : vector<10xf32>
    %309 = vector.multi_reduction <add>, %308, %cst_128 [1] : vector<10x32xf32> to vector<10xf32>
    %310 = vector.shape_cast %309 : vector<10xf32> to vector<10x1xf32>
    %cst_129 = arith.constant 3.200000e+01 : f32
    %311 = vector.broadcast %cst_129 : f32 to vector<10x1xf32>
    %312 = arith.divf %310, %311 : vector<10x1xf32>
    %313 = vector.broadcast %312 : vector<10x1xf32> to vector<10x32xf32>
    %314 = arith.subf %308, %313 : vector<10x32xf32>
    %315 = arith.mulf %314, %314 : vector<10x32xf32>
    %cst_130 = arith.constant dense<0.000000e+00> : vector<10xf32>
    %316 = vector.multi_reduction <add>, %315, %cst_130 [1] : vector<10x32xf32> to vector<10xf32>
    %317 = vector.shape_cast %316 : vector<10xf32> to vector<10x1xf32>
    %cst_131 = arith.constant 3.200000e+01 : f32
    %318 = vector.broadcast %cst_131 : f32 to vector<10x1xf32>
    %319 = arith.divf %317, %318 : vector<10x1xf32>
    %320 = vector.broadcast %312 : vector<10x1xf32> to vector<10x32xf32>
    %321 = arith.subf %308, %320 : vector<10x32xf32>
    %cst_132 = arith.constant 9.99999996E-13 : f32
    %322 = vector.broadcast %cst_132 : f32 to vector<10x1xf32>
    %323 = arith.addf %319, %322 : vector<10x1xf32>
    %324 = math.rsqrt %323 : vector<10x1xf32>
    %325 = vector.broadcast %324 : vector<10x1xf32> to vector<10x32xf32>
    %326 = arith.mulf %321, %325 : vector<10x32xf32>
    %327 = vector.broadcast %204 : vector<1x32xf32> to vector<10x32xf32>
    %328 = arith.mulf %326, %327 : vector<10x32xf32>
    %329 = vector.broadcast %205 : vector<1x32xf32> to vector<10x32xf32>
    %330 = arith.addf %328, %329 : vector<10x32xf32>
    %c1_133 = arith.constant 1 : index
    %c0_134 = arith.constant 0 : index
    %c0_135 = arith.constant 0 : index
    %331 = vector.load %arg7[%c1_133, %c0_134, %c0_135] : memref<2x32x64xf32, #tpu.memory_space<vmem>>, vector<1x32x64xf32>
    %332 = vector.shape_cast %331 : vector<1x32x64xf32> to vector<32x64xf32>
    %cst_136 = arith.constant dense<0.000000e+00> : vector<10x64xf32>
    %333 = tpu.matmul %330, %332, %cst_136 {dimension_numbers = #tpu.dot_dimension_numbers<[1], [0], [0], [1], [0, 0, 1, 1], [], []>} : vector<10x32xf32>, vector<32x64xf32>, vector<10x64xf32> -> vector<10x64xf32>
    %c1_137 = arith.constant 1 : index
    %c0_138 = arith.constant 0 : index
    %c0_139 = arith.constant 0 : index
    %334 = vector.load %arg8[%c1_137, %c0_138, %c0_139] : memref<2x1x64xf32, #tpu.memory_space<vmem>>, vector<1x1x64xf32>
    %335 = vector.shape_cast %334 : vector<1x1x64xf32> to vector<1x64xf32>
    %336 = vector.broadcast %335 : vector<1x64xf32> to vector<10x64xf32>
    %337 = arith.addf %333, %336 : vector<10x64xf32>
    %338 = arith.mulf %337, %337 : vector<10x64xf32>
    %339 = arith.mulf %337, %338 : vector<10x64xf32>
    %cst_140 = arith.constant 4.471500e-02 : f32
    %340 = vector.broadcast %cst_140 : f32 to vector<10x64xf32>
    %341 = arith.mulf %340, %339 : vector<10x64xf32>
    %342 = arith.addf %337, %341 : vector<10x64xf32>
    %cst_141 = arith.constant 0.797884583 : f32
    %343 = vector.broadcast %cst_141 : f32 to vector<10x64xf32>
    %344 = arith.mulf %343, %342 : vector<10x64xf32>
    %345 = math.tanh %344 : vector<10x64xf32>
    %cst_142 = arith.constant 1.000000e+00 : f32
    %346 = vector.broadcast %cst_142 : f32 to vector<10x64xf32>
    %347 = arith.addf %346, %345 : vector<10x64xf32>
    %cst_143 = arith.constant 5.000000e-01 : f32
    %348 = vector.broadcast %cst_143 : f32 to vector<10x64xf32>
    %349 = arith.mulf %348, %347 : vector<10x64xf32>
    %350 = arith.mulf %337, %349 : vector<10x64xf32>
    %c1_144 = arith.constant 1 : index
    %c0_145 = arith.constant 0 : index
    %c0_146 = arith.constant 0 : index
    %351 = vector.load %arg9[%c1_144, %c0_145, %c0_146] : memref<2x64x32xf32, #tpu.memory_space<vmem>>, vector<1x64x32xf32>
    %352 = vector.shape_cast %351 : vector<1x64x32xf32> to vector<64x32xf32>
    %cst_147 = arith.constant dense<0.000000e+00> : vector<10x32xf32>
    %353 = tpu.matmul %350, %352, %cst_147 {dimension_numbers = #tpu.dot_dimension_numbers<[1], [0], [0], [1], [0, 0, 1, 1], [], []>} : vector<10x64xf32>, vector<64x32xf32>, vector<10x32xf32> -> vector<10x32xf32>
    %354 = vector.broadcast %206 : vector<1x32xf32> to vector<10x32xf32>
    %355 = arith.addf %353, %354 : vector<10x32xf32>
    %c1_148 = arith.constant 1 : index
    %c1_149 = arith.constant 1 : index
    %c0_150 = arith.constant 0 : index
    %c0_151 = arith.constant 0 : index
    %356 = vector.load %arg10[%c1_148, %c1_149, %c0_150, %c0_151] : memref<2x2x32x8xf32, #tpu.memory_space<vmem>>, vector<1x1x32x8xf32>
    %357 = vector.shape_cast %356 : vector<1x1x32x8xf32> to vector<32x8xf32>
    %cst_152 = arith.constant dense<0.000000e+00> : vector<10x8xf32>
    %358 = tpu.matmul %355, %357, %cst_152 {dimension_numbers = #tpu.dot_dimension_numbers<[1], [0], [0], [1], [0, 0, 1, 1], [], []>} : vector<10x32xf32>, vector<32x8xf32>, vector<10x8xf32> -> vector<10x8xf32>
    %359 = vector.broadcast %207 : vector<1x8xf32> to vector<10x8xf32>
    %360 = arith.addf %358, %359 : vector<10x8xf32>
    %361 = arith.mulf %360, %360 : vector<10x8xf32>
    %362 = arith.mulf %360, %361 : vector<10x8xf32>
    %cst_153 = arith.constant 4.471500e-02 : f32
    %363 = vector.broadcast %cst_153 : f32 to vector<10x8xf32>
    %364 = arith.mulf %363, %362 : vector<10x8xf32>
    %365 = arith.addf %360, %364 : vector<10x8xf32>
    %cst_154 = arith.constant 0.797884583 : f32
    %366 = vector.broadcast %cst_154 : f32 to vector<10x8xf32>
    %367 = arith.mulf %366, %365 : vector<10x8xf32>
    %368 = math.tanh %367 : vector<10x8xf32>
    %cst_155 = arith.constant 1.000000e+00 : f32
    %369 = vector.broadcast %cst_155 : f32 to vector<10x8xf32>
    %370 = arith.addf %369, %368 : vector<10x8xf32>
    %cst_156 = arith.constant 5.000000e-01 : f32
    %371 = vector.broadcast %cst_156 : f32 to vector<10x8xf32>
    %372 = arith.mulf %371, %370 : vector<10x8xf32>
    %373 = arith.mulf %360, %372 : vector<10x8xf32>
    %c1_157 = arith.constant 1 : index
    %c1_158 = arith.constant 1 : index
    %c0_159 = arith.constant 0 : index
    %c0_160 = arith.constant 0 : index
    %374 = vector.load %arg11[%c1_157, %c1_158, %c0_159, %c0_160] : memref<2x2x8x32xf32, #tpu.memory_space<vmem>>, vector<1x1x8x32xf32>
    %375 = vector.shape_cast %374 : vector<1x1x8x32xf32> to vector<8x32xf32>
    %cst_161 = arith.constant dense<0.000000e+00> : vector<10x32xf32>
    %376 = tpu.matmul %373, %375, %cst_161 {dimension_numbers = #tpu.dot_dimension_numbers<[1], [0], [0], [1], [0, 0, 1, 1], [], []>} : vector<10x8xf32>, vector<8x32xf32>, vector<10x32xf32> -> vector<10x32xf32>
    %377 = vector.broadcast %208 : vector<1x32xf32> to vector<10x32xf32>
    %378 = arith.addf %376, %377 : vector<10x32xf32>
    %379 = arith.addf %378, %355 : vector<10x32xf32>
    %380 = arith.addf %379, %308 : vector<10x32xf32>
    %cst_162 = arith.constant dense<0.000000e+00> : vector<10xf32>
    %381 = vector.multi_reduction <add>, %380, %cst_162 [1] : vector<10x32xf32> to vector<10xf32>
    %382 = vector.shape_cast %381 : vector<10xf32> to vector<10x1xf32>
    %cst_163 = arith.constant 3.200000e+01 : f32
    %383 = vector.broadcast %cst_163 : f32 to vector<10x1xf32>
    %384 = arith.divf %382, %383 : vector<10x1xf32>
    %385 = vector.broadcast %384 : vector<10x1xf32> to vector<10x32xf32>
    %386 = arith.subf %380, %385 : vector<10x32xf32>
    %387 = arith.mulf %386, %386 : vector<10x32xf32>
    %cst_164 = arith.constant dense<0.000000e+00> : vector<10xf32>
    %388 = vector.multi_reduction <add>, %387, %cst_164 [1] : vector<10x32xf32> to vector<10xf32>
    %389 = vector.shape_cast %388 : vector<10xf32> to vector<10x1xf32>
    %cst_165 = arith.constant 3.200000e+01 : f32
    %390 = vector.broadcast %cst_165 : f32 to vector<10x1xf32>
    %391 = arith.divf %389, %390 : vector<10x1xf32>
    %392 = vector.broadcast %384 : vector<10x1xf32> to vector<10x32xf32>
    %393 = arith.subf %380, %392 : vector<10x32xf32>
    %cst_166 = arith.constant 9.99999996E-13 : f32
    %394 = vector.broadcast %cst_166 : f32 to vector<10x1xf32>
    %395 = arith.addf %391, %394 : vector<10x1xf32>
    %396 = math.rsqrt %395 : vector<10x1xf32>
    %397 = vector.broadcast %396 : vector<10x1xf32> to vector<10x32xf32>
    %398 = arith.mulf %393, %397 : vector<10x32xf32>
    %399 = vector.broadcast %1 : vector<1x32xf32> to vector<10x32xf32>
    %400 = arith.mulf %398, %399 : vector<10x32xf32>
    %401 = vector.broadcast %2 : vector<1x32xf32> to vector<10x32xf32>
    %402 = arith.addf %400, %401 : vector<10x32xf32>
    %403 = vector.shape_cast %402 : vector<10x32xf32> to vector<2x5x32xf32>
    %c0_167 = arith.constant 0 : index
    %c0_168 = arith.constant 0 : index
    %c0_169 = arith.constant 0 : index
    %404 = vector.load %arg14[%c0_167, %c0_168, %c0_169] : memref<2x5x32xf32, #tpu.memory_space<vmem>>, vector<2x5x32xf32>
    tpu.vector_store %arg14[%c0_167, %c0_168, %c0_169], %403 {strides = array<i32>} : memref<2x5x32xf32, #tpu.memory_space<vmem>>, vector<2x5x32xf32>,
    %405 = vector.extract_strided_slice %403 {offsets = [0, 0, 0], sizes = [2, 1, 32], strides = [1, 1, 1]} : vector<2x5x32xf32> to vector<2x1x32xf32>
    %406 = vector.shape_cast %405 : vector<2x1x32xf32> to vector<2x32xf32>
    %c0_170 = arith.constant 0 : index
    %c0_171 = arith.constant 0 : index
    %407 = vector.load %arg13[%c0_170, %c0_171] : memref<32x32xf32, #tpu.memory_space<vmem>>, vector<32x32xf32>
    %cst_172 = arith.constant dense<0.000000e+00> : vector<2x32xf32>
    %408 = tpu.matmul %406, %407, %cst_172 {dimension_numbers = #tpu.dot_dimension_numbers<[1], [0], [0], [1], [0, 0, 1, 1], [], []>} : vector<2x32xf32>, vector<32x32xf32>, vector<2x32xf32> -> vector<2x32xf32>
    %409 = vector.broadcast %3 : vector<1x32xf32> to vector<2x32xf32>
    %410 = arith.addf %408, %409 : vector<2x32xf32>
    %411 = math.tanh %410 : vector<2x32xf32>
    %c0_173 = arith.constant 0 : index
    %c0_174 = arith.constant 0 : index
    %412 = vector.load %arg15[%c0_173, %c0_174] : memref<2x32xf32, #tpu.memory_space<vmem>>, vector<2x32xf32>
    tpu.vector_store %arg15[%c0_173, %c0_174], %411 {strides = array<i32>} : memref<2x32xf32, #tpu.memory_space<vmem>>, vector<2x32xf32>,
    return
  }
}

</mosaic_0001>

<llo_original>
// kernel: vit_with_adapter_forward.1
$region0: #{vit_with_adapter_forward.1}
  #allocation0 [shape = 'u32[]', space=smem, size = 0x4, offset = 0x4, fixed_abs, tag = 'smem constant byte address 0x4 - core index']
  #allocation1 [shape = 'u32[144,128]{1,0:T(1,128)}', space=vmem, size = 0x12000, scoped, tag = 'internal scratch']
  %s0 = inlined_call_operand.vmem [shape: f32[10,192], index: 0, kind: input, shape index: {}]
  %s1 = inlined_call_operand.vmem [shape: f32[192,32], index: 1, kind: input, shape index: {}]
  %s2 = inlined_call_operand.vmem [shape: f32[5,32], index: 2, kind: input, shape index: {}]
  %s3 = inlined_call_operand.vmem [shape: f32[3,32], index: 3, kind: input, shape index: {}]
  %s4 = inlined_call_operand.vmem [shape: f32[2,32,96], index: 4, kind: input, shape index: {}]
  %s5 = inlined_call_operand.vmem [shape: f32[2,1,96], index: 5, kind: input, shape index: {}]
  %s6 = inlined_call_operand.vmem [shape: f32[2,32,32], index: 6, kind: input, shape index: {}]
  %s7 = inlined_call_operand.vmem [shape: f32[2,32,64], index: 7, kind: input, shape index: {}]
  %s8 = inlined_call_operand.vmem [shape: f32[2,1,64], index: 8, kind: input, shape index: {}]
  %s9 = inlined_call_operand.vmem [shape: f32[2,64,32], index: 9, kind: input, shape index: {}]
  %s10 = inlined_call_operand.vmem [shape: f32[2,2,32,8], index: 10, kind: input, shape index: {}]
  %s11 = inlined_call_operand.vmem [shape: f32[2,2,8,32], index: 11, kind: input, shape index: {}]
  %s12 = inlined_call_operand.vmem [shape: f32[2,10,32], index: 12, kind: input, shape index: {}]
  %s13 = inlined_call_operand.vmem [shape: f32[32,32], index: 13, kind: input, shape index: {}]
  %s14 = inlined_call_operand.vmem [shape: f32[2,5,32], index: 14, kind: output, shape index: {0}]
  %s15 = inlined_call_operand.hbm [shape: f32[2,32], index: 15, kind: output, shape index: {1}]
  %16 = xla_tuple %s14, %s15
  %s17 = sld [smem:[#allocation0]]
  $region74: #{vit_with_adapter_forward.1} parent=0
    _
  %s19 = ssub.s32 1, %s17
  %s20 = scalar_select 0, %s19, %s17
  $region1: #{vit_with_adapter_forward.1} parent=0
    #allocation2 [shape = 'u8[1024]{0}', space=vmem, size = 0x400, scoped, tag = 'output window, operand 1, single buffered']
    #allocation3 [shape = 's32[1]{0}', space=sflag, size = 0x4, scoped, tag = 'scoped memory for vit_with_adapter_forward.1']
    %21 = vsyncpa [#allocation3], 0
    // Predicated region
    $region2: #{vit_with_adapter_forward.1} parent=1 // pred_check
      _
    $region3: #{vit_with_adapter_forward.1} parent=1 // pred_check_branch
      %23 = sbr.rel (0) target = $region5
    $region4: #{vit_with_adapter_forward.1} parent=1 // pred_region
      _
    $region5: #{vit_with_adapter_forward.1} parent=1 // pred_fallthru
      _
    // Predicated region
    $region6: #{vit_with_adapter_forward.1} parent=1 // pred_check
      _
    $region7: #{vit_with_adapter_forward.1} parent=1 // pred_check_branch
      %25 = sbr.rel (0) target = $region9
    $region8: #{vit_with_adapter_forward.1} parent=1 // pred_region
      _
    $region9: #{vit_with_adapter_forward.1} parent=1 // pred_fallthru
      _
    // Predicated region
    $region10: #{vit_with_adapter_forward.1} parent=1 // pred_check
      _
    $region11: #{vit_with_adapter_forward.1} parent=1 // pred_check_branch
      %27 = sbr.rel (0) target = $region13
    $region12: #{vit_with_adapter_forward.1} parent=1 // pred_region
      _
    $region13: #{vit_with_adapter_forward.1} parent=1 // pred_fallthru
      _
    // Predicated region
    $region14: #{vit_with_adapter_forward.1} parent=1 // pred_check
      _
    $region15: #{vit_with_adapter_forward.1} parent=1 // pred_check_branch
      %29 = sbr.rel (0) target = $region17
    $region16: #{vit_with_adapter_forward.1} parent=1 // pred_region
      _
    $region17: #{vit_with_adapter_forward.1} parent=1 // pred_fallthru
      _
    // Predicated region
    $region18: #{vit_with_adapter_forward.1} parent=1 // pred_check
      _
    $region19: #{vit_with_adapter_forward.1} parent=1 // pred_check_branch
      %31 = sbr.rel (0) target = $region21
    $region20: #{vit_with_adapter_forward.1} parent=1 // pred_region
      _
    $region21: #{vit_with_adapter_forward.1} parent=1 // pred_fallthru
      _
    // Predicated region
    $region22: #{vit_with_adapter_forward.1} parent=1 // pred_check
      _
    $region23: #{vit_with_adapter_forward.1} parent=1 // pred_check_branch
      %33 = sbr.rel (0) target = $region25
    $region24: #{vit_with_adapter_forward.1} parent=1 // pred_region
      _
    $region25: #{vit_with_adapter_forward.1} parent=1 // pred_fallthru
      _
    // Predicated region
    $region26: #{vit_with_adapter_forward.1} parent=1 // pred_check
      _
    $region27: #{vit_with_adapter_forward.1} parent=1 // pred_check_branch
      %35 = sbr.rel (0) target = $region29
    $region28: #{vit_with_adapter_forward.1} parent=1 // pred_region
      _
    $region29: #{vit_with_adapter_forward.1} parent=1 // pred_fallthru
      _
    // Predicated region
    $region30: #{vit_with_adapter_forward.1} parent=1 // pred_check
      _
    $region31: #{vit_with_adapter_forward.1} parent=1 // pred_check_branch
      %37 = sbr.rel (0) target = $region33
    $region32: #{vit_with_adapter_forward.1} parent=1 // pred_region
      _
    $region33: #{vit_with_adapter_forward.1} parent=1 // pred_fallthru
      _
    // Predicated region
    $region34: #{vit_with_adapter_forward.1} parent=1 // pred_check
      _
    $region35: #{vit_with_adapter_forward.1} parent=1 // pred_check_branch
      %39 = sbr.rel (0) target = $region37
    $region36: #{vit_with_adapter_forward.1} parent=1 // pred_region
      _
    $region37: #{vit_with_adapter_forward.1} parent=1 // pred_fallthru
      _
    // Predicated region
    $region38: #{vit_with_adapter_forward.1} parent=1 // pred_check
      _
    $region39: #{vit_with_adapter_forward.1} parent=1 // pred_check_branch
      %41 = sbr.rel (0) target = $region41
    $region40: #{vit_with_adapter_forward.1} parent=1 // pred_region
      _
    $region41: #{vit_with_adapter_forward.1} parent=1 // pred_fallthru
      _
    // Predicated region
    $region42: #{vit_with_adapter_forward.1} parent=1 // pred_check
      _
    $region43: #{vit_with_adapter_forward.1} parent=1 // pred_check_branch
      %43 = sbr.rel (0) target = $region45
    $region44: #{vit_with_adapter_forward.1} parent=1 // pred_region
      _
    $region45: #{vit_with_adapter_forward.1} parent=1 // pred_fallthru
      _
    // Predicated region
    $region46: #{vit_with_adapter_forward.1} parent=1 // pred_check
      _
    $region47: #{vit_with_adapter_forward.1} parent=1 // pred_check_branch
      %45 = sbr.rel (0) target = $region49
    $region48: #{vit_with_adapter_forward.1} parent=1 // pred_region
      _
    $region49: #{vit_with_adapter_forward.1} parent=1 // pred_fallthru
      _
    // Predicated region
    $region50: #{vit_with_adapter_forward.1} parent=1 // pred_check
      _
    $region51: #{vit_with_adapter_forward.1} parent=1 // pred_check_branch
      %47 = sbr.rel (0) target = $region53
    $region52: #{vit_with_adapter_forward.1} parent=1 // pred_region
      _
    $region53: #{vit_with_adapter_forward.1} parent=1 // pred_fallthru
      _
    // Predicated region
    $region54: #{vit_with_adapter_forward.1} parent=1 // pred_check
      _
    $region55: #{vit_with_adapter_forward.1} parent=1 // pred_check_branch
      %49 = sbr.rel (0) target = $region57
    $region56: #{vit_with_adapter_forward.1} parent=1 // pred_region
      _
    $region57: #{vit_with_adapter_forward.1} parent=1 // pred_fallthru
      _
    %v50 = vld [vmem:[%s3] sm:$0x7]
    %v51 = vld [vmem:[%s0] sm:$0xff]
    %v52 = vld [vmem:[%s0 + $0x8] sm:$0xff]
    %v53 = vld [vmem:[%s0 + $0x10] sm:$0x3]
    %v54 = vld [vmem:[%s0 + $0x18] sm:$0x3]
    %v55 = vld [vmem:[%s1] sm:$0xff]
    %v56 = vld [vmem:[%s1 + $0x8] sm:$0xff]
    %v57 = vld [vmem:[%s1 + $0x10] sm:$0xff]
    %v58 = vld [vmem:[%s1 + $0x18] sm:$0xff]
    %v59 = vld [vmem:[%s1 + $0x20] sm:$0xff]
    %v60 = vld [vmem:[%s1 + $0x28] sm:$0xff]
    %v61 = vld [vmem:[%s1 + $0x30] sm:$0xff]
    %v62 = vld [vmem:[%s1 + $0x38] sm:$0xff]
    %v63 = vld [vmem:[%s1 + $0x40] sm:$0xff]
    %v64 = vld [vmem:[%s1 + $0x48] sm:$0xff]
    %v65 = vld [vmem:[%s1 + $0x50] sm:$0xff]
    %v66 = vld [vmem:[%s1 + $0x58] sm:$0xff]
    %v67 = vld [vmem:[%s1 + $0x60] sm:$0xff]
    %v68 = vld [vmem:[%s1 + $0x68] sm:$0xff]
    %v69 = vld [vmem:[%s1 + $0x70] sm:$0xff]
    %v70 = vld [vmem:[%s1 + $0x78] sm:$0xff]
    %v71 = vld [vmem:[%s1 + $0x80] sm:$0xff]
    %v72 = vld [vmem:[%s1 + $0x88] sm:$0xff]
    %v73 = vld [vmem:[%s1 + $0x90] sm:$0xff]
    %v74 = vld [vmem:[%s1 + $0x98] sm:$0xff]
    %v75 = vld [vmem:[%s1 + $0xa0] sm:$0xff]
    %v76 = vld [vmem:[%s1 + $0xa8] sm:$0xff]
    %v77 = vld [vmem:[%s1 + $0xb0] sm:$0xff]
    %v78 = vld [vmem:[%s1 + $0xb8] sm:$0xff]
    %vm79 = vcmask 523264
    %v81 = vsel %vm79, %v52, 0
    %v84 = vsel %vm79, %v54, 0
    %86 = vmatprep.subr.mxu0 0.0
    %87 = vmatpush1.msra.mxu0 %v55
    %88 = vmatprep.subr.mxu0 0.0
    %89 = vmatpush1.msra.mxu0 %v56
    %90 = vmatprep.subr.mxu0 0.0
    %91 = vmatpush1.msra.mxu0 %v57
    %92 = vmatprep.subr.mxu0 0.0
    %93 = vmatpush1.msra.mxu0 %v58
    %94 = vmatprep.subr.mxu0 0.0
    %95 = vmatpush1.msra.mxu0 %v59
    %96 = vmatprep.subr.mxu0 0.0
    %97 = vmatpush1.msra.mxu0 %v60
    %98 = vmatprep.subr.mxu0 0.0
    %99 = vmatpush1.msra.mxu0 %v61
    %100 = vmatprep.subr.mxu0 0.0
    %101 = vmatpush1.msra.mxu0 %v62
    %102 = vmatprep.subr.mxu0 0.0
    %103 = vmatpush1.msra.mxu0 %v63
    %104 = vmatprep.subr.mxu0 0.0
    %105 = vmatpush1.msra.mxu0 %v64
    %106 = vmatprep.subr.mxu0 0.0
    %107 = vmatpush1.msra.mxu0 %v65
    %108 = vmatprep.subr.mxu0 0.0
    %109 = vmatpush1.msra.mxu0 %v66
    %110 = vmatprep.subr.mxu0 0.0
    %111 = vmatpush1.msra.mxu0 %v67
    %112 = vmatprep.subr.mxu0 0.0
    %113 = vmatpush1.msra.mxu0 %v68
    %114 = vmatprep.subr.mxu0 0.0
    %115 = vmatpush1.msra.mxu0 %v69
    %116 = vmatprep.subr.mxu0 0.0
    %117 = vmatpush1.msra.mxu0 %v70
    %118 = vmatprep.subr.mxu0 0.0
    %119 = vmatpush1.msra.mxu0 %v71
    %120 = vmatprep.subr.mxu0 0.0
    %121 = vmatpush1.msra.mxu0 %v72
    %122 = vmatprep.subr.mxu0 0.0
    %123 = vmatpush1.msra.mxu0 %v73
    %124 = vmatprep.subr.mxu0 0.0
    %125 = vmatpush1.msra.mxu0 %v74
    %126 = vmatprep.subr.mxu0 0.0
    %127 = vmatpush1.msra.mxu0 %v75
    %128 = vmatprep.subr.mxu0 0.0
    %129 = vmatpush1.msra.mxu0 %v76
    %130 = vmatprep.subr.mxu0 0.0
    %131 = vmatpush1.msra.mxu0 %v77
    %132 = vmatprep.subr.mxu0 0.0
    %133 = vmatpush1.msra.mxu0 %v78
    %134 = vmatprep.subr.mxu0 0.0
    %135 = vmatpush1.msra.mxu0 0.0
    %136 = vmatprep.subr.mxu0 0.0
    %137 = vmatpush1.msra.mxu0 0.0
    %138 = vmatprep.subr.mxu0 0.0
    %139 = vmatpush1.msra.mxu0 0.0
    %140 = vmatprep.subr.mxu0 0.0
    %141 = vmatpush1.msra.mxu0 0.0
    %142 = vmatprep.subr.mxu0 0.0
    %143 = vmatpush1.msra.mxu0 0.0
    %144 = vmatprep.subr.mxu0 0.0
    %145 = vmatpush1.msra.mxu0 0.0
    %146 = vmatprep.subr.mxu0 0.0
    %147 = vmatpush1.msra.mxu0 0.0
    %148 = vmatprep.subr.mxu0 0.0
    %149 = vmatpush1.msra.mxu0 0.0
    %150 = vmatprep.mubr.f32.mxu0 %v81
    %151 = vmatmul.mubr.f32.gmra.mrb[0].mxu0 %v51
    %v152 = vpop.f32.mrb[0].mxu0
    %v153 = vadd.f32 0.0, %v152
    %v154 = vpop.f32.mrb[0].mxu0
    %155 = vmatprep.mubr.f32.mxu0 %v84
    %156 = vmatmul.mubr.f32.gmra.mrb[0].mxu0 %v53
    %v157 = vpop.f32.mrb[0].mxu0
    %v158 = vadd.f32 0.0, %v157
    %v159 = vpop.f32.mrb[0].mxu0
    %160 = vdwg.mxu0
    %v163 = vcombine.high %v153, %v153
    %v165 = vunpack.c.l.s4 1966171168
    %v166 = vunpack.c.0.s8 %v165
    %v167 = vlaneseq
    %v168 = vshrl.u32 %v167, 7
    %v169 = vsub.s32 %v166, %v168
    %v170 = vrot.slane %v153, %v169
    %v172 = vunpack.c.l.s4 1966171168
    %v173 = vunpack.c.0.s8 %v172
    %v174 = vlaneseq
    %v175 = vshrl.u32 %v174, 7
    %v176 = vsub.s32 %v173, %v175
    %v177 = vrot.slane %v163, %v176
    %v178 = vcombine.high %v170, %v170
    %v179 = vcombine.high %v177, %v177
    %v181 = vunpack.c.l.s4 1966171168
    %v182 = vunpack.c.0.s8 %v181
    %v183 = vlaneseq
    %v184 = vshrl.u32 %v183, 7
    %v185 = vsub.s32 %v182, %v184
    %v186 = vrot.slane %v170, %v185
    %v188 = vunpack.c.l.s4 1966171168
    %v189 = vunpack.c.0.s8 %v188
    %v190 = vlaneseq
    %v191 = vshrl.u32 %v190, 7
    %v192 = vsub.s32 %v189, %v191
    %v193 = vrot.slane %v177, %v192
    %v195 = vunpack.c.l.s4 1966171168
    %v196 = vunpack.c.0.s8 %v195
    %v197 = vlaneseq
    %v198 = vshrl.u32 %v197, 7
    %v199 = vsub.s32 %v196, %v198
    %v200 = vrot.slane %v178, %v199
    %v202 = vunpack.c.l.s4 1966171168
    %v203 = vunpack.c.0.s8 %v202
    %v204 = vlaneseq
    %v205 = vshrl.u32 %v204, 7
    %v206 = vsub.s32 %v203, %v205
    %v207 = vrot.slane %v179, %v206
    %v208 = vcombine.high %v186, %v186
    %v209 = vcombine.high %v193, %v193
    %v210 = vcombine.high %v200, %v200
    %v211 = vcombine.high %v207, %v207
    %v213 = vunpack.c.l.s4 1966171168
    %v214 = vunpack.c.0.s8 %v213
    %v215 = vlaneseq
    %v216 = vshrl.u32 %v215, 7
    %v217 = vsub.s32 %v214, %v216
    %v218 = vrot.slane %v158, %v217
    %v219 = vcombine.high %v218, %v218
    %v221 = vunpack.c.l.s4 1966171168
    %v222 = vunpack.c.0.s8 %v221
    %v223 = vlaneseq
    %v224 = vshrl.u32 %v223, 7
    %v225 = vsub.s32 %v222, %v224
    %v226 = vrot.slane %v218, %v225
    %v228 = vunpack.c.l.s4 1966171168
    %v229 = vunpack.c.0.s8 %v228
    %v230 = vlaneseq
    %v231 = vshrl.u32 %v230, 7
    %v232 = vsub.s32 %v229, %v231
    %v233 = vrot.slane %v219, %v232
    %v244 = vld [vmem:[%s2] sm:$0x1f]
    %v246 = vcombine.high %v244, %v244
    %v248 = vunpack.c.l.s4 1966171168
    %v249 = vunpack.c.0.s8 %v248
    %v250 = vlaneseq
    %v251 = vshrl.u32 %v250, 7
    %v252 = vsub.s32 %v249, %v251
    %v253 = vrot.slane %v244, %v252
    %v255 = vunpack.c.l.s4 1966171168
    %v256 = vunpack.c.0.s8 %v255
    %v257 = vlaneseq
    %v258 = vshrl.u32 %v257, 7
    %v259 = vsub.s32 %v256, %v258
    %v260 = vrot.slane %v246, %v259
    %v261 = vcombine.high %v253, %v253
    %v263 = vunpack.c.l.s4 1966171168
    %v264 = vunpack.c.0.s8 %v263
    %v265 = vlaneseq
    %v266 = vshrl.u32 %v265, 7
    %v267 = vsub.s32 %v264, %v266
    %v268 = vrot.slane %v253, %v267
    %v270 = vunpack.c.l.s4 1966171168
    %v271 = vunpack.c.0.s8 %v270
    %v272 = vlaneseq
    %v273 = vshrl.u32 %v272, 7
    %v274 = vsub.s32 %v271, %v273
    %v275 = vrot.slane %v260, %v274
    %v277 = vunpack.c.l.s4 1966171168
    %v278 = vunpack.c.0.s8 %v277
    %v279 = vlaneseq
    %v280 = vshrl.u32 %v279, 7
    %v281 = vsub.s32 %v278, %v280
    %v282 = vrot.slane %v261, %v281
    %v283 = vcombine.high %v268, %v268
    %v284 = vcombine.high %v282, %v282
    %v290 = vadd.f32 %v186, %v268
    %v291 = vadd.f32 %v200, %v282
    %v292 = vadd.f32 %v208, %v283
    %v293 = vadd.f32 %v210, %v284
    %v294 = vadd.f32 %v193, %v275
    %v295 = vadd.f32 %v207, %v268
    %v296 = vadd.f32 %v209, %v282
    %v297 = vadd.f32 %v211, %v283
    %v298 = vadd.f32 %v226, %v284
    %v299 = vadd.f32 %v233, %v275
    %v300 = vld [vmem:[%s12] sm:$0xff]
    %v301 = vld [vmem:[%s12 + $0x8] sm:$0x3]
    %v312 = vcombine.low %v290, %v291
    %v313 = vcombine.low %v292, %v293
    %v314 = vcombine.low %v294, %v295
    %v315 = vcombine.low %v296, %v297
    %v317 = vunpack.c.l.s4 1966171168
    %v318 = vunpack.c.0.s8 %v317
    %v319 = vlaneseq
    %v320 = vshrl.u32 %v319, 7
    %v321 = vsub.s32 %v318, %v320
    %v322 = vrot.slane %v312, %v321
    %v324 = vunpack.c.l.s4 1966171168
    %v325 = vunpack.c.0.s8 %v324
    %v326 = vlaneseq
    %v327 = vshrl.u32 %v326, 7
    %v328 = vsub.s32 %v325, %v327
    %v329 = vrot.slane %v313, %v328
    %v331 = vunpack.c.l.s4 1966171168
    %v332 = vunpack.c.0.s8 %v331
    %v333 = vlaneseq
    %v334 = vshrl.u32 %v333, 7
    %v335 = vsub.s32 %v332, %v334
    %v336 = vrot.slane %v314, %v335
    %v338 = vunpack.c.l.s4 1966171168
    %v339 = vunpack.c.0.s8 %v338
    %v340 = vlaneseq
    %v341 = vshrl.u32 %v340, 7
    %v342 = vsub.s32 %v339, %v341
    %v343 = vrot.slane %v315, %v342
    %v344 = vcombine.low %v322, %v329
    %v345 = vcombine.low %v336, %v343
    %v347 = vunpack.c.l.s4 1966171168
    %v348 = vunpack.c.0.s8 %v347
    %v349 = vlaneseq
    %v350 = vshrl.u32 %v349, 7
    %v351 = vsub.s32 %v348, %v350
    %v352 = vrot.slane %v344, %v351
    %v354 = vunpack.c.l.s4 1966171168
    %v355 = vunpack.c.0.s8 %v354
    %v356 = vlaneseq
    %v357 = vshrl.u32 %v356, 7
    %v358 = vsub.s32 %v355, %v357
    %v359 = vrot.slane %v345, %v358
    %v360 = vcombine.low %v352, %v359
    %v361 = vcombine.low %v298, %v299
    %v363 = vunpack.c.l.s4 1966171168
    %v364 = vunpack.c.0.s8 %v363
    %v365 = vlaneseq
    %v366 = vshrl.u32 %v365, 7
    %v367 = vsub.s32 %v364, %v366
    %v368 = vrot.slane %v361, %v367
    %v370 = vunpack.c.l.s4 1966171168
    %v371 = vunpack.c.0.s8 %v370
    %v372 = vlaneseq
    %v373 = vshrl.u32 %v372, 7
    %v374 = vsub.s32 %v371, %v373
    %v375 = vrot.slane %v368, %v374
    %vm378 = vcmask 261120
    %v379 = vsel %vm378, %v360, 0.0
    %380 = vadd.xlane.f32.xlu0 %v379
    %v381 = vpop.xlane.xlu0 %380
    %vm382 = vcmask 254976
    %v383 = vsel %vm382, %v375, 0.0
    %384 = vadd.xlane.f32.xlu0 %v383
    %v385 = vpop.xlane.xlu0 %384
    %v386 = vrcp.pop 32.0
    %v387 = vmul.f32 %v381, %v386
    %v388 = vmul.f32 %v385, %v386
    %v391 = vlaneseq
    %v392 = vshrl.u32 %v391, 7
    %v393 = vsub.s32 0, %v392
    %v394 = vrot.slane %v387, %v393
    %v395 = vlaneseq
    %v396 = vshrl.u32 %v395, 7
    %v397 = vsub.s32 1, %v396
    %v398 = vrot.slane %v387, %v397
    %v399 = vlaneseq
    %v400 = vshrl.u32 %v399, 7
    %v401 = vsub.s32 2, %v400
    %v402 = vrot.slane %v387, %v401
    %v403 = vlaneseq
    %v404 = vshrl.u32 %v403, 7
    %v405 = vsub.s32 3, %v404
    %v406 = vrot.slane %v387, %v405
    %v407 = vlaneseq
    %v408 = vshrl.u32 %v407, 7
    %v409 = vsub.s32 4, %v408
    %v410 = vrot.slane %v387, %v409
    %v411 = vlaneseq
    %v412 = vshrl.u32 %v411, 7
    %v413 = vsub.s32 5, %v412
    %v414 = vrot.slane %v387, %v413
    %v415 = vlaneseq
    %v416 = vshrl.u32 %v415, 7
    %v417 = vsub.s32 6, %v416
    %v418 = vrot.slane %v387, %v417
    %v419 = vlaneseq
    %v420 = vshrl.u32 %v419, 7
    %v421 = vsub.s32 7, %v420
    %v422 = vrot.slane %v387, %v421
    %v423 = vlaneseq
    %v424 = vshrl.u32 %v423, 7
    %v425 = vsub.s32 0, %v424
    %v426 = vrot.slane %v388, %v425
    %v427 = vlaneseq
    %v428 = vshrl.u32 %v427, 7
    %v429 = vsub.s32 1, %v428
    %v430 = vrot.slane %v388, %v429
    %v441 = vsub.f32 %v290, %v394
    %v442 = vsub.f32 %v291, %v398
    %v443 = vsub.f32 %v292, %v402
    %v444 = vsub.f32 %v293, %v406
    %v445 = vsub.f32 %v294, %v410
    %v446 = vsub.f32 %v295, %v414
    %v447 = vsub.f32 %v296, %v418
    %v448 = vsub.f32 %v297, %v422
    %v449 = vsub.f32 %v298, %v426
    %v450 = vsub.f32 %v299, %v430
    %v451 = vmul.f32 %v441, %v441
    %v452 = vmul.f32 %v442, %v442
    %v453 = vmul.f32 %v443, %v443
    %v454 = vmul.f32 %v444, %v444
    %v455 = vmul.f32 %v445, %v445
    %v456 = vmul.f32 %v446, %v446
    %v457 = vmul.f32 %v447, %v447
    %v458 = vmul.f32 %v448, %v448
    %v459 = vmul.f32 %v449, %v449
    %v460 = vmul.f32 %v450, %v450
    %v471 = vcombine.low %v451, %v452
    %v472 = vcombine.low %v453, %v454
    %v473 = vcombine.low %v455, %v456
    %v474 = vcombine.low %v457, %v458
    %v476 = vunpack.c.l.s4 1966171168
    %v477 = vunpack.c.0.s8 %v476
    %v478 = vlaneseq
    %v479 = vshrl.u32 %v478, 7
    %v480 = vsub.s32 %v477, %v479
    %v481 = vrot.slane %v471, %v480
    %v483 = vunpack.c.l.s4 1966171168
    %v484 = vunpack.c.0.s8 %v483
    %v485 = vlaneseq
    %v486 = vshrl.u32 %v485, 7
    %v487 = vsub.s32 %v484, %v486
    %v488 = vrot.slane %v472, %v487
    %v490 = vunpack.c.l.s4 1966171168
    %v491 = vunpack.c.0.s8 %v490
    %v492 = vlaneseq
    %v493 = vshrl.u32 %v492, 7
    %v494 = vsub.s32 %v491, %v493
    %v495 = vrot.slane %v473, %v494
    %v497 = vunpack.c.l.s4 1966171168
    %v498 = vunpack.c.0.s8 %v497
    %v499 = vlaneseq
    %v500 = vshrl.u32 %v499, 7
    %v501 = vsub.s32 %v498, %v500
    %v502 = vrot.slane %v474, %v501
    %v503 = vcombine.low %v481, %v488
    %v504 = vcombine.low %v495, %v502
    %v506 = vunpack.c.l.s4 1966171168
    %v507 = vunpack.c.0.s8 %v506
    %v508 = vlaneseq
    %v509 = vshrl.u32 %v508, 7
    %v510 = vsub.s32 %v507, %v509
    %v511 = vrot.slane %v503, %v510
    %v513 = vunpack.c.l.s4 1966171168
    %v514 = vunpack.c.0.s8 %v513
    %v515 = vlaneseq
    %v516 = vshrl.u32 %v515, 7
    %v517 = vsub.s32 %v514, %v516
    %v518 = vrot.slane %v504, %v517
    %v519 = vcombine.low %v511, %v518
    %v520 = vcombine.low %v459, %v460
    %v522 = vunpack.c.l.s4 1966171168
    %v523 = vunpack.c.0.s8 %v522
    %v524 = vlaneseq
    %v525 = vshrl.u32 %v524, 7
    %v526 = vsub.s32 %v523, %v525
    %v527 = vrot.slane %v520, %v526
    %v529 = vunpack.c.l.s4 1966171168
    %v530 = vunpack.c.0.s8 %v529
    %v531 = vlaneseq
    %v532 = vshrl.u32 %v531, 7
    %v533 = vsub.s32 %v530, %v532
    %v534 = vrot.slane %v527, %v533
    %v537 = vsel %vm378, %v519, 0.0
    %538 = vadd.xlane.f32.xlu0 %v537
    %v539 = vpop.xlane.xlu0 %538
    %v540 = vsel %vm382, %v534, 0.0
    %541 = vadd.xlane.f32.xlu0 %v540
    %v542 = vpop.xlane.xlu0 %541
    %v543 = vmul.f32 %v539, %v386
    %v544 = vmul.f32 %v542, %v386
    %v545 = vadd.f32 %v543, 1e-12
    %v546 = vadd.f32 %v544, 1e-12
    %v547 = vrsqrt.pop %v545
    %v548 = vrsqrt.pop %v546
    %v551 = vlaneseq
    %v552 = vshrl.u32 %v551, 7
    %v553 = vsub.s32 0, %v552
    %v554 = vrot.slane %v547, %v553
    %v555 = vlaneseq
    %v556 = vshrl.u32 %v555, 7
    %v557 = vsub.s32 1, %v556
    %v558 = vrot.slane %v547, %v557
    %v559 = vlaneseq
    %v560 = vshrl.u32 %v559, 7
    %v561 = vsub.s32 2, %v560
    %v562 = vrot.slane %v547, %v561
    %v563 = vlaneseq
    %v564 = vshrl.u32 %v563, 7
    %v565 = vsub.s32 3, %v564
    %v566 = vrot.slane %v547, %v565
    %v567 = vlaneseq
    %v568 = vshrl.u32 %v567, 7
    %v569 = vsub.s32 4, %v568
    %v570 = vrot.slane %v547, %v569
    %v571 = vlaneseq
    %v572 = vshrl.u32 %v571, 7
    %v573 = vsub.s32 5, %v572
    %v574 = vrot.slane %v547, %v573
    %v575 = vlaneseq
    %v576 = vshrl.u32 %v575, 7
    %v577 = vsub.s32 6, %v576
    %v578 = vrot.slane %v547, %v577
    %v579 = vlaneseq
    %v580 = vshrl.u32 %v579, 7
    %v581 = vsub.s32 7, %v580
    %v582 = vrot.slane %v547, %v581
    %v583 = vlaneseq
    %v584 = vshrl.u32 %v583, 7
    %v585 = vsub.s32 0, %v584
    %v586 = vrot.slane %v548, %v585
    %v587 = vlaneseq
    %v588 = vshrl.u32 %v587, 7
    %v589 = vsub.s32 1, %v588
    %v590 = vrot.slane %v548, %v589
    %v601 = vmul.f32 %v441, %v554
    %v602 = vmul.f32 %v442, %v558
    %v603 = vmul.f32 %v443, %v562
    %v604 = vmul.f32 %v444, %v566
    %v605 = vmul.f32 %v445, %v570
    %v606 = vmul.f32 %v446, %v574
    %v607 = vmul.f32 %v447, %v578
    %v608 = vmul.f32 %v448, %v582
    %v609 = vmul.f32 %v449, %v586
    %v610 = vmul.f32 %v450, %v590
    %v611 = vlaneseq
    %v612 = vshrl.u32 %v611, 7
    %v613 = vsub.s32 0, %v612
    %v614 = vrot.slane %v300, %v613
    %v616 = vcombine.high %v614, %v614
    %v618 = vunpack.c.l.s4 1966171168
    %v619 = vunpack.c.0.s8 %v618
    %v620 = vlaneseq
    %v621 = vshrl.u32 %v620, 7
    %v622 = vsub.s32 %v619, %v621
    %v623 = vrot.slane %v614, %v622
    %v625 = vunpack.c.l.s4 1966171168
    %v626 = vunpack.c.0.s8 %v625
    %v627 = vlaneseq
    %v628 = vshrl.u32 %v627, 7
    %v629 = vsub.s32 %v626, %v628
    %v630 = vrot.slane %v616, %v629
    %v631 = vcombine.high %v623, %v623
    %v632 = vcombine.high %v630, %v630
    %v634 = vunpack.c.l.s4 1966171168
    %v635 = vunpack.c.0.s8 %v634
    %v636 = vlaneseq
    %v637 = vshrl.u32 %v636, 7
    %v638 = vsub.s32 %v635, %v637
    %v639 = vrot.slane %v623, %v638
    %v641 = vunpack.c.l.s4 1966171168
    %v642 = vunpack.c.0.s8 %v641
    %v643 = vlaneseq
    %v644 = vshrl.u32 %v643, 7
    %v645 = vsub.s32 %v642, %v644
    %v646 = vrot.slane %v630, %v645
    %v648 = vunpack.c.l.s4 1966171168
    %v649 = vunpack.c.0.s8 %v648
    %v650 = vlaneseq
    %v651 = vshrl.u32 %v650, 7
    %v652 = vsub.s32 %v649, %v651
    %v653 = vrot.slane %v631, %v652
    %v655 = vunpack.c.l.s4 1966171168
    %v656 = vunpack.c.0.s8 %v655
    %v657 = vlaneseq
    %v658 = vshrl.u32 %v657, 7
    %v659 = vsub.s32 %v656, %v658
    %v660 = vrot.slane %v632, %v659
    %v661 = vcombine.high %v639, %v639
    %v662 = vcombine.high %v646, %v646
    %v663 = vcombine.high %v653, %v653
    %v664 = vcombine.high %v660, %v660
    %v673 = vmul.f32 %v601, %v639
    %v674 = vmul.f32 %v602, %v653
    %v675 = vmul.f32 %v603, %v661
    %v676 = vmul.f32 %v604, %v663
    %v677 = vmul.f32 %v605, %v646
    %v678 = vmul.f32 %v606, %v660
    %v679 = vmul.f32 %v607, %v662
    %v680 = vmul.f32 %v608, %v664
    %v681 = vmul.f32 %v609, %v639
    %v682 = vmul.f32 %v610, %v653
    %v683 = vlaneseq
    %v684 = vshrl.u32 %v683, 7
    %v685 = vsub.s32 1, %v684
    %v686 = vrot.slane %v300, %v685
    %v688 = vcombine.high %v686, %v686
    %v690 = vunpack.c.l.s4 1966171168
    %v691 = vunpack.c.0.s8 %v690
    %v692 = vlaneseq
    %v693 = vshrl.u32 %v692, 7
    %v694 = vsub.s32 %v691, %v693
    %v695 = vrot.slane %v686, %v694
    %v697 = vunpack.c.l.s4 1966171168
    %v698 = vunpack.c.0.s8 %v697
    %v699 = vlaneseq
    %v700 = vshrl.u32 %v699, 7
    %v701 = vsub.s32 %v698, %v700
    %v702 = vrot.slane %v688, %v701
    %v703 = vcombine.high %v695, %v695
    %v704 = vcombine.high %v702, %v702
    %v706 = vunpack.c.l.s4 1966171168
    %v707 = vunpack.c.0.s8 %v706
    %v708 = vlaneseq
    %v709 = vshrl.u32 %v708, 7
    %v710 = vsub.s32 %v707, %v709
    %v711 = vrot.slane %v695, %v710
    %v713 = vunpack.c.l.s4 1966171168
    %v714 = vunpack.c.0.s8 %v713
    %v715 = vlaneseq
    %v716 = vshrl.u32 %v715, 7
    %v717 = vsub.s32 %v714, %v716
    %v718 = vrot.slane %v702, %v717
    %v720 = vunpack.c.l.s4 1966171168
    %v721 = vunpack.c.0.s8 %v720
    %v722 = vlaneseq
    %v723 = vshrl.u32 %v722, 7
    %v724 = vsub.s32 %v721, %v723
    %v725 = vrot.slane %v703, %v724
    %v727 = vunpack.c.l.s4 1966171168
    %v728 = vunpack.c.0.s8 %v727
    %v729 = vlaneseq
    %v730 = vshrl.u32 %v729, 7
    %v731 = vsub.s32 %v728, %v730
    %v732 = vrot.slane %v704, %v731
    %v733 = vcombine.high %v711, %v711
    %v734 = vcombine.high %v718, %v718
    %v735 = vcombine.high %v725, %v725
    %v736 = vcombine.high %v732, %v732
    %v745 = vadd.f32 %v673, %v711
    %v746 = vadd.f32 %v674, %v725
    %v747 = vadd.f32 %v675, %v733
    %v748 = vadd.f32 %v676, %v735
    %v749 = vadd.f32 %v677, %v718
    %v750 = vadd.f32 %v678, %v732
    %v751 = vadd.f32 %v679, %v734
    %v752 = vadd.f32 %v680, %v736
    %v753 = vadd.f32 %v681, %v711
    %v754 = vadd.f32 %v682, %v725
    %v755 = vld [vmem:[%s4] sm:$0xff]
    %v756 = vld [vmem:[%s4 + $0x8] sm:$0xff]
    %v757 = vld [vmem:[%s4 + $0x10] sm:$0xff]
    %v758 = vld [vmem:[%s4 + $0x18] sm:$0xff]
    %v759 = vld [vmem:[%s5] sm:$0x1]
    %v761 = vlaneseq
    %v762 = vshrl.u32 %v761, 7
    %v763 = vsub.s32 0, %v762
    %v764 = vrot.slane %v759, %v763
    %v776 = vcombine.low %v745, %v746
    %v777 = vcombine.low %v747, %v748
    %v778 = vcombine.low %v749, %v750
    %v779 = vcombine.low %v751, %v752
    %v781 = vunpack.c.l.s4 1966171168
    %v782 = vunpack.c.0.s8 %v781
    %v783 = vlaneseq
    %v784 = vshrl.u32 %v783, 7
    %v785 = vsub.s32 %v782, %v784
    %v786 = vrot.slane %v776, %v785
    %v788 = vunpack.c.l.s4 1966171168
    %v789 = vunpack.c.0.s8 %v788
    %v790 = vlaneseq
    %v791 = vshrl.u32 %v790, 7
    %v792 = vsub.s32 %v789, %v791
    %v793 = vrot.slane %v777, %v792
    %v795 = vunpack.c.l.s4 1966171168
    %v796 = vunpack.c.0.s8 %v795
    %v797 = vlaneseq
    %v798 = vshrl.u32 %v797, 7
    %v799 = vsub.s32 %v796, %v798
    %v800 = vrot.slane %v778, %v799
    %v802 = vunpack.c.l.s4 1966171168
    %v803 = vunpack.c.0.s8 %v802
    %v804 = vlaneseq
    %v805 = vshrl.u32 %v804, 7
    %v806 = vsub.s32 %v803, %v805
    %v807 = vrot.slane %v779, %v806
    %v808 = vcombine.low %v786, %v793
    %v809 = vcombine.low %v800, %v807
    %v811 = vunpack.c.l.s4 1966171168
    %v812 = vunpack.c.0.s8 %v811
    %v813 = vlaneseq
    %v814 = vshrl.u32 %v813, 7
    %v815 = vsub.s32 %v812, %v814
    %v816 = vrot.slane %v808, %v815
    %v818 = vunpack.c.l.s4 1966171168
    %v819 = vunpack.c.0.s8 %v818
    %v820 = vlaneseq
    %v821 = vshrl.u32 %v820, 7
    %v822 = vsub.s32 %v819, %v821
    %v823 = vrot.slane %v809, %v822
    %v824 = vcombine.low %v816, %v823
    %v825 = vcombine.low %v753, %v754
    %v827 = vunpack.c.l.s4 1966171168
    %v828 = vunpack.c.0.s8 %v827
    %v829 = vlaneseq
    %v830 = vshrl.u32 %v829, 7
    %v831 = vsub.s32 %v828, %v830
    %v832 = vrot.slane %v825, %v831
    %v834 = vunpack.c.l.s4 1966171168
    %v835 = vunpack.c.0.s8 %v834
    %v836 = vlaneseq
    %v837 = vshrl.u32 %v836, 7
    %v838 = vsub.s32 %v835, %v837
    %v839 = vrot.slane %v832, %v838
    %v840 = vsel %vm378, %v824, 0
    %v842 = vsel %vm378, %v839, 0
    %844 = vmatprep.subr.mxu0 0.0
    %845 = vmatpush1.msra.mxu0 %v755
    %846 = vmatprep.subr.mxu0 0.0
    %847 = vmatpush1.msra.mxu0 %v756
    %848 = vmatprep.subr.mxu0 0.0
    %849 = vmatpush1.msra.mxu0 %v757
    %850 = vmatprep.subr.mxu0 0.0
    %851 = vmatpush1.msra.mxu0 %v758
    %852 = vmatprep.subr.mxu0 0.0
    %853 = vmatpush1.msra.mxu0 0.0
    %854 = vmatprep.subr.mxu0 0.0
    %855 = vmatpush1.msra.mxu0 0.0
    %856 = vmatprep.subr.mxu0 0.0
    %857 = vmatpush1.msra.mxu0 0.0
    %858 = vmatprep.subr.mxu0 0.0
    %859 = vmatpush1.msra.mxu0 0.0
    %860 = vmatprep.subr.mxu0 0.0
    %861 = vmatpush1.msra.mxu0 0.0
    %862 = vmatprep.subr.mxu0 0.0
    %863 = vmatpush1.msra.mxu0 0.0
    %864 = vmatprep.subr.mxu0 0.0
    %865 = vmatpush1.msra.mxu0 0.0
    %866 = vmatprep.subr.mxu0 0.0
    %867 = vmatpush1.msra.mxu0 0.0
    %868 = vmatprep.subr.mxu0 0.0
    %869 = vmatpush1.msra.mxu0 0.0
    %870 = vmatprep.subr.mxu0 0.0
    %871 = vmatpush1.msra.mxu0 0.0
    %872 = vmatprep.subr.mxu0 0.0
    %873 = vmatpush1.msra.mxu0 0.0
    %874 = vmatprep.subr.mxu0 0.0
    %875 = vmatpush1.msra.mxu0 0.0
    %876 = vmatprep.subr.mxu0 0.0
    %877 = vmatpush1.msra.mxu0 0.0
    %878 = vmatprep.subr.mxu0 0.0
    %879 = vmatpush1.msra.mxu0 0.0
    %880 = vmatprep.subr.mxu0 0.0
    %881 = vmatpush1.msra.mxu0 0.0
    %882 = vmatprep.subr.mxu0 0.0
    %883 = vmatpush1.msra.mxu0 0.0
    %884 = vmatprep.subr.mxu0 0.0
    %885 = vmatpush1.msra.mxu0 0.0
    %886 = vmatprep.subr.mxu0 0.0
    %887 = vmatpush1.msra.mxu0 0.0
    %888 = vmatprep.subr.mxu0 0.0
    %889 = vmatpush1.msra.mxu0 0.0
    %890 = vmatprep.subr.mxu0 0.0
    %891 = vmatpush1.msra.mxu0 0.0
    %892 = vmatprep.subr.mxu0 0.0
    %893 = vmatpush1.msra.mxu0 0.0
    %894 = vmatprep.subr.mxu0 0.0
    %895 = vmatpush1.msra.mxu0 0.0
    %896 = vmatprep.subr.mxu0 0.0
    %897 = vmatpush1.msra.mxu0 0.0
    %898 = vmatprep.subr.mxu0 0.0
    %899 = vmatpush1.msra.mxu0 0.0
    %900 = vmatprep.subr.mxu0 0.0
    %901 = vmatpush1.msra.mxu0 0.0
    %902 = vmatprep.subr.mxu0 0.0
    %903 = vmatpush1.msra.mxu0 0.0
    %904 = vmatprep.subr.mxu0 0.0
    %905 = vmatpush1.msra.mxu0 0.0
    %906 = vmatprep.subr.mxu0 0.0
    %907 = vmatpush1.msra.mxu0 0.0
    %908 = vmatprep.mubr.f32.mxu0 0.0
    %909 = vmatmul.mubr.f32.gmra.mrb[0].mxu0 %v840
    %v910 = vpop.f32.mrb[0].mxu0
    %v911 = vadd.f32 %v764, %v910
    %v912 = vpop.f32.mrb[0].mxu0
    %913 = vmatprep.mubr.f32.mxu0 0.0
    %914 = vmatmul.mubr.f32.gmra.mrb[0].mxu0 %v842
    %v915 = vpop.f32.mrb[0].mxu0
    %v916 = vadd.f32 %v764, %v915
    %v917 = vpop.f32.mrb[0].mxu0
    %918 = vdwg.mxu0
    %v921 = vcombine.high %v911, %v911
    %v923 = vunpack.c.l.s4 1966171168
    %v924 = vunpack.c.0.s8 %v923
    %v925 = vlaneseq
    %v926 = vshrl.u32 %v925, 7
    %v927 = vsub.s32 %v924, %v926
    %v928 = vrot.slane %v911, %v927
    %v930 = vunpack.c.l.s4 1966171168
    %v931 = vunpack.c.0.s8 %v930
    %v932 = vlaneseq
    %v933 = vshrl.u32 %v932, 7
    %v934 = vsub.s32 %v931, %v933
    %v935 = vrot.slane %v921, %v934
    %v936 = vcombine.high %v928, %v928
    %v937 = vcombine.high %v935, %v935
    %v939 = vunpack.c.l.s4 1966171168
    %v940 = vunpack.c.0.s8 %v939
    %v941 = vlaneseq
    %v942 = vshrl.u32 %v941, 7
    %v943 = vsub.s32 %v940, %v942
    %v944 = vrot.slane %v928, %v943
    %v946 = vunpack.c.l.s4 1966171168
    %v947 = vunpack.c.0.s8 %v946
    %v948 = vlaneseq
    %v949 = vshrl.u32 %v948, 7
    %v950 = vsub.s32 %v947, %v949
    %v951 = vrot.slane %v935, %v950
    %v953 = vunpack.c.l.s4 1966171168
    %v954 = vunpack.c.0.s8 %v953
    %v955 = vlaneseq
    %v956 = vshrl.u32 %v955, 7
    %v957 = vsub.s32 %v954, %v956
    %v958 = vrot.slane %v936, %v957
    %v960 = vunpack.c.l.s4 1966171168
    %v961 = vunpack.c.0.s8 %v960
    %v962 = vlaneseq
    %v963 = vshrl.u32 %v962, 7
    %v964 = vsub.s32 %v961, %v963
    %v965 = vrot.slane %v937, %v964
    %v966 = vcombine.high %v944, %v944
    %v967 = vcombine.high %v951, %v951
    %v968 = vcombine.high %v958, %v958
    %v969 = vcombine.high %v965, %v965
    %v971 = vunpack.c.l.s4 1966171168
    %v972 = vunpack.c.0.s8 %v971
    %v973 = vlaneseq
    %v974 = vshrl.u32 %v973, 7
    %v975 = vsub.s32 %v972, %v974
    %v976 = vrot.slane %v916, %v975
    %v977 = vcombine.high %v976, %v976
    %v979 = vunpack.c.l.s4 1966171168
    %v980 = vunpack.c.0.s8 %v979
    %v981 = vlaneseq
    %v982 = vshrl.u32 %v981, 7
    %v983 = vsub.s32 %v980, %v982
    %v984 = vrot.slane %v976, %v983
    %v986 = vunpack.c.l.s4 1966171168
    %v987 = vunpack.c.0.s8 %v986
    %v988 = vlaneseq
    %v989 = vshrl.u32 %v988, 7
    %v990 = vsub.s32 %v987, %v989
    %v991 = vrot.slane %v977, %v990
    %v992 = vld [vmem:[%s6] sm:$0xff]
    %v993 = vld [vmem:[%s6 + $0x8] sm:$0xff]
    %v994 = vld [vmem:[%s6 + $0x10] sm:$0xff]
    %v995 = vld [vmem:[%s6 + $0x18] sm:$0xff]
    %v996 = vcombine.low %v944, %v958
    %v997 = vcombine.low %v966, %v968
    %v999 = vunpack.c.l.s4 1966171168
    %v1000 = vunpack.c.0.s8 %v999
    %v1001 = vlaneseq
    %v1002 = vshrl.u32 %v1001, 7
    %v1003 = vsub.s32 %v1000, %v1002
    %v1004 = vrot.slane %v996, %v1003
    %v1006 = vunpack.c.l.s4 1966171168
    %v1007 = vunpack.c.0.s8 %v1006
    %v1008 = vlaneseq
    %v1009 = vshrl.u32 %v1008, 7
    %v1010 = vsub.s32 %v1007, %v1009
    %v1011 = vrot.slane %v997, %v1010
    %v1013 = vunpack.c.l.s4 1966171168
    %v1014 = vunpack.c.0.s8 %v1013
    %v1015 = vlaneseq
    %v1016 = vshrl.u32 %v1015, 7
    %v1017 = vsub.s32 %v1014, %v1016
    %v1018 = vrot.slane %v951, %v1017
    %v1019 = vcombine.low %v1004, %v1011
    %v1021 = vunpack.c.l.s4 1966171168
    %v1022 = vunpack.c.0.s8 %v1021
    %v1023 = vlaneseq
    %v1024 = vshrl.u32 %v1023, 7
    %v1025 = vsub.s32 %v1022, %v1024
    %v1026 = vrot.slane %v1019, %v1025
    %v1028 = vunpack.c.l.s4 1966171168
    %v1029 = vunpack.c.0.s8 %v1028
    %v1030 = vlaneseq
    %v1031 = vshrl.u32 %v1030, 7
    %v1032 = vsub.s32 %v1029, %v1031
    %v1033 = vrot.slane %v1018, %v1032
    %v1034 = vcombine.low %v1026, %v1033
    %1035 = vrot.lane.b32.xlu0 %v1034, 96
    %v1036 = vpop.permute.xlu0 %1035
    %vm1037 = vcmask 130048
    %v1038 = vsel %vm1037, %v1034, 0
    %v1040 = vsel %vm1037, %v1036, 0
    %1042 = vmatprep.subr.mxu0 0.0
    %1043 = vmatpush1.xpose.msra.mxu0 %v1040
    %1044 = vmatprep.subr.mxu0 0.0
    %1045 = vmatpush1.xpose.msra.mxu0 0.0
    %1046 = vmatprep.subr.mxu0 0.0
    %1047 = vmatpush1.xpose.msra.mxu0 0.0
    %1048 = vmatprep.subr.mxu0 0.0
    %1049 = vmatpush1.xpose.msra.mxu0 0.0
    %1050 = vmatprep.subr.mxu0 0.0
    %1051 = vmatpush1.xpose.msra.mxu0 0.0
    %1052 = vmatprep.subr.mxu0 0.0
    %1053 = vmatpush1.xpose.msra.mxu0 0.0
    %1054 = vmatprep.subr.mxu0 0.0
    %1055 = vmatpush1.xpose.msra.mxu0 0.0
    %1056 = vmatprep.subr.mxu0 0.0
    %1057 = vmatpush1.xpose.msra.mxu0 0.0
    %1058 = vmatprep.subr.mxu0 0.0
    %1059 = vmatpush1.xpose.msra.mxu0 0.0
    %1060 = vmatprep.subr.mxu0 0.0
    %1061 = vmatpush1.xpose.msra.mxu0 0.0
    %1062 = vmatprep.subr.mxu0 0.0
    %1063 = vmatpush1.xpose.msra.mxu0 0.0
    %1064 = vmatprep.subr.mxu0 0.0
    %1065 = vmatpush1.xpose.msra.mxu0 0.0
    %1066 = vmatprep.subr.mxu0 0.0
    %1067 = vmatpush1.xpose.msra.mxu0 0.0
    %1068 = vmatprep.subr.mxu0 0.0
    %1069 = vmatpush1.xpose.msra.mxu0 0.0
    %1070 = vmatprep.subr.mxu0 0.0
    %1071 = vmatpush1.xpose.msra.mxu0 0.0
    %1072 = vmatprep.subr.mxu0 0.0
    %1073 = vmatpush1.xpose.msra.mxu0 0.0
    %1074 = vmatprep.subr.mxu0 0.0
    %1075 = vmatpush1.xpose.msra.mxu0 0.0
    %1076 = vmatprep.subr.mxu0 0.0
    %1077 = vmatpush1.xpose.msra.mxu0 0.0
    %1078 = vmatprep.subr.mxu0 0.0
    %1079 = vmatpush1.xpose.msra.mxu0 0.0
    %1080 = vmatprep.subr.mxu0 0.0
    %1081 = vmatpush1.xpose.msra.mxu0 0.0
    %1082 = vmatprep.subr.mxu0 0.0
    %1083 = vmatpush1.xpose.msra.mxu0 0.0
    %1084 = vmatprep.subr.mxu0 0.0
    %1085 = vmatpush1.xpose.msra.mxu0 0.0
    %1086 = vmatprep.subr.mxu0 0.0
    %1087 = vmatpush1.xpose.msra.mxu0 0.0
    %1088 = vmatprep.subr.mxu0 0.0
    %1089 = vmatpush1.xpose.msra.mxu0 0.0
    %1090 = vmatprep.subr.mxu0 0.0
    %1091 = vmatpush1.xpose.msra.mxu0 0.0
    %1092 = vmatprep.subr.mxu0 0.0
    %1093 = vmatpush1.xpose.msra.mxu0 0.0
    %1094 = vmatprep.subr.mxu0 0.0
    %1095 = vmatpush1.xpose.msra.mxu0 0.0
    %1096 = vmatprep.subr.mxu0 0.0
    %1097 = vmatpush1.xpose.msra.mxu0 0.0
    %1098 = vmatprep.subr.mxu0 0.0
    %1099 = vmatpush1.xpose.msra.mxu0 0.0
    %1100 = vmatprep.subr.mxu0 0.0
    %1101 = vmatpush1.xpose.msra.mxu0 0.0
    %1102 = vmatprep.subr.mxu0 0.0
    %1103 = vmatpush1.xpose.msra.mxu0 0.0
    %1104 = vmatprep.subr.mxu0 0.0
    %1105 = vmatpush1.xpose.msra.mxu0 0.0
    %1106 = vmatprep.mubr.f32.mxu0 0.0
    %1107 = vmatmul.mubr.f32.gmra.mrb[0].mxu0 %v1038
    %v1108 = vpop.f32.mrb[0].mxu0
    %v1109 = vadd.f32 0.0, %v1108
    %v1110 = vpop.f32.mrb[0].mxu0
    %1111 = vdwg.mxu0
    %v1112 = vcombine.low %v965, %v967
    %v1113 = vcombine.low %v969, %v984
    %v1115 = vunpack.c.l.s4 1966171168
    %v1116 = vunpack.c.0.s8 %v1115
    %v1117 = vlaneseq
    %v1118 = vshrl.u32 %v1117, 7
    %v1119 = vsub.s32 %v1116, %v1118
    %v1120 = vrot.slane %v1112, %v1119
    %v1122 = vunpack.c.l.s4 1966171168
    %v1123 = vunpack.c.0.s8 %v1122
    %v1124 = vlaneseq
    %v1125 = vshrl.u32 %v1124, 7
    %v1126 = vsub.s32 %v1123, %v1125
    %v1127 = vrot.slane %v1113, %v1126
    %v1129 = vunpack.c.l.s4 1966171168
    %v1130 = vunpack.c.0.s8 %v1129
    %v1131 = vlaneseq
    %v1132 = vshrl.u32 %v1131, 7
    %v1133 = vsub.s32 %v1130, %v1132
    %v1134 = vrot.slane %v991, %v1133
    %v1135 = vcombine.low %v1120, %v1127
    %v1137 = vunpack.c.l.s4 1966171168
    %v1138 = vunpack.c.0.s8 %v1137
    %v1139 = vlaneseq
    %v1140 = vshrl.u32 %v1139, 7
    %v1141 = vsub.s32 %v1138, %v1140
    %v1142 = vrot.slane %v1135, %v1141
    %v1144 = vunpack.c.l.s4 1966171168
    %v1145 = vunpack.c.0.s8 %v1144
    %v1146 = vlaneseq
    %v1147 = vshrl.u32 %v1146, 7
    %v1148 = vsub.s32 %v1145, %v1147
    %v1149 = vrot.slane %v1134, %v1148
    %v1150 = vcombine.low %v1142, %v1149
    %1151 = vrot.lane.b32.xlu0 %v1150, 96
    %v1152 = vpop.permute.xlu0 %1151
    %v1153 = vsel %vm1037, %v1150, 0
    %v1155 = vsel %vm1037, %v1152, 0
    %1157 = vmatprep.subr.mxu0 0.0
    %1158 = vmatpush1.xpose.msra.mxu0 %v1155
    %1159 = vmatprep.subr.mxu0 0.0
    %1160 = vmatpush1.xpose.msra.mxu0 0.0
    %1161 = vmatprep.subr.mxu0 0.0
    %1162 = vmatpush1.xpose.msra.mxu0 0.0
    %1163 = vmatprep.subr.mxu0 0.0
    %1164 = vmatpush1.xpose.msra.mxu0 0.0
    %1165 = vmatprep.subr.mxu0 0.0
    %1166 = vmatpush1.xpose.msra.mxu0 0.0
    %1167 = vmatprep.subr.mxu0 0.0
    %1168 = vmatpush1.xpose.msra.mxu0 0.0
    %1169 = vmatprep.subr.mxu0 0.0
    %1170 = vmatpush1.xpose.msra.mxu0 0.0
    %1171 = vmatprep.subr.mxu0 0.0
    %1172 = vmatpush1.xpose.msra.mxu0 0.0
    %1173 = vmatprep.subr.mxu0 0.0
    %1174 = vmatpush1.xpose.msra.mxu0 0.0
    %1175 = vmatprep.subr.mxu0 0.0
    %1176 = vmatpush1.xpose.msra.mxu0 0.0
    %1177 = vmatprep.subr.mxu0 0.0
    %1178 = vmatpush1.xpose.msra.mxu0 0.0
    %1179 = vmatprep.subr.mxu0 0.0
    %1180 = vmatpush1.xpose.msra.mxu0 0.0
    %1181 = vmatprep.subr.mxu0 0.0
    %1182 = vmatpush1.xpose.msra.mxu0 0.0
    %1183 = vmatprep.subr.mxu0 0.0
    %1184 = vmatpush1.xpose.msra.mxu0 0.0
    %1185 = vmatprep.subr.mxu0 0.0
    %1186 = vmatpush1.xpose.msra.mxu0 0.0
    %1187 = vmatprep.subr.mxu0 0.0
    %1188 = vmatpush1.xpose.msra.mxu0 0.0
    %1189 = vmatprep.subr.mxu0 0.0
    %1190 = vmatpush1.xpose.msra.mxu0 0.0
    %1191 = vmatprep.subr.mxu0 0.0
    %1192 = vmatpush1.xpose.msra.mxu0 0.0
    %1193 = vmatprep.subr.mxu0 0.0
    %1194 = vmatpush1.xpose.msra.mxu0 0.0
    %1195 = vmatprep.subr.mxu0 0.0
    %1196 = vmatpush1.xpose.msra.mxu0 0.0
    %1197 = vmatprep.subr.mxu0 0.0
    %1198 = vmatpush1.xpose.msra.mxu0 0.0
    %1199 = vmatprep.subr.mxu0 0.0
    %1200 = vmatpush1.xpose.msra.mxu0 0.0
    %1201 = vmatprep.subr.mxu0 0.0
    %1202 = vmatpush1.xpose.msra.mxu0 0.0
    %1203 = vmatprep.subr.mxu0 0.0
    %1204 = vmatpush1.xpose.msra.mxu0 0.0
    %1205 = vmatprep.subr.mxu0 0.0
    %1206 = vmatpush1.xpose.msra.mxu0 0.0
    %1207 = vmatprep.subr.mxu0 0.0
    %1208 = vmatpush1.xpose.msra.mxu0 0.0
    %1209 = vmatprep.subr.mxu0 0.0
    %1210 = vmatpush1.xpose.msra.mxu0 0.0
    %1211 = vmatprep.subr.mxu0 0.0
    %1212 = vmatpush1.xpose.msra.mxu0 0.0
    %1213 = vmatprep.subr.mxu0 0.0
    %1214 = vmatpush1.xpose.msra.mxu0 0.0
    %1215 = vmatprep.subr.mxu0 0.0
    %1216 = vmatpush1.xpose.msra.mxu0 0.0
    %1217 = vmatprep.subr.mxu0 0.0
    %1218 = vmatpush1.xpose.msra.mxu0 0.0
    %1219 = vmatprep.subr.mxu0 0.0
    %1220 = vmatpush1.xpose.msra.mxu0 0.0
    %1221 = vmatprep.mubr.f32.mxu0 0.0
    %1222 = vmatmul.mubr.f32.gmra.mrb[0].mxu0 %v1153
    %v1223 = vpop.f32.mrb[0].mxu0
    %v1224 = vadd.f32 0.0, %v1223
    %v1225 = vpop.f32.mrb[0].mxu0
    %1226 = vdwg.mxu0
    %v1227 = vmul.f32 %v1109, 0.25
    %v1228 = vmul.f32 %v1224, 0.25
    %vm1229 = vcmask 36864
    %v1230 = vsel %vm1229, %v1227, -inf
    %1231 = vmax.xlane.f32.xlu0 %v1230
    %v1232 = vpop.xlane.xlu0 %1231
    %v1233 = vsel %vm1229, %v1228, -inf
    %1234 = vmax.xlane.f32.xlu0 %v1233
    %v1235 = vpop.xlane.xlu0 %1234
    %v1236 = vsub.f32 %v1227, %v1232
    %v1237 = vsub.f32 %v1228, %v1235
    %v1238 = vmul.f32 %v1236, 1.442695
    %v1239 = vpow.pop %v1238
    %v1240 = vmul.f32 %v1237, 1.442695
    %v1241 = vpow.pop %v1240
    %v1242 = vsel %vm1229, %v1239, 0.0
    %1243 = vadd.xlane.f32.xlu0 %v1242
    %v1244 = vpop.xlane.xlu0 %1243
    %v1245 = vsel %vm1229, %v1241, 0.0
    %1246 = vadd.xlane.f32.xlu0 %v1245
    %v1247 = vpop.xlane.xlu0 %1246
    %v1248 = vrcp.pop %v1244
    %v1249 = vrcp.pop %v1247
    %v1250 = vmul.f32 %v1239, %v1248
    %v1251 = vmul.f32 %v1241, %v1249
    %1252 = vrot.lane.b32.xlu0 %v1034, 64
    %v1253 = vpop.permute.xlu0 %1252
    %vm1254 = vcmask 39936
    %v1256 = vsel %vm1254, %v1250, 0
    %vm1258 = vcmask 1044480
    %v1259 = vsel %vm1258, %v1253, 0
    %1261 = vmatprep.subr.mxu0 0.0
    %1262 = vmatpush1.msra.mxu0 %v1259
    %1263 = vmatprep.subr.mxu0 0.0
    %1264 = vmatpush1.msra.mxu0 0.0
    %1265 = vmatprep.subr.mxu0 0.0
    %1266 = vmatpush1.msra.mxu0 0.0
    %1267 = vmatprep.subr.mxu0 0.0
    %1268 = vmatpush1.msra.mxu0 0.0
    %1269 = vmatprep.subr.mxu0 0.0
    %1270 = vmatpush1.msra.mxu0 0.0
    %1271 = vmatprep.subr.mxu0 0.0
    %1272 = vmatpush1.msra.mxu0 0.0
    %1273 = vmatprep.subr.mxu0 0.0
    %1274 = vmatpush1.msra.mxu0 0.0
    %1275 = vmatprep.subr.mxu0 0.0
    %1276 = vmatpush1.msra.mxu0 0.0
    %1277 = vmatprep.subr.mxu0 0.0
    %1278 = vmatpush1.msra.mxu0 0.0
    %1279 = vmatprep.subr.mxu0 0.0
    %1280 = vmatpush1.msra.mxu0 0.0
    %1281 = vmatprep.subr.mxu0 0.0
    %1282 = vmatpush1.msra.mxu0 0.0
    %1283 = vmatprep.subr.mxu0 0.0
    %1284 = vmatpush1.msra.mxu0 0.0
    %1285 = vmatprep.subr.mxu0 0.0
    %1286 = vmatpush1.msra.mxu0 0.0
    %1287 = vmatprep.subr.mxu0 0.0
    %1288 = vmatpush1.msra.mxu0 0.0
    %1289 = vmatprep.subr.mxu0 0.0
    %1290 = vmatpush1.msra.mxu0 0.0
    %1291 = vmatprep.subr.mxu0 0.0
    %1292 = vmatpush1.msra.mxu0 0.0
    %1293 = vmatprep.subr.mxu0 0.0
    %1294 = vmatpush1.msra.mxu0 0.0
    %1295 = vmatprep.subr.mxu0 0.0
    %1296 = vmatpush1.msra.mxu0 0.0
    %1297 = vmatprep.subr.mxu0 0.0
    %1298 = vmatpush1.msra.mxu0 0.0
    %1299 = vmatprep.subr.mxu0 0.0
    %1300 = vmatpush1.msra.mxu0 0.0
    %1301 = vmatprep.subr.mxu0 0.0
    %1302 = vmatpush1.msra.mxu0 0.0
    %1303 = vmatprep.subr.mxu0 0.0
    %1304 = vmatpush1.msra.mxu0 0.0
    %1305 = vmatprep.subr.mxu0 0.0
    %1306 = vmatpush1.msra.mxu0 0.0
    %1307 = vmatprep.subr.mxu0 0.0
    %1308 = vmatpush1.msra.mxu0 0.0
    %1309 = vmatprep.subr.mxu0 0.0
    %1310 = vmatpush1.msra.mxu0 0.0
    %1311 = vmatprep.subr.mxu0 0.0
    %1312 = vmatpush1.msra.mxu0 0.0
    %1313 = vmatprep.subr.mxu0 0.0
    %1314 = vmatpush1.msra.mxu0 0.0
    %1315 = vmatprep.subr.mxu0 0.0
    %1316 = vmatpush1.msra.mxu0 0.0
    %1317 = vmatprep.subr.mxu0 0.0
    %1318 = vmatpush1.msra.mxu0 0.0
    %1319 = vmatprep.subr.mxu0 0.0
    %1320 = vmatpush1.msra.mxu0 0.0
    %1321 = vmatprep.subr.mxu0 0.0
    %1322 = vmatpush1.msra.mxu0 0.0
    %1323 = vmatprep.subr.mxu0 0.0
    %1324 = vmatpush1.msra.mxu0 0.0
    %1325 = vmatprep.mubr.f32.mxu0 0.0
    %1326 = vmatmul.mubr.f32.gmra.mrb[0].mxu0 %v1256
    %v1327 = vpop.f32.mrb[0].mxu0
    %v1328 = vadd.f32 0.0, %v1327
    %v1329 = vpop.f32.mrb[0].mxu0
    %1330 = vdwg.mxu0
    %1331 = vrot.lane.b32.xlu0 %v1150, 64
    %v1332 = vpop.permute.xlu0 %1331
    %v1334 = vsel %vm1254, %v1251, 0
    %v1336 = vsel %vm1258, %v1332, 0
    %1338 = vmatprep.subr.mxu0 0.0
    %1339 = vmatpush1.msra.mxu0 %v1336
    %1340 = vmatprep.subr.mxu0 0.0
    %1341 = vmatpush1.msra.mxu0 0.0
    %1342 = vmatprep.subr.mxu0 0.0
    %1343 = vmatpush1.msra.mxu0 0.0
    %1344 = vmatprep.subr.mxu0 0.0
    %1345 = vmatpush1.msra.mxu0 0.0
    %1346 = vmatprep.subr.mxu0 0.0
    %1347 = vmatpush1.msra.mxu0 0.0
    %1348 = vmatprep.subr.mxu0 0.0
    %1349 = vmatpush1.msra.mxu0 0.0
    %1350 = vmatprep.subr.mxu0 0.0
    %1351 = vmatpush1.msra.mxu0 0.0
    %1352 = vmatprep.subr.mxu0 0.0
    %1353 = vmatpush1.msra.mxu0 0.0
    %1354 = vmatprep.subr.mxu0 0.0
    %1355 = vmatpush1.msra.mxu0 0.0
    %1356 = vmatprep.subr.mxu0 0.0
    %1357 = vmatpush1.msra.mxu0 0.0
    %1358 = vmatprep.subr.mxu0 0.0
    %1359 = vmatpush1.msra.mxu0 0.0
    %1360 = vmatprep.subr.mxu0 0.0
    %1361 = vmatpush1.msra.mxu0 0.0
    %1362 = vmatprep.subr.mxu0 0.0
    %1363 = vmatpush1.msra.mxu0 0.0
    %1364 = vmatprep.subr.mxu0 0.0
    %1365 = vmatpush1.msra.mxu0 0.0
    %1366 = vmatprep.subr.mxu0 0.0
    %1367 = vmatpush1.msra.mxu0 0.0
    %1368 = vmatprep.subr.mxu0 0.0
    %1369 = vmatpush1.msra.mxu0 0.0
    %1370 = vmatprep.subr.mxu0 0.0
    %1371 = vmatpush1.msra.mxu0 0.0
    %1372 = vmatprep.subr.mxu0 0.0
    %1373 = vmatpush1.msra.mxu0 0.0
    %1374 = vmatprep.subr.mxu0 0.0
    %1375 = vmatpush1.msra.mxu0 0.0
    %1376 = vmatprep.subr.mxu0 0.0
    %1377 = vmatpush1.msra.mxu0 0.0
    %1378 = vmatprep.subr.mxu0 0.0
    %1379 = vmatpush1.msra.mxu0 0.0
    %1380 = vmatprep.subr.mxu0 0.0
    %1381 = vmatpush1.msra.mxu0 0.0
    %1382 = vmatprep.subr.mxu0 0.0
    %1383 = vmatpush1.msra.mxu0 0.0
    %1384 = vmatprep.subr.mxu0 0.0
    %1385 = vmatpush1.msra.mxu0 0.0
    %1386 = vmatprep.subr.mxu0 0.0
    %1387 = vmatpush1.msra.mxu0 0.0
    %1388 = vmatprep.subr.mxu0 0.0
    %1389 = vmatpush1.msra.mxu0 0.0
    %1390 = vmatprep.subr.mxu0 0.0
    %1391 = vmatpush1.msra.mxu0 0.0
    %1392 = vmatprep.subr.mxu0 0.0
    %1393 = vmatpush1.msra.mxu0 0.0
    %1394 = vmatprep.subr.mxu0 0.0
    %1395 = vmatpush1.msra.mxu0 0.0
    %1396 = vmatprep.subr.mxu0 0.0
    %1397 = vmatpush1.msra.mxu0 0.0
    %1398 = vmatprep.subr.mxu0 0.0
    %1399 = vmatpush1.msra.mxu0 0.0
    %1400 = vmatprep.subr.mxu0 0.0
    %1401 = vmatpush1.msra.mxu0 0.0
    %1402 = vmatprep.mubr.f32.mxu0 0.0
    %1403 = vmatmul.mubr.f32.gmra.mrb[0].mxu0 %v1334
    %v1404 = vpop.f32.mrb[0].mxu0
    %v1405 = vadd.f32 0.0, %v1404
    %v1406 = vpop.f32.mrb[0].mxu0
    %1407 = vdwg.mxu0
    %v1410 = vcombine.high %v1328, %v1328
    %v1412 = vunpack.c.l.s4 1966171168
    %v1413 = vunpack.c.0.s8 %v1412
    %v1414 = vlaneseq
    %v1415 = vshrl.u32 %v1414, 7
    %v1416 = vsub.s32 %v1413, %v1415
    %v1417 = vrot.slane %v1328, %v1416
    %v1419 = vunpack.c.l.s4 1966171168
    %v1420 = vunpack.c.0.s8 %v1419
    %v1421 = vlaneseq
    %v1422 = vshrl.u32 %v1421, 7
    %v1423 = vsub.s32 %v1420, %v1422
    %v1424 = vrot.slane %v1410, %v1423
    %v1425 = vcombine.high %v1417, %v1417
    %v1427 = vunpack.c.l.s4 1966171168
    %v1428 = vunpack.c.0.s8 %v1427
    %v1429 = vlaneseq
    %v1430 = vshrl.u32 %v1429, 7
    %v1431 = vsub.s32 %v1428, %v1430
    %v1432 = vrot.slane %v1417, %v1431
    %v1434 = vunpack.c.l.s4 1966171168
    %v1435 = vunpack.c.0.s8 %v1434
    %v1436 = vlaneseq
    %v1437 = vshrl.u32 %v1436, 7
    %v1438 = vsub.s32 %v1435, %v1437
    %v1439 = vrot.slane %v1424, %v1438
    %v1441 = vunpack.c.l.s4 1966171168
    %v1442 = vunpack.c.0.s8 %v1441
    %v1443 = vlaneseq
    %v1444 = vshrl.u32 %v1443, 7
    %v1445 = vsub.s32 %v1442, %v1444
    %v1446 = vrot.slane %v1425, %v1445
    %v1447 = vcombine.high %v1432, %v1432
    %v1448 = vcombine.high %v1446, %v1446
    %v1449 = vcombine.high %v1405, %v1405
    %v1451 = vunpack.c.l.s4 1966171168
    %v1452 = vunpack.c.0.s8 %v1451
    %v1453 = vlaneseq
    %v1454 = vshrl.u32 %v1453, 7
    %v1455 = vsub.s32 %v1452, %v1454
    %v1456 = vrot.slane %v1405, %v1455
    %v1458 = vunpack.c.l.s4 1966171168
    %v1459 = vunpack.c.0.s8 %v1458
    %v1460 = vlaneseq
    %v1461 = vshrl.u32 %v1460, 7
    %v1462 = vsub.s32 %v1459, %v1461
    %v1463 = vrot.slane %v1449, %v1462
    %v1464 = vcombine.high %v1456, %v1456
    %v1466 = vunpack.c.l.s4 1966171168
    %v1467 = vunpack.c.0.s8 %v1466
    %v1468 = vlaneseq
    %v1469 = vshrl.u32 %v1468, 7
    %v1470 = vsub.s32 %v1467, %v1469
    %v1471 = vrot.slane %v1456, %v1470
    %v1473 = vunpack.c.l.s4 1966171168
    %v1474 = vunpack.c.0.s8 %v1473
    %v1475 = vlaneseq
    %v1476 = vshrl.u32 %v1475, 7
    %v1477 = vsub.s32 %v1474, %v1476
    %v1478 = vrot.slane %v1463, %v1477
    %v1480 = vunpack.c.l.s4 1966171168
    %v1481 = vunpack.c.0.s8 %v1480
    %v1482 = vlaneseq
    %v1483 = vshrl.u32 %v1482, 7
    %v1484 = vsub.s32 %v1481, %v1483
    %v1485 = vrot.slane %v1464, %v1484
    %v1486 = vcombine.high %v1471, %v1471
    %v1487 = vcombine.high %v1485, %v1485
    %1488 = vrot.lane.b32.xlu0 %v1034, 112
    %v1489 = vpop.permute.xlu0 %1488
    %1490 = vrot.lane.b32.xlu0 %v1034, 80
    %v1491 = vpop.permute.xlu0 %1490
    %v1492 = vsel %vm1037, %v1489, 0
    %v1494 = vsel %vm1037, %v1491, 0
    %1496 = vmatprep.subr.mxu0 0.0
    %1497 = vmatpush1.xpose.msra.mxu0 %v1494
    %1498 = vmatprep.subr.mxu0 0.0
    %1499 = vmatpush1.xpose.msra.mxu0 0.0
    %1500 = vmatprep.subr.mxu0 0.0
    %1501 = vmatpush1.xpose.msra.mxu0 0.0
    %1502 = vmatprep.subr.mxu0 0.0
    %1503 = vmatpush1.xpose.msra.mxu0 0.0
    %1504 = vmatprep.subr.mxu0 0.0
    %1505 = vmatpush1.xpose.msra.mxu0 0.0
    %1506 = vmatprep.subr.mxu0 0.0
    %1507 = vmatpush1.xpose.msra.mxu0 0.0
    %1508 = vmatprep.subr.mxu0 0.0
    %1509 = vmatpush1.xpose.msra.mxu0 0.0
    %1510 = vmatprep.subr.mxu0 0.0
    %1511 = vmatpush1.xpose.msra.mxu0 0.0
    %1512 = vmatprep.subr.mxu0 0.0
    %1513 = vmatpush1.xpose.msra.mxu0 0.0
    %1514 = vmatprep.subr.mxu0 0.0
    %1515 = vmatpush1.xpose.msra.mxu0 0.0
    %1516 = vmatprep.subr.mxu0 0.0
    %1517 = vmatpush1.xpose.msra.mxu0 0.0
    %1518 = vmatprep.subr.mxu0 0.0
    %1519 = vmatpush1.xpose.msra.mxu0 0.0
    %1520 = vmatprep.subr.mxu0 0.0
    %1521 = vmatpush1.xpose.msra.mxu0 0.0
    %1522 = vmatprep.subr.mxu0 0.0
    %1523 = vmatpush1.xpose.msra.mxu0 0.0
    %1524 = vmatprep.subr.mxu0 0.0
    %1525 = vmatpush1.xpose.msra.mxu0 0.0
    %1526 = vmatprep.subr.mxu0 0.0
    %1527 = vmatpush1.xpose.msra.mxu0 0.0
    %1528 = vmatprep.subr.mxu0 0.0
    %1529 = vmatpush1.xpose.msra.mxu0 0.0
    %1530 = vmatprep.subr.mxu0 0.0
    %1531 = vmatpush1.xpose.msra.mxu0 0.0
    %1532 = vmatprep.subr.mxu0 0.0
    %1533 = vmatpush1.xpose.msra.mxu0 0.0
    %1534 = vmatprep.subr.mxu0 0.0
    %1535 = vmatpush1.xpose.msra.mxu0 0.0
    %1536 = vmatprep.subr.mxu0 0.0
    %1537 = vmatpush1.xpose.msra.mxu0 0.0
    %1538 = vmatprep.subr.mxu0 0.0
    %1539 = vmatpush1.xpose.msra.mxu0 0.0
    %1540 = vmatprep.subr.mxu0 0.0
    %1541 = vmatpush1.xpose.msra.mxu0 0.0
    %1542 = vmatprep.subr.mxu0 0.0
    %1543 = vmatpush1.xpose.msra.mxu0 0.0
    %1544 = vmatprep.subr.mxu0 0.0
    %1545 = vmatpush1.xpose.msra.mxu0 0.0
    %1546 = vmatprep.subr.mxu0 0.0
    %1547 = vmatpush1.xpose.msra.mxu0 0.0
    %1548 = vmatprep.subr.mxu0 0.0
    %1549 = vmatpush1.xpose.msra.mxu0 0.0
    %1550 = vmatprep.subr.mxu0 0.0
    %1551 = vmatpush1.xpose.msra.mxu0 0.0
    %1552 = vmatprep.subr.mxu0 0.0
    %1553 = vmatpush1.xpose.msra.mxu0 0.0
    %1554 = vmatprep.subr.mxu0 0.0
    %1555 = vmatpush1.xpose.msra.mxu0 0.0
    %1556 = vmatprep.subr.mxu0 0.0
    %1557 = vmatpush1.xpose.msra.mxu0 0.0
    %1558 = vmatprep.subr.mxu0 0.0
    %1559 = vmatpush1.xpose.msra.mxu0 0.0
    %1560 = vmatprep.mubr.f32.mxu0 0.0
    %1561 = vmatmul.mubr.f32.gmra.mrb[0].mxu0 %v1492
    %v1562 = vpop.f32.mrb[0].mxu0
    %v1563 = vadd.f32 0.0, %v1562
    %v1564 = vpop.f32.mrb[0].mxu0
    %1565 = vdwg.mxu0
    %1566 = vrot.lane.b32.xlu0 %v1150, 112
    %v1567 = vpop.permute.xlu0 %1566
    %1568 = vrot.lane.b32.xlu0 %v1150, 80
    %v1569 = vpop.permute.xlu0 %1568
    %v1570 = vsel %vm1037, %v1567, 0
    %v1572 = vsel %vm1037, %v1569, 0
    %1574 = vmatprep.subr.mxu0 0.0
    %1575 = vmatpush1.xpose.msra.mxu0 %v1572
    %1576 = vmatprep.subr.mxu0 0.0
    %1577 = vmatpush1.xpose.msra.mxu0 0.0
    %1578 = vmatprep.subr.mxu0 0.0
    %1579 = vmatpush1.xpose.msra.mxu0 0.0
    %1580 = vmatprep.subr.mxu0 0.0
    %1581 = vmatpush1.xpose.msra.mxu0 0.0
    %1582 = vmatprep.subr.mxu0 0.0
    %1583 = vmatpush1.xpose.msra.mxu0 0.0
    %1584 = vmatprep.subr.mxu0 0.0
    %1585 = vmatpush1.xpose.msra.mxu0 0.0
    %1586 = vmatprep.subr.mxu0 0.0
    %1587 = vmatpush1.xpose.msra.mxu0 0.0
    %1588 = vmatprep.subr.mxu0 0.0
    %1589 = vmatpush1.xpose.msra.mxu0 0.0
    %1590 = vmatprep.subr.mxu0 0.0
    %1591 = vmatpush1.xpose.msra.mxu0 0.0
    %1592 = vmatprep.subr.mxu0 0.0
    %1593 = vmatpush1.xpose.msra.mxu0 0.0
    %1594 = vmatprep.subr.mxu0 0.0
    %1595 = vmatpush1.xpose.msra.mxu0 0.0
    %1596 = vmatprep.subr.mxu0 0.0
    %1597 = vmatpush1.xpose.msra.mxu0 0.0
    %1598 = vmatprep.subr.mxu0 0.0
    %1599 = vmatpush1.xpose.msra.mxu0 0.0
    %1600 = vmatprep.subr.mxu0 0.0
    %1601 = vmatpush1.xpose.msra.mxu0 0.0
    %1602 = vmatprep.subr.mxu0 0.0
    %1603 = vmatpush1.xpose.msra.mxu0 0.0
    %1604 = vmatprep.subr.mxu0 0.0
    %1605 = vmatpush1.xpose.msra.mxu0 0.0
    %1606 = vmatprep.subr.mxu0 0.0
    %1607 = vmatpush1.xpose.msra.mxu0 0.0
    %1608 = vmatprep.subr.mxu0 0.0
    %1609 = vmatpush1.xpose.msra.mxu0 0.0
    %1610 = vmatprep.subr.mxu0 0.0
    %1611 = vmatpush1.xpose.msra.mxu0 0.0
    %1612 = vmatprep.subr.mxu0 0.0
    %1613 = vmatpush1.xpose.msra.mxu0 0.0
    %1614 = vmatprep.subr.mxu0 0.0
    %1615 = vmatpush1.xpose.msra.mxu0 0.0
    %1616 = vmatprep.subr.mxu0 0.0
    %1617 = vmatpush1.xpose.msra.mxu0 0.0
    %1618 = vmatprep.subr.mxu0 0.0
    %1619 = vmatpush1.xpose.msra.mxu0 0.0
    %1620 = vmatprep.subr.mxu0 0.0
    %1621 = vmatpush1.xpose.msra.mxu0 0.0
    %1622 = vmatprep.subr.mxu0 0.0
    %1623 = vmatpush1.xpose.msra.mxu0 0.0
    %1624 = vmatprep.subr.mxu0 0.0
    %1625 = vmatpush1.xpose.msra.mxu0 0.0
    %1626 = vmatprep.subr.mxu0 0.0
    %1627 = vmatpush1.xpose.msra.mxu0 0.0
    %1628 = vmatprep.subr.mxu0 0.0
    %1629 = vmatpush1.xpose.msra.mxu0 0.0
    %1630 = vmatprep.subr.mxu0 0.0
    %1631 = vmatpush1.xpose.msra.mxu0 0.0
    %1632 = vmatprep.subr.mxu0 0.0
    %1633 = vmatpush1.xpose.msra.mxu0 0.0
    %1634 = vmatprep.subr.mxu0 0.0
    %1635 = vmatpush1.xpose.msra.mxu0 0.0
    %1636 = vmatprep.subr.mxu0 0.0
    %1637 = vmatpush1.xpose.msra.mxu0 0.0
    %1638 = vmatprep.mubr.f32.mxu0 0.0
    %1639 = vmatmul.mubr.f32.gmra.mrb[0].mxu0 %v1570
    %v1640 = vpop.f32.mrb[0].mxu0
    %v1641 = vadd.f32 0.0, %v1640
    %v1642 = vpop.f32.mrb[0].mxu0
    %1643 = vdwg.mxu0
    %v1644 = vmul.f32 %v1563, 0.25
    %v1645 = vmul.f32 %v1641, 0.25
    %v1646 = vsel %vm1229, %v1644, -inf
    %1647 = vmax.xlane.f32.xlu0 %v1646
    %v1648 = vpop.xlane.xlu0 %1647
    %v1649 = vsel %vm1229, %v1645, -inf
    %1650 = vmax.xlane.f32.xlu0 %v1649
    %v1651 = vpop.xlane.xlu0 %1650
    %v1652 = vsub.f32 %v1644, %v1648
    %v1653 = vsub.f32 %v1645, %v1651
    %v1654 = vmul.f32 %v1652, 1.442695
    %v1655 = vpow.pop %v1654
    %v1656 = vmul.f32 %v1653, 1.442695
    %v1657 = vpow.pop %v1656
    %v1658 = vsel %vm1229, %v1655, 0.0
    %1659 = vadd.xlane.f32.xlu0 %v1658
    %v1660 = vpop.xlane.xlu0 %1659
    %v1661 = vsel %vm1229, %v1657, 0.0
    %1662 = vadd.xlane.f32.xlu0 %v1661
    %v1663 = vpop.xlane.xlu0 %1662
    %v1664 = vrcp.pop %v1660
    %v1665 = vrcp.pop %v1663
    %v1666 = vmul.f32 %v1655, %v1664
    %v1667 = vmul.f32 %v1657, %v1665
    %1668 = vrot.lane.b32.xlu0 %v1034, 48
    %v1669 = vpop.permute.xlu0 %1668
    %v1671 = vsel %vm1254, %v1666, 0
    %v1673 = vsel %vm1258, %v1669, 0
    %1675 = vmatprep.subr.mxu0 0.0
    %1676 = vmatpush1.msra.mxu0 %v1673
    %1677 = vmatprep.subr.mxu0 0.0
    %1678 = vmatpush1.msra.mxu0 0.0
    %1679 = vmatprep.subr.mxu0 0.0
    %1680 = vmatpush1.msra.mxu0 0.0
    %1681 = vmatprep.subr.mxu0 0.0
    %1682 = vmatpush1.msra.mxu0 0.0
    %1683 = vmatprep.subr.mxu0 0.0
    %1684 = vmatpush1.msra.mxu0 0.0
    %1685 = vmatprep.subr.mxu0 0.0
    %1686 = vmatpush1.msra.mxu0 0.0
    %1687 = vmatprep.subr.mxu0 0.0
    %1688 = vmatpush1.msra.mxu0 0.0
    %1689 = vmatprep.subr.mxu0 0.0
    %1690 = vmatpush1.msra.mxu0 0.0
    %1691 = vmatprep.subr.mxu0 0.0
    %1692 = vmatpush1.msra.mxu0 0.0
    %1693 = vmatprep.subr.mxu0 0.0
    %1694 = vmatpush1.msra.mxu0 0.0
    %1695 = vmatprep.subr.mxu0 0.0
    %1696 = vmatpush1.msra.mxu0 0.0
    %1697 = vmatprep.subr.mxu0 0.0
    %1698 = vmatpush1.msra.mxu0 0.0
    %1699 = vmatprep.subr.mxu0 0.0
    %1700 = vmatpush1.msra.mxu0 0.0
    %1701 = vmatprep.subr.mxu0 0.0
    %1702 = vmatpush1.msra.mxu0 0.0
    %1703 = vmatprep.subr.mxu0 0.0
    %1704 = vmatpush1.msra.mxu0 0.0
    %1705 = vmatprep.subr.mxu0 0.0
    %1706 = vmatpush1.msra.mxu0 0.0
    %1707 = vmatprep.subr.mxu0 0.0
    %1708 = vmatpush1.msra.mxu0 0.0
    %1709 = vmatprep.subr.mxu0 0.0
    %1710 = vmatpush1.msra.mxu0 0.0
    %1711 = vmatprep.subr.mxu0 0.0
    %1712 = vmatpush1.msra.mxu0 0.0
    %1713 = vmatprep.subr.mxu0 0.0
    %1714 = vmatpush1.msra.mxu0 0.0
    %1715 = vmatprep.subr.mxu0 0.0
    %1716 = vmatpush1.msra.mxu0 0.0
    %1717 = vmatprep.subr.mxu0 0.0
    %1718 = vmatpush1.msra.mxu0 0.0
    %1719 = vmatprep.subr.mxu0 0.0
    %1720 = vmatpush1.msra.mxu0 0.0
    %1721 = vmatprep.subr.mxu0 0.0
    %1722 = vmatpush1.msra.mxu0 0.0
    %1723 = vmatprep.subr.mxu0 0.0
    %1724 = vmatpush1.msra.mxu0 0.0
    %1725 = vmatprep.subr.mxu0 0.0
    %1726 = vmatpush1.msra.mxu0 0.0
    %1727 = vmatprep.subr.mxu0 0.0
    %1728 = vmatpush1.msra.mxu0 0.0
    %1729 = vmatprep.subr.mxu0 0.0
    %1730 = vmatpush1.msra.mxu0 0.0
    %1731 = vmatprep.subr.mxu0 0.0
    %1732 = vmatpush1.msra.mxu0 0.0
    %1733 = vmatprep.subr.mxu0 0.0
    %1734 = vmatpush1.msra.mxu0 0.0
    %1735 = vmatprep.subr.mxu0 0.0
    %1736 = vmatpush1.msra.mxu0 0.0
    %1737 = vmatprep.subr.mxu0 0.0
    %1738 = vmatpush1.msra.mxu0 0.0
    %1739 = vmatprep.mubr.f32.mxu0 0.0
    %1740 = vmatmul.mubr.f32.gmra.mrb[0].mxu0 %v1671
    %v1741 = vpop.f32.mrb[0].mxu0
    %v1742 = vadd.f32 0.0, %v1741
    %v1743 = vpop.f32.mrb[0].mxu0
    %1744 = vdwg.mxu0
    %1745 = vrot.lane.b32.xlu0 %v1150, 48
    %v1746 = vpop.permute.xlu0 %1745
    %v1748 = vsel %vm1254, %v1667, 0
    %v1750 = vsel %vm1258, %v1746, 0
    %1752 = vmatprep.subr.mxu0 0.0
    %1753 = vmatpush1.msra.mxu0 %v1750
    %1754 = vmatprep.subr.mxu0 0.0
    %1755 = vmatpush1.msra.mxu0 0.0
    %1756 = vmatprep.subr.mxu0 0.0
    %1757 = vmatpush1.msra.mxu0 0.0
    %1758 = vmatprep.subr.mxu0 0.0
    %1759 = vmatpush1.msra.mxu0 0.0
    %1760 = vmatprep.subr.mxu0 0.0
    %1761 = vmatpush1.msra.mxu0 0.0
    %1762 = vmatprep.subr.mxu0 0.0
    %1763 = vmatpush1.msra.mxu0 0.0
    %1764 = vmatprep.subr.mxu0 0.0
    %1765 = vmatpush1.msra.mxu0 0.0
    %1766 = vmatprep.subr.mxu0 0.0
    %1767 = vmatpush1.msra.mxu0 0.0
    %1768 = vmatprep.subr.mxu0 0.0
    %1769 = vmatpush1.msra.mxu0 0.0
    %1770 = vmatprep.subr.mxu0 0.0
    %1771 = vmatpush1.msra.mxu0 0.0
    %1772 = vmatprep.subr.mxu0 0.0
    %1773 = vmatpush1.msra.mxu0 0.0
    %1774 = vmatprep.subr.mxu0 0.0
    %1775 = vmatpush1.msra.mxu0 0.0
    %1776 = vmatprep.subr.mxu0 0.0
    %1777 = vmatpush1.msra.mxu0 0.0
    %1778 = vmatprep.subr.mxu0 0.0
    %1779 = vmatpush1.msra.mxu0 0.0
    %1780 = vmatprep.subr.mxu0 0.0
    %1781 = vmatpush1.msra.mxu0 0.0
    %1782 = vmatprep.subr.mxu0 0.0
    %1783 = vmatpush1.msra.mxu0 0.0
    %1784 = vmatprep.subr.mxu0 0.0
    %1785 = vmatpush1.msra.mxu0 0.0
    %1786 = vmatprep.subr.mxu0 0.0
    %1787 = vmatpush1.msra.mxu0 0.0
    %1788 = vmatprep.subr.mxu0 0.0
    %1789 = vmatpush1.msra.mxu0 0.0
    %1790 = vmatprep.subr.mxu0 0.0
    %1791 = vmatpush1.msra.mxu0 0.0
    %1792 = vmatprep.subr.mxu0 0.0
    %1793 = vmatpush1.msra.mxu0 0.0
    %1794 = vmatprep.subr.mxu0 0.0
    %1795 = vmatpush1.msra.mxu0 0.0
    %1796 = vmatprep.subr.mxu0 0.0
    %1797 = vmatpush1.msra.mxu0 0.0
    %1798 = vmatprep.subr.mxu0 0.0
    %1799 = vmatpush1.msra.mxu0 0.0
    %1800 = vmatprep.subr.mxu0 0.0
    %1801 = vmatpush1.msra.mxu0 0.0
    %1802 = vmatprep.subr.mxu0 0.0
    %1803 = vmatpush1.msra.mxu0 0.0
    %1804 = vmatprep.subr.mxu0 0.0
    %1805 = vmatpush1.msra.mxu0 0.0
    %1806 = vmatprep.subr.mxu0 0.0
    %1807 = vmatpush1.msra.mxu0 0.0
    %1808 = vmatprep.subr.mxu0 0.0
    %1809 = vmatpush1.msra.mxu0 0.0
    %1810 = vmatprep.subr.mxu0 0.0
    %1811 = vmatpush1.msra.mxu0 0.0
    %1812 = vmatprep.subr.mxu0 0.0
    %1813 = vmatpush1.msra.mxu0 0.0
    %1814 = vmatprep.subr.mxu0 0.0
    %1815 = vmatpush1.msra.mxu0 0.0
    %1816 = vmatprep.mubr.f32.mxu0 0.0
    %1817 = vmatmul.mubr.f32.gmra.mrb[0].mxu0 %v1748
    %v1818 = vpop.f32.mrb[0].mxu0
    %v1819 = vadd.f32 0.0, %v1818
    %v1820 = vpop.f32.mrb[0].mxu0
    %1821 = vdwg.mxu0
    %v1824 = vcombine.high %v1742, %v1742
    %v1826 = vunpack.c.l.s4 1966171168
    %v1827 = vunpack.c.0.s8 %v1826
    %v1828 = vlaneseq
    %v1829 = vshrl.u32 %v1828, 7
    %v1830 = vsub.s32 %v1827, %v1829
    %v1831 = vrot.slane %v1742, %v1830
    %v1833 = vunpack.c.l.s4 1966171168
    %v1834 = vunpack.c.0.s8 %v1833
    %v1835 = vlaneseq
    %v1836 = vshrl.u32 %v1835, 7
    %v1837 = vsub.s32 %v1834, %v1836
    %v1838 = vrot.slane %v1824, %v1837
    %v1839 = vcombine.high %v1831, %v1831
    %v1841 = vunpack.c.l.s4 1966171168
    %v1842 = vunpack.c.0.s8 %v1841
    %v1843 = vlaneseq
    %v1844 = vshrl.u32 %v1843, 7
    %v1845 = vsub.s32 %v1842, %v1844
    %v1846 = vrot.slane %v1831, %v1845
    %v1848 = vunpack.c.l.s4 1966171168
    %v1849 = vunpack.c.0.s8 %v1848
    %v1850 = vlaneseq
    %v1851 = vshrl.u32 %v1850, 7
    %v1852 = vsub.s32 %v1849, %v1851
    %v1853 = vrot.slane %v1838, %v1852
    %v1855 = vunpack.c.l.s4 1966171168
    %v1856 = vunpack.c.0.s8 %v1855
    %v1857 = vlaneseq
    %v1858 = vshrl.u32 %v1857, 7
    %v1859 = vsub.s32 %v1856, %v1858
    %v1860 = vrot.slane %v1839, %v1859
    %v1861 = vcombine.high %v1846, %v1846
    %v1862 = vcombine.high %v1860, %v1860
    %v1863 = vcombine.high %v1819, %v1819
    %v1865 = vunpack.c.l.s4 1966171168
    %v1866 = vunpack.c.0.s8 %v1865
    %v1867 = vlaneseq
    %v1868 = vshrl.u32 %v1867, 7
    %v1869 = vsub.s32 %v1866, %v1868
    %v1870 = vrot.slane %v1819, %v1869
    %v1872 = vunpack.c.l.s4 1966171168
    %v1873 = vunpack.c.0.s8 %v1872
    %v1874 = vlaneseq
    %v1875 = vshrl.u32 %v1874, 7
    %v1876 = vsub.s32 %v1873, %v1875
    %v1877 = vrot.slane %v1863, %v1876
    %v1878 = vcombine.high %v1870, %v1870
    %v1880 = vunpack.c.l.s4 1966171168
    %v1881 = vunpack.c.0.s8 %v1880
    %v1882 = vlaneseq
    %v1883 = vshrl.u32 %v1882, 7
    %v1884 = vsub.s32 %v1881, %v1883
    %v1885 = vrot.slane %v1870, %v1884
    %v1887 = vunpack.c.l.s4 1966171168
    %v1888 = vunpack.c.0.s8 %v1887
    %v1889 = vlaneseq
    %v1890 = vshrl.u32 %v1889, 7
    %v1891 = vsub.s32 %v1888, %v1890
    %v1892 = vrot.slane %v1877, %v1891
    %v1894 = vunpack.c.l.s4 1966171168
    %v1895 = vunpack.c.0.s8 %v1894
    %v1896 = vlaneseq
    %v1897 = vshrl.u32 %v1896, 7
    %v1898 = vsub.s32 %v1895, %v1897
    %v1899 = vrot.slane %v1878, %v1898
    %v1900 = vcombine.high %v1885, %v1885
    %v1901 = vcombine.high %v1899, %v1899
    %v1902 = vcombine.low %v1846, %v1860
    %v1903 = vcombine.low %v1861, %v1862
    %v1904 = vcombine.low %v1853, %v1885
    %v1905 = vcombine.low %v1899, %v1900
    %v1907 = vunpack.c.l.s4 1966171168
    %v1908 = vunpack.c.0.s8 %v1907
    %v1909 = vlaneseq
    %v1910 = vshrl.u32 %v1909, 7
    %v1911 = vsub.s32 %v1908, %v1910
    %v1912 = vrot.slane %v1902, %v1911
    %v1914 = vunpack.c.l.s4 1966171168
    %v1915 = vunpack.c.0.s8 %v1914
    %v1916 = vlaneseq
    %v1917 = vshrl.u32 %v1916, 7
    %v1918 = vsub.s32 %v1915, %v1917
    %v1919 = vrot.slane %v1903, %v1918
    %v1921 = vunpack.c.l.s4 1966171168
    %v1922 = vunpack.c.0.s8 %v1921
    %v1923 = vlaneseq
    %v1924 = vshrl.u32 %v1923, 7
    %v1925 = vsub.s32 %v1922, %v1924
    %v1926 = vrot.slane %v1904, %v1925
    %v1928 = vunpack.c.l.s4 1966171168
    %v1929 = vunpack.c.0.s8 %v1928
    %v1930 = vlaneseq
    %v1931 = vshrl.u32 %v1930, 7
    %v1932 = vsub.s32 %v1929, %v1931
    %v1933 = vrot.slane %v1905, %v1932
    %v1934 = vcombine.low %v1912, %v1919
    %v1935 = vcombine.low %v1926, %v1933
    %v1937 = vunpack.c.l.s4 1966171168
    %v1938 = vunpack.c.0.s8 %v1937
    %v1939 = vlaneseq
    %v1940 = vshrl.u32 %v1939, 7
    %v1941 = vsub.s32 %v1938, %v1940
    %v1942 = vrot.slane %v1934, %v1941
    %v1944 = vunpack.c.l.s4 1966171168
    %v1945 = vunpack.c.0.s8 %v1944
    %v1946 = vlaneseq
    %v1947 = vshrl.u32 %v1946, 7
    %v1948 = vsub.s32 %v1945, %v1947
    %v1949 = vrot.slane %v1935, %v1948
    %v1950 = vcombine.low %v1942, %v1949
    %v1951 = vcombine.low %v1901, %v1892
    %v1953 = vunpack.c.l.s4 1966171168
    %v1954 = vunpack.c.0.s8 %v1953
    %v1955 = vlaneseq
    %v1956 = vshrl.u32 %v1955, 7
    %v1957 = vsub.s32 %v1954, %v1956
    %v1958 = vrot.slane %v1951, %v1957
    %v1960 = vunpack.c.l.s4 1966171168
    %v1961 = vunpack.c.0.s8 %v1960
    %v1962 = vlaneseq
    %v1963 = vshrl.u32 %v1962, 7
    %v1964 = vsub.s32 %v1961, %v1963
    %v1965 = vrot.slane %v1958, %v1964
    %v1966 = vsel %vm1037, %v1950, 0
    %v1968 = vsel %vm1037, %v1965, 0
    %1970 = vmatprep.subr.mxu0 0.0
    %1971 = vmatpush1.msra.mxu0 %v994
    %1972 = vmatprep.subr.mxu0 0.0
    %1973 = vmatpush1.msra.mxu0 %v995
    %1974 = vmatprep.subr.mxu0 0.0
    %1975 = vmatpush1.msra.mxu0 0.0
    %1976 = vmatprep.subr.mxu0 0.0
    %1977 = vmatpush1.msra.mxu0 0.0
    %1978 = vmatprep.subr.mxu0 0.0
    %1979 = vmatpush1.msra.mxu0 0.0
    %1980 = vmatprep.subr.mxu0 0.0
    %1981 = vmatpush1.msra.mxu0 0.0
    %1982 = vmatprep.subr.mxu0 0.0
    %1983 = vmatpush1.msra.mxu0 0.0
    %1984 = vmatprep.subr.mxu0 0.0
    %1985 = vmatpush1.msra.mxu0 0.0
    %1986 = vmatprep.subr.mxu0 0.0
    %1987 = vmatpush1.msra.mxu0 0.0
    %1988 = vmatprep.subr.mxu0 0.0
    %1989 = vmatpush1.msra.mxu0 0.0
    %1990 = vmatprep.subr.mxu0 0.0
    %1991 = vmatpush1.msra.mxu0 0.0
    %1992 = vmatprep.subr.mxu0 0.0
    %1993 = vmatpush1.msra.mxu0 0.0
    %1994 = vmatprep.subr.mxu0 0.0
    %1995 = vmatpush1.msra.mxu0 0.0
    %1996 = vmatprep.subr.mxu0 0.0
    %1997 = vmatpush1.msra.mxu0 0.0
    %1998 = vmatprep.subr.mxu0 0.0
    %1999 = vmatpush1.msra.mxu0 0.0
    %2000 = vmatprep.subr.mxu0 0.0
    %2001 = vmatpush1.msra.mxu0 0.0
    %2002 = vmatprep.subr.mxu0 0.0
    %2003 = vmatpush1.msra.mxu0 0.0
    %2004 = vmatprep.subr.mxu0 0.0
    %2005 = vmatpush1.msra.mxu0 0.0
    %2006 = vmatprep.subr.mxu0 0.0
    %2007 = vmatpush1.msra.mxu0 0.0
    %2008 = vmatprep.subr.mxu0 0.0
    %2009 = vmatpush1.msra.mxu0 0.0
    %2010 = vmatprep.subr.mxu0 0.0
    %2011 = vmatpush1.msra.mxu0 0.0
    %2012 = vmatprep.subr.mxu0 0.0
    %2013 = vmatpush1.msra.mxu0 0.0
    %2014 = vmatprep.subr.mxu0 0.0
    %2015 = vmatpush1.msra.mxu0 0.0
    %2016 = vmatprep.subr.mxu0 0.0
    %2017 = vmatpush1.msra.mxu0 0.0
    %2018 = vmatprep.subr.mxu0 0.0
    %2019 = vmatpush1.msra.mxu0 0.0
    %2020 = vmatprep.subr.mxu0 0.0
    %2021 = vmatpush1.msra.mxu0 0.0
    %2022 = vmatprep.subr.mxu0 0.0
    %2023 = vmatpush1.msra.mxu0 0.0
    %2024 = vmatprep.subr.mxu0 0.0
    %2025 = vmatpush1.msra.mxu0 0.0
    %2026 = vmatprep.subr.mxu0 0.0
    %2027 = vmatpush1.msra.mxu0 0.0
    %2028 = vmatprep.subr.mxu0 0.0
    %2029 = vmatpush1.msra.mxu0 0.0
    %2030 = vmatprep.subr.mxu0 0.0
    %2031 = vmatpush1.msra.mxu0 0.0
    %2032 = vmatprep.subr.mxu0 0.0
    %2033 = vmatpush1.msra.mxu0 0.0
    %2034 = vmatprep.mubr.f32.mxu0 0.0
    %2035 = vmatmul.mubr.f32.gmra.mrb[0].mxu0 %v1966
    %v2036 = vpop.f32.mrb[0].mxu0
    %v2037 = vadd.f32 0.0, %v2036
    %v2038 = vpop.f32.mrb[0].mxu0
    %2039 = vmatprep.mubr.f32.mxu0 0.0
    %2040 = vmatmul.mubr.f32.gmra.mrb[0].mxu0 %v1968
    %v2041 = vpop.f32.mrb[0].mxu0
    %v2042 = vadd.f32 0.0, %v2041
    %v2043 = vpop.f32.mrb[0].mxu0
    %2044 = vdwg.mxu0
    %v2045 = vcombine.low %v1432, %v1446
    %v2046 = vcombine.low %v1447, %v1448
    %v2047 = vcombine.low %v1439, %v1471
    %v2048 = vcombine.low %v1485, %v1486
    %v2050 = vunpack.c.l.s4 1966171168
    %v2051 = vunpack.c.0.s8 %v2050
    %v2052 = vlaneseq
    %v2053 = vshrl.u32 %v2052, 7
    %v2054 = vsub.s32 %v2051, %v2053
    %v2055 = vrot.slane %v2045, %v2054
    %v2057 = vunpack.c.l.s4 1966171168
    %v2058 = vunpack.c.0.s8 %v2057
    %v2059 = vlaneseq
    %v2060 = vshrl.u32 %v2059, 7
    %v2061 = vsub.s32 %v2058, %v2060
    %v2062 = vrot.slane %v2046, %v2061
    %v2064 = vunpack.c.l.s4 1966171168
    %v2065 = vunpack.c.0.s8 %v2064
    %v2066 = vlaneseq
    %v2067 = vshrl.u32 %v2066, 7
    %v2068 = vsub.s32 %v2065, %v2067
    %v2069 = vrot.slane %v2047, %v2068
    %v2071 = vunpack.c.l.s4 1966171168
    %v2072 = vunpack.c.0.s8 %v2071
    %v2073 = vlaneseq
    %v2074 = vshrl.u32 %v2073, 7
    %v2075 = vsub.s32 %v2072, %v2074
    %v2076 = vrot.slane %v2048, %v2075
    %v2077 = vcombine.low %v2055, %v2062
    %v2078 = vcombine.low %v2069, %v2076
    %v2080 = vunpack.c.l.s4 1966171168
    %v2081 = vunpack.c.0.s8 %v2080
    %v2082 = vlaneseq
    %v2083 = vshrl.u32 %v2082, 7
    %v2084 = vsub.s32 %v2081, %v2083
    %v2085 = vrot.slane %v2077, %v2084
    %v2087 = vunpack.c.l.s4 1966171168
    %v2088 = vunpack.c.0.s8 %v2087
    %v2089 = vlaneseq
    %v2090 = vshrl.u32 %v2089, 7
    %v2091 = vsub.s32 %v2088, %v2090
    %v2092 = vrot.slane %v2078, %v2091
    %v2093 = vcombine.low %v2085, %v2092
    %v2094 = vcombine.low %v1487, %v1478
    %v2096 = vunpack.c.l.s4 1966171168
    %v2097 = vunpack.c.0.s8 %v2096
    %v2098 = vlaneseq
    %v2099 = vshrl.u32 %v2098, 7
    %v2100 = vsub.s32 %v2097, %v2099
    %v2101 = vrot.slane %v2094, %v2100
    %v2103 = vunpack.c.l.s4 1966171168
    %v2104 = vunpack.c.0.s8 %v2103
    %v2105 = vlaneseq
    %v2106 = vshrl.u32 %v2105, 7
    %v2107 = vsub.s32 %v2104, %v2106
    %v2108 = vrot.slane %v2101, %v2107
    %v2109 = vsel %vm1037, %v2093, 0
    %v2111 = vsel %vm1037, %v2108, 0
    %2113 = vmatprep.subr.mxu0 0.0
    %2114 = vmatpush1.msra.mxu0 %v992
    %2115 = vmatprep.subr.mxu0 0.0
    %2116 = vmatpush1.msra.mxu0 %v993
    %2117 = vmatprep.subr.mxu0 0.0
    %2118 = vmatpush1.msra.mxu0 0.0
    %2119 = vmatprep.subr.mxu0 0.0
    %2120 = vmatpush1.msra.mxu0 0.0
    %2121 = vmatprep.subr.mxu0 0.0
    %2122 = vmatpush1.msra.mxu0 0.0
    %2123 = vmatprep.subr.mxu0 0.0
    %2124 = vmatpush1.msra.mxu0 0.0
    %2125 = vmatprep.subr.mxu0 0.0
    %2126 = vmatpush1.msra.mxu0 0.0
    %2127 = vmatprep.subr.mxu0 0.0
    %2128 = vmatpush1.msra.mxu0 0.0
    %2129 = vmatprep.subr.mxu0 0.0
    %2130 = vmatpush1.msra.mxu0 0.0
    %2131 = vmatprep.subr.mxu0 0.0
    %2132 = vmatpush1.msra.mxu0 0.0
    %2133 = vmatprep.subr.mxu0 0.0
    %2134 = vmatpush1.msra.mxu0 0.0
    %2135 = vmatprep.subr.mxu0 0.0
    %2136 = vmatpush1.msra.mxu0 0.0
    %2137 = vmatprep.subr.mxu0 0.0
    %2138 = vmatpush1.msra.mxu0 0.0
    %2139 = vmatprep.subr.mxu0 0.0
    %2140 = vmatpush1.msra.mxu0 0.0
    %2141 = vmatprep.subr.mxu0 0.0
    %2142 = vmatpush1.msra.mxu0 0.0
    %2143 = vmatprep.subr.mxu0 0.0
    %2144 = vmatpush1.msra.mxu0 0.0
    %2145 = vmatprep.subr.mxu0 0.0
    %2146 = vmatpush1.msra.mxu0 0.0
    %2147 = vmatprep.subr.mxu0 0.0
    %2148 = vmatpush1.msra.mxu0 0.0
    %2149 = vmatprep.subr.mxu0 0.0
    %2150 = vmatpush1.msra.mxu0 0.0
    %2151 = vmatprep.subr.mxu0 0.0
    %2152 = vmatpush1.msra.mxu0 0.0
    %2153 = vmatprep.subr.mxu0 0.0
    %2154 = vmatpush1.msra.mxu0 0.0
    %2155 = vmatprep.subr.mxu0 0.0
    %2156 = vmatpush1.msra.mxu0 0.0
    %2157 = vmatprep.subr.mxu0 0.0
    %2158 = vmatpush1.msra.mxu0 0.0
    %2159 = vmatprep.subr.mxu0 0.0
    %2160 = vmatpush1.msra.mxu0 0.0
    %2161 = vmatprep.subr.mxu0 0.0
    %2162 = vmatpush1.msra.mxu0 0.0
    %2163 = vmatprep.subr.mxu0 0.0
    %2164 = vmatpush1.msra.mxu0 0.0
    %2165 = vmatprep.subr.mxu0 0.0
    %2166 = vmatpush1.msra.mxu0 0.0
    %2167 = vmatprep.subr.mxu0 0.0
    %2168 = vmatpush1.msra.mxu0 0.0
    %2169 = vmatprep.subr.mxu0 0.0
    %2170 = vmatpush1.msra.mxu0 0.0
    %2171 = vmatprep.subr.mxu0 0.0
    %2172 = vmatpush1.msra.mxu0 0.0
    %2173 = vmatprep.subr.mxu0 0.0
    %2174 = vmatpush1.msra.mxu0 0.0
    %2175 = vmatprep.subr.mxu0 0.0
    %2176 = vmatpush1.msra.mxu0 0.0
    %2177 = vmatprep.mubr.f32.mxu0 0.0
    %2178 = vmatmul.mubr.f32.gmra.mrb[0].mxu0 %v2109
    %v2179 = vpop.f32.mrb[0].mxu0
    %v2180 = vadd.f32 %v2037, %v2179
    %v2181 = vpop.f32.mrb[0].mxu0
    %2182 = vmatprep.mubr.f32.mxu0 0.0
    %2183 = vmatmul.mubr.f32.gmra.mrb[0].mxu0 %v2111
    %v2184 = vpop.f32.mrb[0].mxu0
    %v2185 = vadd.f32 %v2042, %v2184
    %v2186 = vpop.f32.mrb[0].mxu0
    %2187 = vdwg.mxu0
    %v2188 = vlaneseq
    %v2189 = vshrl.u32 %v2188, 7
    %v2190 = vsub.s32 2, %v2189
    %v2191 = vrot.slane %v300, %v2190
    %v2192 = vadd.f32 %v2180, %v2191
    %v2193 = vadd.f32 %v2185, %v2191
    %v2194 = vld [vmem:[%s10] sm:$0xff]
    %v2195 = vld [vmem:[%s10 + $0x8] sm:$0xff]
    %v2196 = vld [vmem:[%s10 + $0x10] sm:$0xff]
    %v2197 = vld [vmem:[%s10 + $0x18] sm:$0xff]
    %v2198 = vlaneseq
    %v2199 = vshrl.u32 %v2198, 7
    %v2200 = vsub.s32 3, %v2199
    %v2201 = vrot.slane %v300, %v2200
    %v2203 = vsel %vm378, %v2192, 0
    %v2206 = vsel %vm378, %v2193, 0
    %2208 = vmatprep.subr.mxu0 0.0
    %2209 = vmatpush1.msra.mxu0 %v2194
    %2210 = vmatprep.subr.mxu0 0.0
    %2211 = vmatpush1.msra.mxu0 %v2195
    %2212 = vmatprep.subr.mxu0 0.0
    %2213 = vmatpush1.msra.mxu0 %v2196
    %2214 = vmatprep.subr.mxu0 0.0
    %2215 = vmatpush1.msra.mxu0 %v2197
    %2216 = vmatprep.subr.mxu0 0.0
    %2217 = vmatpush1.msra.mxu0 0.0
    %2218 = vmatprep.subr.mxu0 0.0
    %2219 = vmatpush1.msra.mxu0 0.0
    %2220 = vmatprep.subr.mxu0 0.0
    %2221 = vmatpush1.msra.mxu0 0.0
    %2222 = vmatprep.subr.mxu0 0.0
    %2223 = vmatpush1.msra.mxu0 0.0
    %2224 = vmatprep.subr.mxu0 0.0
    %2225 = vmatpush1.msra.mxu0 0.0
    %2226 = vmatprep.subr.mxu0 0.0
    %2227 = vmatpush1.msra.mxu0 0.0
    %2228 = vmatprep.subr.mxu0 0.0
    %2229 = vmatpush1.msra.mxu0 0.0
    %2230 = vmatprep.subr.mxu0 0.0
    %2231 = vmatpush1.msra.mxu0 0.0
    %2232 = vmatprep.subr.mxu0 0.0
    %2233 = vmatpush1.msra.mxu0 0.0
    %2234 = vmatprep.subr.mxu0 0.0
    %2235 = vmatpush1.msra.mxu0 0.0
    %2236 = vmatprep.subr.mxu0 0.0
    %2237 = vmatpush1.msra.mxu0 0.0
    %2238 = vmatprep.subr.mxu0 0.0
    %2239 = vmatpush1.msra.mxu0 0.0
    %2240 = vmatprep.subr.mxu0 0.0
    %2241 = vmatpush1.msra.mxu0 0.0
    %2242 = vmatprep.subr.mxu0 0.0
    %2243 = vmatpush1.msra.mxu0 0.0
    %2244 = vmatprep.subr.mxu0 0.0
    %2245 = vmatpush1.msra.mxu0 0.0
    %2246 = vmatprep.subr.mxu0 0.0
    %2247 = vmatpush1.msra.mxu0 0.0
    %2248 = vmatprep.subr.mxu0 0.0
    %2249 = vmatpush1.msra.mxu0 0.0
    %2250 = vmatprep.subr.mxu0 0.0
    %2251 = vmatpush1.msra.mxu0 0.0
    %2252 = vmatprep.subr.mxu0 0.0
    %2253 = vmatpush1.msra.mxu0 0.0
    %2254 = vmatprep.subr.mxu0 0.0
    %2255 = vmatpush1.msra.mxu0 0.0
    %2256 = vmatprep.subr.mxu0 0.0
    %2257 = vmatpush1.msra.mxu0 0.0
    %2258 = vmatprep.subr.mxu0 0.0
    %2259 = vmatpush1.msra.mxu0 0.0
    %2260 = vmatprep.subr.mxu0 0.0
    %2261 = vmatpush1.msra.mxu0 0.0
    %2262 = vmatprep.subr.mxu0 0.0
    %2263 = vmatpush1.msra.mxu0 0.0
    %2264 = vmatprep.subr.mxu0 0.0
    %2265 = vmatpush1.msra.mxu0 0.0
    %2266 = vmatprep.subr.mxu0 0.0
    %2267 = vmatpush1.msra.mxu0 0.0
    %2268 = vmatprep.subr.mxu0 0.0
    %2269 = vmatpush1.msra.mxu0 0.0
    %2270 = vmatprep.subr.mxu0 0.0
    %2271 = vmatpush1.msra.mxu0 0.0
    %2272 = vmatprep.mubr.f32.mxu0 0.0
    %2273 = vmatmul.mubr.f32.gmra.mrb[0].mxu0 %v2203
    %v2274 = vpop.f32.mrb[0].mxu0
    %v2275 = vadd.f32 %v2201, %v2274
    %v2276 = vpop.f32.mrb[0].mxu0
    %2277 = vmatprep.mubr.f32.mxu0 0.0
    %2278 = vmatmul.mubr.f32.gmra.mrb[0].mxu0 %v2206
    %v2279 = vpop.f32.mrb[0].mxu0
    %v2280 = vadd.f32 %v2201, %v2279
    %v2281 = vpop.f32.mrb[0].mxu0
    %2282 = vdwg.mxu0
    %v2283 = vmul.f32 %v2275, %v2275
    %v2284 = vmul.f32 %v2280, %v2280
    %v2285 = vmul.f32 %v2275, %v2283
    %v2286 = vmul.f32 %v2280, %v2284
    %v2287 = vmul.f32 %v2285, 0.044715
    %v2288 = vmul.f32 %v2286, 0.044715
    %v2289 = vadd.f32 %v2275, %v2287
    %v2290 = vadd.f32 %v2280, %v2288
    %v2291 = vmul.f32 %v2289, 0.7978846
    %v2292 = vmul.f32 %v2290, 0.7978846
    %v2293 = vtanh.pop %v2291
    %v2294 = vtanh.pop %v2292
    %v2295 = vadd.f32 %v2293, 1.0
    %v2296 = vadd.f32 %v2294, 1.0
    %v2297 = vmul.f32 %v2295, 0.5
    %v2298 = vmul.f32 %v2296, 0.5
    %v2299 = vmul.f32 %v2275, %v2297
    %v2300 = vmul.f32 %v2280, %v2298
    %v2301 = vld [vmem:[%s11] sm:$0xff]
    %v2302 = vlaneseq
    %v2303 = vshrl.u32 %v2302, 7
    %v2304 = vsub.s32 4, %v2303
    %v2305 = vrot.slane %v300, %v2304
    %vm2306 = vcmask 64512
    %v2308 = vsel %vm2306, %v2299, 0
    %v2311 = vsel %vm2306, %v2300, 0
    %2313 = vmatprep.subr.mxu0 0.0
    %2314 = vmatpush1.msra.mxu0 %v2301
    %2315 = vmatprep.subr.mxu0 0.0
    %2316 = vmatpush1.msra.mxu0 0.0
    %2317 = vmatprep.subr.mxu0 0.0
    %2318 = vmatpush1.msra.mxu0 0.0
    %2319 = vmatprep.subr.mxu0 0.0
    %2320 = vmatpush1.msra.mxu0 0.0
    %2321 = vmatprep.subr.mxu0 0.0
    %2322 = vmatpush1.msra.mxu0 0.0
    %2323 = vmatprep.subr.mxu0 0.0
    %2324 = vmatpush1.msra.mxu0 0.0
    %2325 = vmatprep.subr.mxu0 0.0
    %2326 = vmatpush1.msra.mxu0 0.0
    %2327 = vmatprep.subr.mxu0 0.0
    %2328 = vmatpush1.msra.mxu0 0.0
    %2329 = vmatprep.subr.mxu0 0.0
    %2330 = vmatpush1.msra.mxu0 0.0
    %2331 = vmatprep.subr.mxu0 0.0
    %2332 = vmatpush1.msra.mxu0 0.0
    %2333 = vmatprep.subr.mxu0 0.0
    %2334 = vmatpush1.msra.mxu0 0.0
    %2335 = vmatprep.subr.mxu0 0.0
    %2336 = vmatpush1.msra.mxu0 0.0
    %2337 = vmatprep.subr.mxu0 0.0
    %2338 = vmatpush1.msra.mxu0 0.0
    %2339 = vmatprep.subr.mxu0 0.0
    %2340 = vmatpush1.msra.mxu0 0.0
    %2341 = vmatprep.subr.mxu0 0.0
    %2342 = vmatpush1.msra.mxu0 0.0
    %2343 = vmatprep.subr.mxu0 0.0
    %2344 = vmatpush1.msra.mxu0 0.0
    %2345 = vmatprep.subr.mxu0 0.0
    %2346 = vmatpush1.msra.mxu0 0.0
    %2347 = vmatprep.subr.mxu0 0.0
    %2348 = vmatpush1.msra.mxu0 0.0
    %2349 = vmatprep.subr.mxu0 0.0
    %2350 = vmatpush1.msra.mxu0 0.0
    %2351 = vmatprep.subr.mxu0 0.0
    %2352 = vmatpush1.msra.mxu0 0.0
    %2353 = vmatprep.subr.mxu0 0.0
    %2354 = vmatpush1.msra.mxu0 0.0
    %2355 = vmatprep.subr.mxu0 0.0
    %2356 = vmatpush1.msra.mxu0 0.0
    %2357 = vmatprep.subr.mxu0 0.0
    %2358 = vmatpush1.msra.mxu0 0.0
    %2359 = vmatprep.subr.mxu0 0.0
    %2360 = vmatpush1.msra.mxu0 0.0
    %2361 = vmatprep.subr.mxu0 0.0
    %2362 = vmatpush1.msra.mxu0 0.0
    %2363 = vmatprep.subr.mxu0 0.0
    %2364 = vmatpush1.msra.mxu0 0.0
    %2365 = vmatprep.subr.mxu0 0.0
    %2366 = vmatpush1.msra.mxu0 0.0
    %2367 = vmatprep.subr.mxu0 0.0
    %2368 = vmatpush1.msra.mxu0 0.0
    %2369 = vmatprep.subr.mxu0 0.0
    %2370 = vmatpush1.msra.mxu0 0.0
    %2371 = vmatprep.subr.mxu0 0.0
    %2372 = vmatpush1.msra.mxu0 0.0
    %2373 = vmatprep.subr.mxu0 0.0
    %2374 = vmatpush1.msra.mxu0 0.0
    %2375 = vmatprep.subr.mxu0 0.0
    %2376 = vmatpush1.msra.mxu0 0.0
    %2377 = vmatprep.mubr.f32.mxu0 0.0
    %2378 = vmatmul.mubr.f32.gmra.mrb[0].mxu0 %v2308
    %v2379 = vpop.f32.mrb[0].mxu0
    %v2380 = vadd.f32 %v2305, %v2379
    %v2381 = vpop.f32.mrb[0].mxu0
    %2382 = vmatprep.mubr.f32.mxu0 0.0
    %2383 = vmatmul.mubr.f32.gmra.mrb[0].mxu0 %v2311
    %v2384 = vpop.f32.mrb[0].mxu0
    %v2385 = vadd.f32 %v2305, %v2384
    %v2386 = vpop.f32.mrb[0].mxu0
    %2387 = vdwg.mxu0
    %v2388 = vadd.f32 %v2380, %v2192
    %v2389 = vadd.f32 %v2385, %v2193
    %v2390 = vadd.f32 %v2388, %v360
    %v2391 = vadd.f32 %v2389, %v375
    %v2392 = vsel %vm378, %v2390, 0.0
    %2393 = vadd.xlane.f32.xlu0 %v2392
    %v2394 = vpop.xlane.xlu0 %2393
    %v2395 = vsel %vm382, %v2391, 0.0
    %2396 = vadd.xlane.f32.xlu0 %v2395
    %v2397 = vpop.xlane.xlu0 %2396
    %v2398 = vmul.f32 %v2394, %v386
    %v2399 = vmul.f32 %v2397, %v386
    %v2400 = vsub.f32 %v2390, %v2398
    %v2401 = vsub.f32 %v2391, %v2399
    %v2402 = vmul.f32 %v2400, %v2400
    %v2403 = vmul.f32 %v2401, %v2401
    %v2404 = vsel %vm378, %v2402, 0.0
    %2405 = vadd.xlane.f32.xlu0 %v2404
    %v2406 = vpop.xlane.xlu0 %2405
    %v2407 = vsel %vm382, %v2403, 0.0
    %2408 = vadd.xlane.f32.xlu0 %v2407
    %v2409 = vpop.xlane.xlu0 %2408
    %v2410 = vmul.f32 %v2406, %v386
    %v2411 = vmul.f32 %v2409, %v386
    %v2412 = vadd.f32 %v2410, 1e-12
    %v2413 = vadd.f32 %v2411, 1e-12
    %v2414 = vrsqrt.pop %v2412
    %v2415 = vrsqrt.pop %v2413
    %v2416 = vmul.f32 %v2400, %v2414
    %v2417 = vmul.f32 %v2401, %v2415
    %v2418 = vlaneseq
    %v2419 = vshrl.u32 %v2418, 7
    %v2420 = vsub.s32 5, %v2419
    %v2421 = vrot.slane %v300, %v2420
    %v2422 = vmul.f32 %v2416, %v2421
    %v2423 = vmul.f32 %v2417, %v2421
    %v2424 = vlaneseq
    %v2425 = vshrl.u32 %v2424, 7
    %v2426 = vsub.s32 6, %v2425
    %v2427 = vrot.slane %v300, %v2426
    %v2428 = vadd.f32 %v2422, %v2427
    %v2429 = vadd.f32 %v2423, %v2427
    %v2430 = vld [vmem:[%s7] sm:$0xff]
    %v2431 = vld [vmem:[%s7 + $0x8] sm:$0xff]
    %v2432 = vld [vmem:[%s7 + $0x10] sm:$0xff]
    %v2433 = vld [vmem:[%s7 + $0x18] sm:$0xff]
    %v2434 = vld [vmem:[%s8] sm:$0x1]
    %v2436 = vlaneseq
    %v2437 = vshrl.u32 %v2436, 7
    %v2438 = vsub.s32 0, %v2437
    %v2439 = vrot.slane %v2434, %v2438
    %v2442 = vsel %vm378, %v2428, 0
    %v2445 = vsel %vm378, %v2429, 0
    %2447 = vmatprep.subr.mxu0 0.0
    %2448 = vmatpush1.msra.mxu0 %v2430
    %2449 = vmatprep.subr.mxu0 0.0
    %2450 = vmatpush1.msra.mxu0 %v2431
    %2451 = vmatprep.subr.mxu0 0.0
    %2452 = vmatpush1.msra.mxu0 %v2432
    %2453 = vmatprep.subr.mxu0 0.0
    %2454 = vmatpush1.msra.mxu0 %v2433
    %2455 = vmatprep.subr.mxu0 0.0
    %2456 = vmatpush1.msra.mxu0 0.0
    %2457 = vmatprep.subr.mxu0 0.0
    %2458 = vmatpush1.msra.mxu0 0.0
    %2459 = vmatprep.subr.mxu0 0.0
    %2460 = vmatpush1.msra.mxu0 0.0
    %2461 = vmatprep.subr.mxu0 0.0
    %2462 = vmatpush1.msra.mxu0 0.0
    %2463 = vmatprep.subr.mxu0 0.0
    %2464 = vmatpush1.msra.mxu0 0.0
    %2465 = vmatprep.subr.mxu0 0.0
    %2466 = vmatpush1.msra.mxu0 0.0
    %2467 = vmatprep.subr.mxu0 0.0
    %2468 = vmatpush1.msra.mxu0 0.0
    %2469 = vmatprep.subr.mxu0 0.0
    %2470 = vmatpush1.msra.mxu0 0.0
    %2471 = vmatprep.subr.mxu0 0.0
    %2472 = vmatpush1.msra.mxu0 0.0
    %2473 = vmatprep.subr.mxu0 0.0
    %2474 = vmatpush1.msra.mxu0 0.0
    %2475 = vmatprep.subr.mxu0 0.0
    %2476 = vmatpush1.msra.mxu0 0.0
    %2477 = vmatprep.subr.mxu0 0.0
    %2478 = vmatpush1.msra.mxu0 0.0
    %2479 = vmatprep.subr.mxu0 0.0
    %2480 = vmatpush1.msra.mxu0 0.0
    %2481 = vmatprep.subr.mxu0 0.0
    %2482 = vmatpush1.msra.mxu0 0.0
    %2483 = vmatprep.subr.mxu0 0.0
    %2484 = vmatpush1.msra.mxu0 0.0
    %2485 = vmatprep.subr.mxu0 0.0
    %2486 = vmatpush1.msra.mxu0 0.0
    %2487 = vmatprep.subr.mxu0 0.0
    %2488 = vmatpush1.msra.mxu0 0.0
    %2489 = vmatprep.subr.mxu0 0.0
    %2490 = vmatpush1.msra.mxu0 0.0
    %2491 = vmatprep.subr.mxu0 0.0
    %2492 = vmatpush1.msra.mxu0 0.0
    %2493 = vmatprep.subr.mxu0 0.0
    %2494 = vmatpush1.msra.mxu0 0.0
    %2495 = vmatprep.subr.mxu0 0.0
    %2496 = vmatpush1.msra.mxu0 0.0
    %2497 = vmatprep.subr.mxu0 0.0
    %2498 = vmatpush1.msra.mxu0 0.0
    %2499 = vmatprep.subr.mxu0 0.0
    %2500 = vmatpush1.msra.mxu0 0.0
    %2501 = vmatprep.subr.mxu0 0.0
    %2502 = vmatpush1.msra.mxu0 0.0
    %2503 = vmatprep.subr.mxu0 0.0
    %2504 = vmatpush1.msra.mxu0 0.0
    %2505 = vmatprep.subr.mxu0 0.0
    %2506 = vmatpush1.msra.mxu0 0.0
    %2507 = vmatprep.subr.mxu0 0.0
    %2508 = vmatpush1.msra.mxu0 0.0
    %2509 = vmatprep.subr.mxu0 0.0
    %2510 = vmatpush1.msra.mxu0 0.0
    %2511 = vmatprep.mubr.f32.mxu0 0.0
    %2512 = vmatmul.mubr.f32.gmra.mrb[0].mxu0 %v2442
    %v2513 = vpop.f32.mrb[0].mxu0
    %v2514 = vadd.f32 %v2439, %v2513
    %v2515 = vpop.f32.mrb[0].mxu0
    %2516 = vmatprep.mubr.f32.mxu0 0.0
    %2517 = vmatmul.mubr.f32.gmra.mrb[0].mxu0 %v2445
    %v2518 = vpop.f32.mrb[0].mxu0
    %v2519 = vadd.f32 %v2439, %v2518
    %v2520 = vpop.f32.mrb[0].mxu0
    %2521 = vdwg.mxu0
    %v2522 = vmul.f32 %v2514, %v2514
    %v2523 = vmul.f32 %v2519, %v2519
    %v2524 = vmul.f32 %v2514, %v2522
    %v2525 = vmul.f32 %v2519, %v2523
    %v2526 = vmul.f32 %v2524, 0.044715
    %v2527 = vmul.f32 %v2525, 0.044715
    %v2528 = vadd.f32 %v2514, %v2526
    %v2529 = vadd.f32 %v2519, %v2527
    %v2530 = vmul.f32 %v2528, 0.7978846
    %v2531 = vmul.f32 %v2529, 0.7978846
    %v2532 = vtanh.pop %v2530
    %v2533 = vtanh.pop %v2531
    %v2534 = vadd.f32 %v2532, 1.0
    %v2535 = vadd.f32 %v2533, 1.0
    %v2536 = vmul.f32 %v2534, 0.5
    %v2537 = vmul.f32 %v2535, 0.5
    %v2538 = vmul.f32 %v2514, %v2536
    %v2539 = vmul.f32 %v2519, %v2537
    %v2540 = vld [vmem:[%s9] sm:$0xff]
    %v2541 = vld [vmem:[%s9 + $0x8] sm:$0xff]
    %v2542 = vld [vmem:[%s9 + $0x10] sm:$0xff]
    %v2543 = vld [vmem:[%s9 + $0x18] sm:$0xff]
    %v2544 = vld [vmem:[%s9 + $0x20] sm:$0xff]
    %v2545 = vld [vmem:[%s9 + $0x28] sm:$0xff]
    %v2546 = vld [vmem:[%s9 + $0x30] sm:$0xff]
    %v2547 = vld [vmem:[%s9 + $0x38] sm:$0xff]
    %v2548 = vlaneseq
    %v2549 = vshrl.u32 %v2548, 7
    %v2550 = vsub.s32 7, %v2549
    %v2551 = vrot.slane %v300, %v2550
    %v2553 = vsel %vm79, %v2538, 0
    %v2556 = vsel %vm79, %v2539, 0
    %2558 = vmatprep.subr.mxu0 0.0
    %2559 = vmatpush1.msra.mxu0 %v2540
    %2560 = vmatprep.subr.mxu0 0.0
    %2561 = vmatpush1.msra.mxu0 %v2541
    %2562 = vmatprep.subr.mxu0 0.0
    %2563 = vmatpush1.msra.mxu0 %v2542
    %2564 = vmatprep.subr.mxu0 0.0
    %2565 = vmatpush1.msra.mxu0 %v2543
    %2566 = vmatprep.subr.mxu0 0.0
    %2567 = vmatpush1.msra.mxu0 %v2544
    %2568 = vmatprep.subr.mxu0 0.0
    %2569 = vmatpush1.msra.mxu0 %v2545
    %2570 = vmatprep.subr.mxu0 0.0
    %2571 = vmatpush1.msra.mxu0 %v2546
    %2572 = vmatprep.subr.mxu0 0.0
    %2573 = vmatpush1.msra.mxu0 %v2547
    %2574 = vmatprep.subr.mxu0 0.0
    %2575 = vmatpush1.msra.mxu0 0.0
    %2576 = vmatprep.subr.mxu0 0.0
    %2577 = vmatpush1.msra.mxu0 0.0
    %2578 = vmatprep.subr.mxu0 0.0
    %2579 = vmatpush1.msra.mxu0 0.0
    %2580 = vmatprep.subr.mxu0 0.0
    %2581 = vmatpush1.msra.mxu0 0.0
    %2582 = vmatprep.subr.mxu0 0.0
    %2583 = vmatpush1.msra.mxu0 0.0
    %2584 = vmatprep.subr.mxu0 0.0
    %2585 = vmatpush1.msra.mxu0 0.0
    %2586 = vmatprep.subr.mxu0 0.0
    %2587 = vmatpush1.msra.mxu0 0.0
    %2588 = vmatprep.subr.mxu0 0.0
    %2589 = vmatpush1.msra.mxu0 0.0
    %2590 = vmatprep.subr.mxu0 0.0
    %2591 = vmatpush1.msra.mxu0 0.0
    %2592 = vmatprep.subr.mxu0 0.0
    %2593 = vmatpush1.msra.mxu0 0.0
    %2594 = vmatprep.subr.mxu0 0.0
    %2595 = vmatpush1.msra.mxu0 0.0
    %2596 = vmatprep.subr.mxu0 0.0
    %2597 = vmatpush1.msra.mxu0 0.0
    %2598 = vmatprep.subr.mxu0 0.0
    %2599 = vmatpush1.msra.mxu0 0.0
    %2600 = vmatprep.subr.mxu0 0.0
    %2601 = vmatpush1.msra.mxu0 0.0
    %2602 = vmatprep.subr.mxu0 0.0
    %2603 = vmatpush1.msra.mxu0 0.0
    %2604 = vmatprep.subr.mxu0 0.0
    %2605 = vmatpush1.msra.mxu0 0.0
    %2606 = vmatprep.subr.mxu0 0.0
    %2607 = vmatpush1.msra.mxu0 0.0
    %2608 = vmatprep.subr.mxu0 0.0
    %2609 = vmatpush1.msra.mxu0 0.0
    %2610 = vmatprep.subr.mxu0 0.0
    %2611 = vmatpush1.msra.mxu0 0.0
    %2612 = vmatprep.subr.mxu0 0.0
    %2613 = vmatpush1.msra.mxu0 0.0
    %2614 = vmatprep.subr.mxu0 0.0
    %2615 = vmatpush1.msra.mxu0 0.0
    %2616 = vmatprep.subr.mxu0 0.0
    %2617 = vmatpush1.msra.mxu0 0.0
    %2618 = vmatprep.subr.mxu0 0.0
    %2619 = vmatpush1.msra.mxu0 0.0
    %2620 = vmatprep.subr.mxu0 0.0
    %2621 = vmatpush1.msra.mxu0 0.0
    %2622 = vmatprep.mubr.f32.mxu0 0.0
    %2623 = vmatmul.mubr.f32.gmra.mrb[0].mxu0 %v2553
    %v2624 = vpop.f32.mrb[0].mxu0
    %v2625 = vadd.f32 %v2551, %v2624
    %v2626 = vpop.f32.mrb[0].mxu0
    %2627 = vmatprep.mubr.f32.mxu0 0.0
    %2628 = vmatmul.mubr.f32.gmra.mrb[0].mxu0 %v2556
    %v2629 = vpop.f32.mrb[0].mxu0
    %v2630 = vadd.f32 %v2551, %v2629
    %v2631 = vpop.f32.mrb[0].mxu0
    %2632 = vdwg.mxu0
    %s2633 = scalar_lea.vmem %s10, 32
    %v2634 = vld [vmem:[%s2633] sm:$0xff]
    %v2635 = vld [vmem:[%s2633 + $0x8] sm:$0xff]
    %v2636 = vld [vmem:[%s2633 + $0x10] sm:$0xff]
    %v2637 = vld [vmem:[%s2633 + $0x18] sm:$0xff]
    %v2638 = vlaneseq
    %v2639 = vshrl.u32 %v2638, 7
    %v2640 = vsub.s32 0, %v2639
    %v2641 = vrot.slane %v301, %v2640
    %v2643 = vsel %vm378, %v2625, 0
    %v2646 = vsel %vm378, %v2630, 0
    %2648 = vmatprep.subr.mxu0 0.0
    %2649 = vmatpush1.msra.mxu0 %v2634
    %2650 = vmatprep.subr.mxu0 0.0
    %2651 = vmatpush1.msra.mxu0 %v2635
    %2652 = vmatprep.subr.mxu0 0.0
    %2653 = vmatpush1.msra.mxu0 %v2636
    %2654 = vmatprep.subr.mxu0 0.0
    %2655 = vmatpush1.msra.mxu0 %v2637
    %2656 = vmatprep.subr.mxu0 0.0
    %2657 = vmatpush1.msra.mxu0 0.0
    %2658 = vmatprep.subr.mxu0 0.0
    %2659 = vmatpush1.msra.mxu0 0.0
    %2660 = vmatprep.subr.mxu0 0.0
    %2661 = vmatpush1.msra.mxu0 0.0
    %2662 = vmatprep.subr.mxu0 0.0
    %2663 = vmatpush1.msra.mxu0 0.0
    %2664 = vmatprep.subr.mxu0 0.0
    %2665 = vmatpush1.msra.mxu0 0.0
    %2666 = vmatprep.subr.mxu0 0.0
    %2667 = vmatpush1.msra.mxu0 0.0
    %2668 = vmatprep.subr.mxu0 0.0
    %2669 = vmatpush1.msra.mxu0 0.0
    %2670 = vmatprep.subr.mxu0 0.0
    %2671 = vmatpush1.msra.mxu0 0.0
    %2672 = vmatprep.subr.mxu0 0.0
    %2673 = vmatpush1.msra.mxu0 0.0
    %2674 = vmatprep.subr.mxu0 0.0
    %2675 = vmatpush1.msra.mxu0 0.0
    %2676 = vmatprep.subr.mxu0 0.0
    %2677 = vmatpush1.msra.mxu0 0.0
    %2678 = vmatprep.subr.mxu0 0.0
    %2679 = vmatpush1.msra.mxu0 0.0
    %2680 = vmatprep.subr.mxu0 0.0
    %2681 = vmatpush1.msra.mxu0 0.0
    %2682 = vmatprep.subr.mxu0 0.0
    %2683 = vmatpush1.msra.mxu0 0.0
    %2684 = vmatprep.subr.mxu0 0.0
    %2685 = vmatpush1.msra.mxu0 0.0
    %2686 = vmatprep.subr.mxu0 0.0
    %2687 = vmatpush1.msra.mxu0 0.0
    %2688 = vmatprep.subr.mxu0 0.0
    %2689 = vmatpush1.msra.mxu0 0.0
    %2690 = vmatprep.subr.mxu0 0.0
    %2691 = vmatpush1.msra.mxu0 0.0
    %2692 = vmatprep.subr.mxu0 0.0
    %2693 = vmatpush1.msra.mxu0 0.0
    %2694 = vmatprep.subr.mxu0 0.0
    %2695 = vmatpush1.msra.mxu0 0.0
    %2696 = vmatprep.subr.mxu0 0.0
    %2697 = vmatpush1.msra.mxu0 0.0
    %2698 = vmatprep.subr.mxu0 0.0
    %2699 = vmatpush1.msra.mxu0 0.0
    %2700 = vmatprep.subr.mxu0 0.0
    %2701 = vmatpush1.msra.mxu0 0.0
    %2702 = vmatprep.subr.mxu0 0.0
    %2703 = vmatpush1.msra.mxu0 0.0
    %2704 = vmatprep.subr.mxu0 0.0
    %2705 = vmatpush1.msra.mxu0 0.0
    %2706 = vmatprep.subr.mxu0 0.0
    %2707 = vmatpush1.msra.mxu0 0.0
    %2708 = vmatprep.subr.mxu0 0.0
    %2709 = vmatpush1.msra.mxu0 0.0
    %2710 = vmatprep.subr.mxu0 0.0
    %2711 = vmatpush1.msra.mxu0 0.0
    %2712 = vmatprep.mubr.f32.mxu0 0.0
    %2713 = vmatmul.mubr.f32.gmra.mrb[0].mxu0 %v2643
    %v2714 = vpop.f32.mrb[0].mxu0
    %v2715 = vadd.f32 %v2641, %v2714
    %v2716 = vpop.f32.mrb[0].mxu0
    %2717 = vmatprep.mubr.f32.mxu0 0.0
    %2718 = vmatmul.mubr.f32.gmra.mrb[0].mxu0 %v2646
    %v2719 = vpop.f32.mrb[0].mxu0
    %v2720 = vadd.f32 %v2641, %v2719
    %v2721 = vpop.f32.mrb[0].mxu0
    %2722 = vdwg.mxu0
    %v2723 = vmul.f32 %v2715, %v2715
    %v2724 = vmul.f32 %v2720, %v2720
    %v2725 = vmul.f32 %v2715, %v2723
    %v2726 = vmul.f32 %v2720, %v2724
    %v2727 = vmul.f32 %v2725, 0.044715
    %v2728 = vmul.f32 %v2726, 0.044715
    %v2729 = vadd.f32 %v2715, %v2727
    %v2730 = vadd.f32 %v2720, %v2728
    %v2731 = vmul.f32 %v2729, 0.7978846
    %v2732 = vmul.f32 %v2730, 0.7978846
    %v2733 = vtanh.pop %v2731
    %v2734 = vtanh.pop %v2732
    %v2735 = vadd.f32 %v2733, 1.0
    %v2736 = vadd.f32 %v2734, 1.0
    %v2737 = vmul.f32 %v2735, 0.5
    %v2738 = vmul.f32 %v2736, 0.5
    %v2739 = vmul.f32 %v2715, %v2737
    %v2740 = vmul.f32 %v2720, %v2738
    %s2741 = scalar_lea.vmem %s11, 8
    %v2742 = vld [vmem:[%s2741] sm:$0xff]
    %v2743 = vlaneseq
    %v2744 = vshrl.u32 %v2743, 7
    %v2745 = vsub.s32 1, %v2744
    %v2746 = vrot.slane %v301, %v2745
    %v2748 = vsel %vm2306, %v2739, 0
    %v2751 = vsel %vm2306, %v2740, 0
    %2753 = vmatprep.subr.mxu0 0.0
    %2754 = vmatpush1.msra.mxu0 %v2742
    %2755 = vmatprep.subr.mxu0 0.0
    %2756 = vmatpush1.msra.mxu0 0.0
    %2757 = vmatprep.subr.mxu0 0.0
    %2758 = vmatpush1.msra.mxu0 0.0
    %2759 = vmatprep.subr.mxu0 0.0
    %2760 = vmatpush1.msra.mxu0 0.0
    %2761 = vmatprep.subr.mxu0 0.0
    %2762 = vmatpush1.msra.mxu0 0.0
    %2763 = vmatprep.subr.mxu0 0.0
    %2764 = vmatpush1.msra.mxu0 0.0
    %2765 = vmatprep.subr.mxu0 0.0
    %2766 = vmatpush1.msra.mxu0 0.0
    %2767 = vmatprep.subr.mxu0 0.0
    %2768 = vmatpush1.msra.mxu0 0.0
    %2769 = vmatprep.subr.mxu0 0.0
    %2770 = vmatpush1.msra.mxu0 0.0
    %2771 = vmatprep.subr.mxu0 0.0
    %2772 = vmatpush1.msra.mxu0 0.0
    %2773 = vmatprep.subr.mxu0 0.0
    %2774 = vmatpush1.msra.mxu0 0.0
    %2775 = vmatprep.subr.mxu0 0.0
    %2776 = vmatpush1.msra.mxu0 0.0
    %2777 = vmatprep.subr.mxu0 0.0
    %2778 = vmatpush1.msra.mxu0 0.0
    %2779 = vmatprep.subr.mxu0 0.0
    %2780 = vmatpush1.msra.mxu0 0.0
    %2781 = vmatprep.subr.mxu0 0.0
    %2782 = vmatpush1.msra.mxu0 0.0
    %2783 = vmatprep.subr.mxu0 0.0
    %2784 = vmatpush1.msra.mxu0 0.0
    %2785 = vmatprep.subr.mxu0 0.0
    %2786 = vmatpush1.msra.mxu0 0.0
    %2787 = vmatprep.subr.mxu0 0.0
    %2788 = vmatpush1.msra.mxu0 0.0
    %2789 = vmatprep.subr.mxu0 0.0
    %2790 = vmatpush1.msra.mxu0 0.0
    %2791 = vmatprep.subr.mxu0 0.0
    %2792 = vmatpush1.msra.mxu0 0.0
    %2793 = vmatprep.subr.mxu0 0.0
    %2794 = vmatpush1.msra.mxu0 0.0
    %2795 = vmatprep.subr.mxu0 0.0
    %2796 = vmatpush1.msra.mxu0 0.0
    %2797 = vmatprep.subr.mxu0 0.0
    %2798 = vmatpush1.msra.mxu0 0.0
    %2799 = vmatprep.subr.mxu0 0.0
    %2800 = vmatpush1.msra.mxu0 0.0
    %2801 = vmatprep.subr.mxu0 0.0
    %2802 = vmatpush1.msra.mxu0 0.0
    %2803 = vmatprep.subr.mxu0 0.0
    %2804 = vmatpush1.msra.mxu0 0.0
    %2805 = vmatprep.subr.mxu0 0.0
    %2806 = vmatpush1.msra.mxu0 0.0
    %2807 = vmatprep.subr.mxu0 0.0
    %2808 = vmatpush1.msra.mxu0 0.0
    %2809 = vmatprep.subr.mxu0 0.0
    %2810 = vmatpush1.msra.mxu0 0.0
    %2811 = vmatprep.subr.mxu0 0.0
    %2812 = vmatpush1.msra.mxu0 0.0
    %2813 = vmatprep.subr.mxu0 0.0
    %2814 = vmatpush1.msra.mxu0 0.0
    %2815 = vmatprep.subr.mxu0 0.0
    %2816 = vmatpush1.msra.mxu0 0.0
    %2817 = vmatprep.mubr.f32.mxu0 0.0
    %2818 = vmatmul.mubr.f32.gmra.mrb[0].mxu0 %v2748
    %v2819 = vpop.f32.mrb[0].mxu0
    %v2820 = vadd.f32 %v2746, %v2819
    %v2821 = vpop.f32.mrb[0].mxu0
    %2822 = vmatprep.mubr.f32.mxu0 0.0
    %2823 = vmatmul.mubr.f32.gmra.mrb[0].mxu0 %v2751
    %v2824 = vpop.f32.mrb[0].mxu0
    %v2825 = vadd.f32 %v2746, %v2824
    %v2826 = vpop.f32.mrb[0].mxu0
    %2827 = vdwg.mxu0
    %v2828 = vadd.f32 %v2820, %v2625
    %v2829 = vadd.f32 %v2825, %v2630
    %v2830 = vadd.f32 %v2828, %v2390
    %v2831 = vadd.f32 %v2829, %v2391
    %s2832 = scalar_lea.vmem %s12, 16
    %v2833 = vld [vmem:[%s2832] sm:$0xff]
    %v2834 = vld [vmem:[%s2832 + $0x8] sm:$0x3]
    %v2835 = vsel %vm378, %v2830, 0.0
    %2836 = vadd.xlane.f32.xlu0 %v2835
    %v2837 = vpop.xlane.xlu0 %2836
    %v2838 = vsel %vm382, %v2831, 0.0
    %2839 = vadd.xlane.f32.xlu0 %v2838
    %v2840 = vpop.xlane.xlu0 %2839
    %v2841 = vmul.f32 %v2837, %v386
    %v2842 = vmul.f32 %v2840, %v386
    %v2843 = vsub.f32 %v2830, %v2841
    %v2844 = vsub.f32 %v2831, %v2842
    %v2845 = vmul.f32 %v2843, %v2843
    %v2846 = vmul.f32 %v2844, %v2844
    %v2847 = vsel %vm378, %v2845, 0.0
    %2848 = vadd.xlane.f32.xlu0 %v2847
    %v2849 = vpop.xlane.xlu0 %2848
    %v2850 = vsel %vm382, %v2846, 0.0
    %2851 = vadd.xlane.f32.xlu0 %v2850
    %v2852 = vpop.xlane.xlu0 %2851
    %v2853 = vmul.f32 %v2849, %v386
    %v2854 = vmul.f32 %v2852, %v386
    %v2855 = vadd.f32 %v2853, 1e-12
    %v2856 = vadd.f32 %v2854, 1e-12
    %v2857 = vrsqrt.pop %v2855
    %v2858 = vrsqrt.pop %v2856
    %v2859 = vmul.f32 %v2843, %v2857
    %v2860 = vmul.f32 %v2844, %v2858
    %v2861 = vlaneseq
    %v2862 = vshrl.u32 %v2861, 7
    %v2863 = vsub.s32 0, %v2862
    %v2864 = vrot.slane %v2833, %v2863
    %v2865 = vmul.f32 %v2859, %v2864
    %v2866 = vmul.f32 %v2860, %v2864
    %v2867 = vlaneseq
    %v2868 = vshrl.u32 %v2867, 7
    %v2869 = vsub.s32 1, %v2868
    %v2870 = vrot.slane %v2833, %v2869
    %v2871 = vadd.f32 %v2865, %v2870
    %v2872 = vadd.f32 %v2866, %v2870
    %s2873 = scalar_lea.vmem %s4, 32
    %v2874 = vld [vmem:[%s2873] sm:$0xff]
    %v2875 = vld [vmem:[%s2873 + $0x8] sm:$0xff]
    %v2876 = vld [vmem:[%s2873 + $0x10] sm:$0xff]
    %v2877 = vld [vmem:[%s2873 + $0x18] sm:$0xff]
    %s2878 = scalar_lea.vmem %s5, 1
    %v2879 = vld [vmem:[%s2878] sm:$0x1]
    %v2881 = vlaneseq
    %v2882 = vshrl.u32 %v2881, 7
    %v2883 = vsub.s32 0, %v2882
    %v2884 = vrot.slane %v2879, %v2883
    %v2887 = vsel %vm378, %v2871, 0
    %v2890 = vsel %vm378, %v2872, 0
    %2892 = vmatprep.subr.mxu0 0.0
    %2893 = vmatpush1.msra.mxu0 %v2874
    %2894 = vmatprep.subr.mxu0 0.0
    %2895 = vmatpush1.msra.mxu0 %v2875
    %2896 = vmatprep.subr.mxu0 0.0
    %2897 = vmatpush1.msra.mxu0 %v2876
    %2898 = vmatprep.subr.mxu0 0.0
    %2899 = vmatpush1.msra.mxu0 %v2877
    %2900 = vmatprep.subr.mxu0 0.0
    %2901 = vmatpush1.msra.mxu0 0.0
    %2902 = vmatprep.subr.mxu0 0.0
    %2903 = vmatpush1.msra.mxu0 0.0
    %2904 = vmatprep.subr.mxu0 0.0
    %2905 = vmatpush1.msra.mxu0 0.0
    %2906 = vmatprep.subr.mxu0 0.0
    %2907 = vmatpush1.msra.mxu0 0.0
    %2908 = vmatprep.subr.mxu0 0.0
    %2909 = vmatpush1.msra.mxu0 0.0
    %2910 = vmatprep.subr.mxu0 0.0
    %2911 = vmatpush1.msra.mxu0 0.0
    %2912 = vmatprep.subr.mxu0 0.0
    %2913 = vmatpush1.msra.mxu0 0.0
    %2914 = vmatprep.subr.mxu0 0.0
    %2915 = vmatpush1.msra.mxu0 0.0
    %2916 = vmatprep.subr.mxu0 0.0
    %2917 = vmatpush1.msra.mxu0 0.0
    %2918 = vmatprep.subr.mxu0 0.0
    %2919 = vmatpush1.msra.mxu0 0.0
    %2920 = vmatprep.subr.mxu0 0.0
    %2921 = vmatpush1.msra.mxu0 0.0
    %2922 = vmatprep.subr.mxu0 0.0
    %2923 = vmatpush1.msra.mxu0 0.0
    %2924 = vmatprep.subr.mxu0 0.0
    %2925 = vmatpush1.msra.mxu0 0.0
    %2926 = vmatprep.subr.mxu0 0.0
    %2927 = vmatpush1.msra.mxu0 0.0
    %2928 = vmatprep.subr.mxu0 0.0
    %2929 = vmatpush1.msra.mxu0 0.0
    %2930 = vmatprep.subr.mxu0 0.0
    %2931 = vmatpush1.msra.mxu0 0.0
    %2932 = vmatprep.subr.mxu0 0.0
    %2933 = vmatpush1.msra.mxu0 0.0
    %2934 = vmatprep.subr.mxu0 0.0
    %2935 = vmatpush1.msra.mxu0 0.0
    %2936 = vmatprep.subr.mxu0 0.0
    %2937 = vmatpush1.msra.mxu0 0.0
    %2938 = vmatprep.subr.mxu0 0.0
    %2939 = vmatpush1.msra.mxu0 0.0
    %2940 = vmatprep.subr.mxu0 0.0
    %2941 = vmatpush1.msra.mxu0 0.0
    %2942 = vmatprep.subr.mxu0 0.0
    %2943 = vmatpush1.msra.mxu0 0.0
    %2944 = vmatprep.subr.mxu0 0.0
    %2945 = vmatpush1.msra.mxu0 0.0
    %2946 = vmatprep.subr.mxu0 0.0
    %2947 = vmatpush1.msra.mxu0 0.0
    %2948 = vmatprep.subr.mxu0 0.0
    %2949 = vmatpush1.msra.mxu0 0.0
    %2950 = vmatprep.subr.mxu0 0.0
    %2951 = vmatpush1.msra.mxu0 0.0
    %2952 = vmatprep.subr.mxu0 0.0
    %2953 = vmatpush1.msra.mxu0 0.0
    %2954 = vmatprep.subr.mxu0 0.0
    %2955 = vmatpush1.msra.mxu0 0.0
    %2956 = vmatprep.mubr.f32.mxu0 0.0
    %2957 = vmatmul.mubr.f32.gmra.mrb[0].mxu0 %v2887
    %v2958 = vpop.f32.mrb[0].mxu0
    %v2959 = vadd.f32 %v2884, %v2958
    %v2960 = vpop.f32.mrb[0].mxu0
    %2961 = vmatprep.mubr.f32.mxu0 0.0
    %2962 = vmatmul.mubr.f32.gmra.mrb[0].mxu0 %v2890
    %v2963 = vpop.f32.mrb[0].mxu0
    %v2964 = vadd.f32 %v2884, %v2963
    %v2965 = vpop.f32.mrb[0].mxu0
    %2966 = vdwg.mxu0
    %v2969 = vcombine.high %v2959, %v2959
    %v2971 = vunpack.c.l.s4 1966171168
    %v2972 = vunpack.c.0.s8 %v2971
    %v2973 = vlaneseq
    %v2974 = vshrl.u32 %v2973, 7
    %v2975 = vsub.s32 %v2972, %v2974
    %v2976 = vrot.slane %v2959, %v2975
    %v2978 = vunpack.c.l.s4 1966171168
    %v2979 = vunpack.c.0.s8 %v2978
    %v2980 = vlaneseq
    %v2981 = vshrl.u32 %v2980, 7
    %v2982 = vsub.s32 %v2979, %v2981
    %v2983 = vrot.slane %v2969, %v2982
    %v2984 = vcombine.high %v2976, %v2976
    %v2985 = vcombine.high %v2983, %v2983
    %v2987 = vunpack.c.l.s4 1966171168
    %v2988 = vunpack.c.0.s8 %v2987
    %v2989 = vlaneseq
    %v2990 = vshrl.u32 %v2989, 7
    %v2991 = vsub.s32 %v2988, %v2990
    %v2992 = vrot.slane %v2976, %v2991
    %v2994 = vunpack.c.l.s4 1966171168
    %v2995 = vunpack.c.0.s8 %v2994
    %v2996 = vlaneseq
    %v2997 = vshrl.u32 %v2996, 7
    %v2998 = vsub.s32 %v2995, %v2997
    %v2999 = vrot.slane %v2983, %v2998
    %v3001 = vunpack.c.l.s4 1966171168
    %v3002 = vunpack.c.0.s8 %v3001
    %v3003 = vlaneseq
    %v3004 = vshrl.u32 %v3003, 7
    %v3005 = vsub.s32 %v3002, %v3004
    %v3006 = vrot.slane %v2984, %v3005
    %v3008 = vunpack.c.l.s4 1966171168
    %v3009 = vunpack.c.0.s8 %v3008
    %v3010 = vlaneseq
    %v3011 = vshrl.u32 %v3010, 7
    %v3012 = vsub.s32 %v3009, %v3011
    %v3013 = vrot.slane %v2985, %v3012
    %v3014 = vcombine.high %v2992, %v2992
    %v3015 = vcombine.high %v2999, %v2999
    %v3016 = vcombine.high %v3006, %v3006
    %v3017 = vcombine.high %v3013, %v3013
    %v3019 = vunpack.c.l.s4 1966171168
    %v3020 = vunpack.c.0.s8 %v3019
    %v3021 = vlaneseq
    %v3022 = vshrl.u32 %v3021, 7
    %v3023 = vsub.s32 %v3020, %v3022
    %v3024 = vrot.slane %v2964, %v3023
    %v3025 = vcombine.high %v3024, %v3024
    %v3027 = vunpack.c.l.s4 1966171168
    %v3028 = vunpack.c.0.s8 %v3027
    %v3029 = vlaneseq
    %v3030 = vshrl.u32 %v3029, 7
    %v3031 = vsub.s32 %v3028, %v3030
    %v3032 = vrot.slane %v3024, %v3031
    %v3034 = vunpack.c.l.s4 1966171168
    %v3035 = vunpack.c.0.s8 %v3034
    %v3036 = vlaneseq
    %v3037 = vshrl.u32 %v3036, 7
    %v3038 = vsub.s32 %v3035, %v3037
    %v3039 = vrot.slane %v3025, %v3038
    %s3040 = scalar_lea.vmem %s6, 32
    %v3041 = vld [vmem:[%s3040] sm:$0xff]
    %v3042 = vld [vmem:[%s3040 + $0x8] sm:$0xff]
    %v3043 = vld [vmem:[%s3040 + $0x10] sm:$0xff]
    %v3044 = vld [vmem:[%s3040 + $0x18] sm:$0xff]
    %v3045 = vcombine.low %v2992, %v3006
    %v3046 = vcombine.low %v3014, %v3016
    %v3048 = vunpack.c.l.s4 1966171168
    %v3049 = vunpack.c.0.s8 %v3048
    %v3050 = vlaneseq
    %v3051 = vshrl.u32 %v3050, 7
    %v3052 = vsub.s32 %v3049, %v3051
    %v3053 = vrot.slane %v3045, %v3052
    %v3055 = vunpack.c.l.s4 1966171168
    %v3056 = vunpack.c.0.s8 %v3055
    %v3057 = vlaneseq
    %v3058 = vshrl.u32 %v3057, 7
    %v3059 = vsub.s32 %v3056, %v3058
    %v3060 = vrot.slane %v3046, %v3059
    %v3062 = vunpack.c.l.s4 1966171168
    %v3063 = vunpack.c.0.s8 %v3062
    %v3064 = vlaneseq
    %v3065 = vshrl.u32 %v3064, 7
    %v3066 = vsub.s32 %v3063, %v3065
    %v3067 = vrot.slane %v2999, %v3066
    %v3068 = vcombine.low %v3053, %v3060
    %v3070 = vunpack.c.l.s4 1966171168
    %v3071 = vunpack.c.0.s8 %v3070
    %v3072 = vlaneseq
    %v3073 = vshrl.u32 %v3072, 7
    %v3074 = vsub.s32 %v3071, %v3073
    %v3075 = vrot.slane %v3068, %v3074
    %v3077 = vunpack.c.l.s4 1966171168
    %v3078 = vunpack.c.0.s8 %v3077
    %v3079 = vlaneseq
    %v3080 = vshrl.u32 %v3079, 7
    %v3081 = vsub.s32 %v3078, %v3080
    %v3082 = vrot.slane %v3067, %v3081
    %v3083 = vcombine.low %v3075, %v3082
    %3084 = vrot.lane.b32.xlu0 %v3083, 96
    %v3085 = vpop.permute.xlu0 %3084
    %v3086 = vsel %vm1037, %v3083, 0
    %v3088 = vsel %vm1037, %v3085, 0
    %3090 = vmatprep.subr.mxu0 0.0
    %3091 = vmatpush1.xpose.msra.mxu0 %v3088
    %3092 = vmatprep.subr.mxu0 0.0
    %3093 = vmatpush1.xpose.msra.mxu0 0.0
    %3094 = vmatprep.subr.mxu0 0.0
    %3095 = vmatpush1.xpose.msra.mxu0 0.0
    %3096 = vmatprep.subr.mxu0 0.0
    %3097 = vmatpush1.xpose.msra.mxu0 0.0
    %3098 = vmatprep.subr.mxu0 0.0
    %3099 = vmatpush1.xpose.msra.mxu0 0.0
    %3100 = vmatprep.subr.mxu0 0.0
    %3101 = vmatpush1.xpose.msra.mxu0 0.0
    %3102 = vmatprep.subr.mxu0 0.0
    %3103 = vmatpush1.xpose.msra.mxu0 0.0
    %3104 = vmatprep.subr.mxu0 0.0
    %3105 = vmatpush1.xpose.msra.mxu0 0.0
    %3106 = vmatprep.subr.mxu0 0.0
    %3107 = vmatpush1.xpose.msra.mxu0 0.0
    %3108 = vmatprep.subr.mxu0 0.0
    %3109 = vmatpush1.xpose.msra.mxu0 0.0
    %3110 = vmatprep.subr.mxu0 0.0
    %3111 = vmatpush1.xpose.msra.mxu0 0.0
    %3112 = vmatprep.subr.mxu0 0.0
    %3113 = vmatpush1.xpose.msra.mxu0 0.0
    %3114 = vmatprep.subr.mxu0 0.0
    %3115 = vmatpush1.xpose.msra.mxu0 0.0
    %3116 = vmatprep.subr.mxu0 0.0
    %3117 = vmatpush1.xpose.msra.mxu0 0.0
    %3118 = vmatprep.subr.mxu0 0.0
    %3119 = vmatpush1.xpose.msra.mxu0 0.0
    %3120 = vmatprep.subr.mxu0 0.0
    %3121 = vmatpush1.xpose.msra.mxu0 0.0
    %3122 = vmatprep.subr.mxu0 0.0
    %3123 = vmatpush1.xpose.msra.mxu0 0.0
    %3124 = vmatprep.subr.mxu0 0.0
    %3125 = vmatpush1.xpose.msra.mxu0 0.0
    %3126 = vmatprep.subr.mxu0 0.0
    %3127 = vmatpush1.xpose.msra.mxu0 0.0
    %3128 = vmatprep.subr.mxu0 0.0
    %3129 = vmatpush1.xpose.msra.mxu0 0.0
    %3130 = vmatprep.subr.mxu0 0.0
    %3131 = vmatpush1.xpose.msra.mxu0 0.0
    %3132 = vmatprep.subr.mxu0 0.0
    %3133 = vmatpush1.xpose.msra.mxu0 0.0
    %3134 = vmatprep.subr.mxu0 0.0
    %3135 = vmatpush1.xpose.msra.mxu0 0.0
    %3136 = vmatprep.subr.mxu0 0.0
    %3137 = vmatpush1.xpose.msra.mxu0 0.0
    %3138 = vmatprep.subr.mxu0 0.0
    %3139 = vmatpush1.xpose.msra.mxu0 0.0
    %3140 = vmatprep.subr.mxu0 0.0
    %3141 = vmatpush1.xpose.msra.mxu0 0.0
    %3142 = vmatprep.subr.mxu0 0.0
    %3143 = vmatpush1.xpose.msra.mxu0 0.0
    %3144 = vmatprep.subr.mxu0 0.0
    %3145 = vmatpush1.xpose.msra.mxu0 0.0
    %3146 = vmatprep.subr.mxu0 0.0
    %3147 = vmatpush1.xpose.msra.mxu0 0.0
    %3148 = vmatprep.subr.mxu0 0.0
    %3149 = vmatpush1.xpose.msra.mxu0 0.0
    %3150 = vmatprep.subr.mxu0 0.0
    %3151 = vmatpush1.xpose.msra.mxu0 0.0
    %3152 = vmatprep.subr.mxu0 0.0
    %3153 = vmatpush1.xpose.msra.mxu0 0.0
    %3154 = vmatprep.mubr.f32.mxu0 0.0
    %3155 = vmatmul.mubr.f32.gmra.mrb[0].mxu0 %v3086
    %v3156 = vpop.f32.mrb[0].mxu0
    %v3157 = vadd.f32 0.0, %v3156
    %v3158 = vpop.f32.mrb[0].mxu0
    %3159 = vdwg.mxu0
    %v3160 = vcombine.low %v3013, %v3015
    %v3161 = vcombine.low %v3017, %v3032
    %v3163 = vunpack.c.l.s4 1966171168
    %v3164 = vunpack.c.0.s8 %v3163
    %v3165 = vlaneseq
    %v3166 = vshrl.u32 %v3165, 7
    %v3167 = vsub.s32 %v3164, %v3166
    %v3168 = vrot.slane %v3160, %v3167
    %v3170 = vunpack.c.l.s4 1966171168
    %v3171 = vunpack.c.0.s8 %v3170
    %v3172 = vlaneseq
    %v3173 = vshrl.u32 %v3172, 7
    %v3174 = vsub.s32 %v3171, %v3173
    %v3175 = vrot.slane %v3161, %v3174
    %v3177 = vunpack.c.l.s4 1966171168
    %v3178 = vunpack.c.0.s8 %v3177
    %v3179 = vlaneseq
    %v3180 = vshrl.u32 %v3179, 7
    %v3181 = vsub.s32 %v3178, %v3180
    %v3182 = vrot.slane %v3039, %v3181
    %v3183 = vcombine.low %v3168, %v3175
    %v3185 = vunpack.c.l.s4 1966171168
    %v3186 = vunpack.c.0.s8 %v3185
    %v3187 = vlaneseq
    %v3188 = vshrl.u32 %v3187, 7
    %v3189 = vsub.s32 %v3186, %v3188
    %v3190 = vrot.slane %v3183, %v3189
    %v3192 = vunpack.c.l.s4 1966171168
    %v3193 = vunpack.c.0.s8 %v3192
    %v3194 = vlaneseq
    %v3195 = vshrl.u32 %v3194, 7
    %v3196 = vsub.s32 %v3193, %v3195
    %v3197 = vrot.slane %v3182, %v3196
    %v3198 = vcombine.low %v3190, %v3197
    %3199 = vrot.lane.b32.xlu0 %v3198, 96
    %v3200 = vpop.permute.xlu0 %3199
    %v3201 = vsel %vm1037, %v3198, 0
    %v3203 = vsel %vm1037, %v3200, 0
    %3205 = vmatprep.subr.mxu0 0.0
    %3206 = vmatpush1.xpose.msra.mxu0 %v3203
    %3207 = vmatprep.subr.mxu0 0.0
    %3208 = vmatpush1.xpose.msra.mxu0 0.0
    %3209 = vmatprep.subr.mxu0 0.0
    %3210 = vmatpush1.xpose.msra.mxu0 0.0
    %3211 = vmatprep.subr.mxu0 0.0
    %3212 = vmatpush1.xpose.msra.mxu0 0.0
    %3213 = vmatprep.subr.mxu0 0.0
    %3214 = vmatpush1.xpose.msra.mxu0 0.0
    %3215 = vmatprep.subr.mxu0 0.0
    %3216 = vmatpush1.xpose.msra.mxu0 0.0
    %3217 = vmatprep.subr.mxu0 0.0
    %3218 = vmatpush1.xpose.msra.mxu0 0.0
    %3219 = vmatprep.subr.mxu0 0.0
    %3220 = vmatpush1.xpose.msra.mxu0 0.0
    %3221 = vmatprep.subr.mxu0 0.0
    %3222 = vmatpush1.xpose.msra.mxu0 0.0
    %3223 = vmatprep.subr.mxu0 0.0
    %3224 = vmatpush1.xpose.msra.mxu0 0.0
    %3225 = vmatprep.subr.mxu0 0.0
    %3226 = vmatpush1.xpose.msra.mxu0 0.0
    %3227 = vmatprep.subr.mxu0 0.0
    %3228 = vmatpush1.xpose.msra.mxu0 0.0
    %3229 = vmatprep.subr.mxu0 0.0
    %3230 = vmatpush1.xpose.msra.mxu0 0.0
    %3231 = vmatprep.subr.mxu0 0.0
    %3232 = vmatpush1.xpose.msra.mxu0 0.0
    %3233 = vmatprep.subr.mxu0 0.0
    %3234 = vmatpush1.xpose.msra.mxu0 0.0
    %3235 = vmatprep.subr.mxu0 0.0
    %3236 = vmatpush1.xpose.msra.mxu0 0.0
    %3237 = vmatprep.subr.mxu0 0.0
    %3238 = vmatpush1.xpose.msra.mxu0 0.0
    %3239 = vmatprep.subr.mxu0 0.0
    %3240 = vmatpush1.xpose.msra.mxu0 0.0
    %3241 = vmatprep.subr.mxu0 0.0
    %3242 = vmatpush1.xpose.msra.mxu0 0.0
    %3243 = vmatprep.subr.mxu0 0.0
    %3244 = vmatpush1.xpose.msra.mxu0 0.0
    %3245 = vmatprep.subr.mxu0 0.0
    %3246 = vmatpush1.xpose.msra.mxu0 0.0
    %3247 = vmatprep.subr.mxu0 0.0
    %3248 = vmatpush1.xpose.msra.mxu0 0.0
    %3249 = vmatprep.subr.mxu0 0.0
    %3250 = vmatpush1.xpose.msra.mxu0 0.0
    %3251 = vmatprep.subr.mxu0 0.0
    %3252 = vmatpush1.xpose.msra.mxu0 0.0
    %3253 = vmatprep.subr.mxu0 0.0
    %3254 = vmatpush1.xpose.msra.mxu0 0.0
    %3255 = vmatprep.subr.mxu0 0.0
    %3256 = vmatpush1.xpose.msra.mxu0 0.0
    %3257 = vmatprep.subr.mxu0 0.0
    %3258 = vmatpush1.xpose.msra.mxu0 0.0
    %3259 = vmatprep.subr.mxu0 0.0
    %3260 = vmatpush1.xpose.msra.mxu0 0.0
    %3261 = vmatprep.subr.mxu0 0.0
    %3262 = vmatpush1.xpose.msra.mxu0 0.0
    %3263 = vmatprep.subr.mxu0 0.0
    %3264 = vmatpush1.xpose.msra.mxu0 0.0
    %3265 = vmatprep.subr.mxu0 0.0
    %3266 = vmatpush1.xpose.msra.mxu0 0.0
    %3267 = vmatprep.subr.mxu0 0.0
    %3268 = vmatpush1.xpose.msra.mxu0 0.0
    %3269 = vmatprep.mubr.f32.mxu0 0.0
    %3270 = vmatmul.mubr.f32.gmra.mrb[0].mxu0 %v3201
    %v3271 = vpop.f32.mrb[0].mxu0
    %v3272 = vadd.f32 0.0, %v3271
    %v3273 = vpop.f32.mrb[0].mxu0
    %3274 = vdwg.mxu0
    %v3275 = vmul.f32 %v3157, 0.25
    %v3276 = vmul.f32 %v3272, 0.25
    %v3277 = vsel %vm1229, %v3275, -inf
    %3278 = vmax.xlane.f32.xlu0 %v3277
    %v3279 = vpop.xlane.xlu0 %3278
    %v3280 = vsel %vm1229, %v3276, -inf
    %3281 = vmax.xlane.f32.xlu0 %v3280
    %v3282 = vpop.xlane.xlu0 %3281
    %v3283 = vsub.f32 %v3275, %v3279
    %v3284 = vsub.f32 %v3276, %v3282
    %v3285 = vmul.f32 %v3283, 1.442695
    %v3286 = vpow.pop %v3285
    %v3287 = vmul.f32 %v3284, 1.442695
    %v3288 = vpow.pop %v3287
    %v3289 = vsel %vm1229, %v3286, 0.0
    %3290 = vadd.xlane.f32.xlu0 %v3289
    %v3291 = vpop.xlane.xlu0 %3290
    %v3292 = vsel %vm1229, %v3288, 0.0
    %3293 = vadd.xlane.f32.xlu0 %v3292
    %v3294 = vpop.xlane.xlu0 %3293
    %v3295 = vrcp.pop %v3291
    %v3296 = vrcp.pop %v3294
    %v3297 = vmul.f32 %v3286, %v3295
    %v3298 = vmul.f32 %v3288, %v3296
    %3299 = vrot.lane.b32.xlu0 %v3083, 64
    %v3300 = vpop.permute.xlu0 %3299
    %v3302 = vsel %vm1254, %v3297, 0
    %v3304 = vsel %vm1258, %v3300, 0
    %3306 = vmatprep.subr.mxu0 0.0
    %3307 = vmatpush1.msra.mxu0 %v3304
    %3308 = vmatprep.subr.mxu0 0.0
    %3309 = vmatpush1.msra.mxu0 0.0
    %3310 = vmatprep.subr.mxu0 0.0
    %3311 = vmatpush1.msra.mxu0 0.0
    %3312 = vmatprep.subr.mxu0 0.0
    %3313 = vmatpush1.msra.mxu0 0.0
    %3314 = vmatprep.subr.mxu0 0.0
    %3315 = vmatpush1.msra.mxu0 0.0
    %3316 = vmatprep.subr.mxu0 0.0
    %3317 = vmatpush1.msra.mxu0 0.0
    %3318 = vmatprep.subr.mxu0 0.0
    %3319 = vmatpush1.msra.mxu0 0.0
    %3320 = vmatprep.subr.mxu0 0.0
    %3321 = vmatpush1.msra.mxu0 0.0
    %3322 = vmatprep.subr.mxu0 0.0
    %3323 = vmatpush1.msra.mxu0 0.0
    %3324 = vmatprep.subr.mxu0 0.0
    %3325 = vmatpush1.msra.mxu0 0.0
    %3326 = vmatprep.subr.mxu0 0.0
    %3327 = vmatpush1.msra.mxu0 0.0
    %3328 = vmatprep.subr.mxu0 0.0
    %3329 = vmatpush1.msra.mxu0 0.0
    %3330 = vmatprep.subr.mxu0 0.0
    %3331 = vmatpush1.msra.mxu0 0.0
    %3332 = vmatprep.subr.mxu0 0.0
    %3333 = vmatpush1.msra.mxu0 0.0
    %3334 = vmatprep.subr.mxu0 0.0
    %3335 = vmatpush1.msra.mxu0 0.0
    %3336 = vmatprep.subr.mxu0 0.0
    %3337 = vmatpush1.msra.mxu0 0.0
    %3338 = vmatprep.subr.mxu0 0.0
    %3339 = vmatpush1.msra.mxu0 0.0
    %3340 = vmatprep.subr.mxu0 0.0
    %3341 = vmatpush1.msra.mxu0 0.0
    %3342 = vmatprep.subr.mxu0 0.0
    %3343 = vmatpush1.msra.mxu0 0.0
    %3344 = vmatprep.subr.mxu0 0.0
    %3345 = vmatpush1.msra.mxu0 0.0
    %3346 = vmatprep.subr.mxu0 0.0
    %3347 = vmatpush1.msra.mxu0 0.0
    %3348 = vmatprep.subr.mxu0 0.0
    %3349 = vmatpush1.msra.mxu0 0.0
    %3350 = vmatprep.subr.mxu0 0.0
    %3351 = vmatpush1.msra.mxu0 0.0
    %3352 = vmatprep.subr.mxu0 0.0
    %3353 = vmatpush1.msra.mxu0 0.0
    %3354 = vmatprep.subr.mxu0 0.0
    %3355 = vmatpush1.msra.mxu0 0.0
    %3356 = vmatprep.subr.mxu0 0.0
    %3357 = vmatpush1.msra.mxu0 0.0
    %3358 = vmatprep.subr.mxu0 0.0
    %3359 = vmatpush1.msra.mxu0 0.0
    %3360 = vmatprep.subr.mxu0 0.0
    %3361 = vmatpush1.msra.mxu0 0.0
    %3362 = vmatprep.subr.mxu0 0.0
    %3363 = vmatpush1.msra.mxu0 0.0
    %3364 = vmatprep.subr.mxu0 0.0
    %3365 = vmatpush1.msra.mxu0 0.0
    %3366 = vmatprep.subr.mxu0 0.0
    %3367 = vmatpush1.msra.mxu0 0.0
    %3368 = vmatprep.subr.mxu0 0.0
    %3369 = vmatpush1.msra.mxu0 0.0
    %3370 = vmatprep.mubr.f32.mxu0 0.0
    %3371 = vmatmul.mubr.f32.gmra.mrb[0].mxu0 %v3302
    %v3372 = vpop.f32.mrb[0].mxu0
    %v3373 = vadd.f32 0.0, %v3372
    %v3374 = vpop.f32.mrb[0].mxu0
    %3375 = vdwg.mxu0
    %3376 = vrot.lane.b32.xlu0 %v3198, 64
    %v3377 = vpop.permute.xlu0 %3376
    %v3379 = vsel %vm1254, %v3298, 0
    %v3381 = vsel %vm1258, %v3377, 0
    %3383 = vmatprep.subr.mxu0 0.0
    %3384 = vmatpush1.msra.mxu0 %v3381
    %3385 = vmatprep.subr.mxu0 0.0
    %3386 = vmatpush1.msra.mxu0 0.0
    %3387 = vmatprep.subr.mxu0 0.0
    %3388 = vmatpush1.msra.mxu0 0.0
    %3389 = vmatprep.subr.mxu0 0.0
    %3390 = vmatpush1.msra.mxu0 0.0
    %3391 = vmatprep.subr.mxu0 0.0
    %3392 = vmatpush1.msra.mxu0 0.0
    %3393 = vmatprep.subr.mxu0 0.0
    %3394 = vmatpush1.msra.mxu0 0.0
    %3395 = vmatprep.subr.mxu0 0.0
    %3396 = vmatpush1.msra.mxu0 0.0
    %3397 = vmatprep.subr.mxu0 0.0
    %3398 = vmatpush1.msra.mxu0 0.0
    %3399 = vmatprep.subr.mxu0 0.0
    %3400 = vmatpush1.msra.mxu0 0.0
    %3401 = vmatprep.subr.mxu0 0.0
    %3402 = vmatpush1.msra.mxu0 0.0
    %3403 = vmatprep.subr.mxu0 0.0
    %3404 = vmatpush1.msra.mxu0 0.0
    %3405 = vmatprep.subr.mxu0 0.0
    %3406 = vmatpush1.msra.mxu0 0.0
    %3407 = vmatprep.subr.mxu0 0.0
    %3408 = vmatpush1.msra.mxu0 0.0
    %3409 = vmatprep.subr.mxu0 0.0
    %3410 = vmatpush1.msra.mxu0 0.0
    %3411 = vmatprep.subr.mxu0 0.0
    %3412 = vmatpush1.msra.mxu0 0.0
    %3413 = vmatprep.subr.mxu0 0.0
    %3414 = vmatpush1.msra.mxu0 0.0
    %3415 = vmatprep.subr.mxu0 0.0
    %3416 = vmatpush1.msra.mxu0 0.0
    %3417 = vmatprep.subr.mxu0 0.0
    %3418 = vmatpush1.msra.mxu0 0.0
    %3419 = vmatprep.subr.mxu0 0.0
    %3420 = vmatpush1.msra.mxu0 0.0
    %3421 = vmatprep.subr.mxu0 0.0
    %3422 = vmatpush1.msra.mxu0 0.0
    %3423 = vmatprep.subr.mxu0 0.0
    %3424 = vmatpush1.msra.mxu0 0.0
    %3425 = vmatprep.subr.mxu0 0.0
    %3426 = vmatpush1.msra.mxu0 0.0
    %3427 = vmatprep.subr.mxu0 0.0
    %3428 = vmatpush1.msra.mxu0 0.0
    %3429 = vmatprep.subr.mxu0 0.0
    %3430 = vmatpush1.msra.mxu0 0.0
    %3431 = vmatprep.subr.mxu0 0.0
    %3432 = vmatpush1.msra.mxu0 0.0
    %3433 = vmatprep.subr.mxu0 0.0
    %3434 = vmatpush1.msra.mxu0 0.0
    %3435 = vmatprep.subr.mxu0 0.0
    %3436 = vmatpush1.msra.mxu0 0.0
    %3437 = vmatprep.subr.mxu0 0.0
    %3438 = vmatpush1.msra.mxu0 0.0
    %3439 = vmatprep.subr.mxu0 0.0
    %3440 = vmatpush1.msra.mxu0 0.0
    %3441 = vmatprep.subr.mxu0 0.0
    %3442 = vmatpush1.msra.mxu0 0.0
    %3443 = vmatprep.subr.mxu0 0.0
    %3444 = vmatpush1.msra.mxu0 0.0
    %3445 = vmatprep.subr.mxu0 0.0
    %3446 = vmatpush1.msra.mxu0 0.0
    %3447 = vmatprep.mubr.f32.mxu0 0.0
    %3448 = vmatmul.mubr.f32.gmra.mrb[0].mxu0 %v3379
    %v3449 = vpop.f32.mrb[0].mxu0
    %v3450 = vadd.f32 0.0, %v3449
    %v3451 = vpop.f32.mrb[0].mxu0
    %3452 = vdwg.mxu0
    %v3455 = vcombine.high %v3373, %v3373
    %v3457 = vunpack.c.l.s4 1966171168
    %v3458 = vunpack.c.0.s8 %v3457
    %v3459 = vlaneseq
    %v3460 = vshrl.u32 %v3459, 7
    %v3461 = vsub.s32 %v3458, %v3460
    %v3462 = vrot.slane %v3373, %v3461
    %v3464 = vunpack.c.l.s4 1966171168
    %v3465 = vunpack.c.0.s8 %v3464
    %v3466 = vlaneseq
    %v3467 = vshrl.u32 %v3466, 7
    %v3468 = vsub.s32 %v3465, %v3467
    %v3469 = vrot.slane %v3455, %v3468
    %v3470 = vcombine.high %v3462, %v3462
    %v3472 = vunpack.c.l.s4 1966171168
    %v3473 = vunpack.c.0.s8 %v3472
    %v3474 = vlaneseq
    %v3475 = vshrl.u32 %v3474, 7
    %v3476 = vsub.s32 %v3473, %v3475
    %v3477 = vrot.slane %v3462, %v3476
    %v3479 = vunpack.c.l.s4 1966171168
    %v3480 = vunpack.c.0.s8 %v3479
    %v3481 = vlaneseq
    %v3482 = vshrl.u32 %v3481, 7
    %v3483 = vsub.s32 %v3480, %v3482
    %v3484 = vrot.slane %v3469, %v3483
    %v3486 = vunpack.c.l.s4 1966171168
    %v3487 = vunpack.c.0.s8 %v3486
    %v3488 = vlaneseq
    %v3489 = vshrl.u32 %v3488, 7
    %v3490 = vsub.s32 %v3487, %v3489
    %v3491 = vrot.slane %v3470, %v3490
    %v3492 = vcombine.high %v3477, %v3477
    %v3493 = vcombine.high %v3491, %v3491
    %v3494 = vcombine.high %v3450, %v3450
    %v3496 = vunpack.c.l.s4 1966171168
    %v3497 = vunpack.c.0.s8 %v3496
    %v3498 = vlaneseq
    %v3499 = vshrl.u32 %v3498, 7
    %v3500 = vsub.s32 %v3497, %v3499
    %v3501 = vrot.slane %v3450, %v3500
    %v3503 = vunpack.c.l.s4 1966171168
    %v3504 = vunpack.c.0.s8 %v3503
    %v3505 = vlaneseq
    %v3506 = vshrl.u32 %v3505, 7
    %v3507 = vsub.s32 %v3504, %v3506
    %v3508 = vrot.slane %v3494, %v3507
    %v3509 = vcombine.high %v3501, %v3501
    %v3511 = vunpack.c.l.s4 1966171168
    %v3512 = vunpack.c.0.s8 %v3511
    %v3513 = vlaneseq
    %v3514 = vshrl.u32 %v3513, 7
    %v3515 = vsub.s32 %v3512, %v3514
    %v3516 = vrot.slane %v3501, %v3515
    %v3518 = vunpack.c.l.s4 1966171168
    %v3519 = vunpack.c.0.s8 %v3518
    %v3520 = vlaneseq
    %v3521 = vshrl.u32 %v3520, 7
    %v3522 = vsub.s32 %v3519, %v3521
    %v3523 = vrot.slane %v3508, %v3522
    %v3525 = vunpack.c.l.s4 1966171168
    %v3526 = vunpack.c.0.s8 %v3525
    %v3527 = vlaneseq
    %v3528 = vshrl.u32 %v3527, 7
    %v3529 = vsub.s32 %v3526, %v3528
    %v3530 = vrot.slane %v3509, %v3529
    %v3531 = vcombine.high %v3516, %v3516
    %v3532 = vcombine.high %v3530, %v3530
    %3533 = vrot.lane.b32.xlu0 %v3083, 112
    %v3534 = vpop.permute.xlu0 %3533
    %3535 = vrot.lane.b32.xlu0 %v3083, 80
    %v3536 = vpop.permute.xlu0 %3535
    %v3537 = vsel %vm1037, %v3534, 0
    %v3539 = vsel %vm1037, %v3536, 0
    %3541 = vmatprep.subr.mxu0 0.0
    %3542 = vmatpush1.xpose.msra.mxu0 %v3539
    %3543 = vmatprep.subr.mxu0 0.0
    %3544 = vmatpush1.xpose.msra.mxu0 0.0
    %3545 = vmatprep.subr.mxu0 0.0
    %3546 = vmatpush1.xpose.msra.mxu0 0.0
    %3547 = vmatprep.subr.mxu0 0.0
    %3548 = vmatpush1.xpose.msra.mxu0 0.0
    %3549 = vmatprep.subr.mxu0 0.0
    %3550 = vmatpush1.xpose.msra.mxu0 0.0
    %3551 = vmatprep.subr.mxu0 0.0
    %3552 = vmatpush1.xpose.msra.mxu0 0.0
    %3553 = vmatprep.subr.mxu0 0.0
    %3554 = vmatpush1.xpose.msra.mxu0 0.0
    %3555 = vmatprep.subr.mxu0 0.0
    %3556 = vmatpush1.xpose.msra.mxu0 0.0
    %3557 = vmatprep.subr.mxu0 0.0
    %3558 = vmatpush1.xpose.msra.mxu0 0.0
    %3559 = vmatprep.subr.mxu0 0.0
    %3560 = vmatpush1.xpose.msra.mxu0 0.0
    %3561 = vmatprep.subr.mxu0 0.0
    %3562 = vmatpush1.xpose.msra.mxu0 0.0
    %3563 = vmatprep.subr.mxu0 0.0
    %3564 = vmatpush1.xpose.msra.mxu0 0.0
    %3565 = vmatprep.subr.mxu0 0.0
    %3566 = vmatpush1.xpose.msra.mxu0 0.0
    %3567 = vmatprep.subr.mxu0 0.0
    %3568 = vmatpush1.xpose.msra.mxu0 0.0
    %3569 = vmatprep.subr.mxu0 0.0
    %3570 = vmatpush1.xpose.msra.mxu0 0.0
    %3571 = vmatprep.subr.mxu0 0.0
    %3572 = vmatpush1.xpose.msra.mxu0 0.0
    %3573 = vmatprep.subr.mxu0 0.0
    %3574 = vmatpush1.xpose.msra.mxu0 0.0
    %3575 = vmatprep.subr.mxu0 0.0
    %3576 = vmatpush1.xpose.msra.mxu0 0.0
    %3577 = vmatprep.subr.mxu0 0.0
    %3578 = vmatpush1.xpose.msra.mxu0 0.0
    %3579 = vmatprep.subr.mxu0 0.0
    %3580 = vmatpush1.xpose.msra.mxu0 0.0
    %3581 = vmatprep.subr.mxu0 0.0
    %3582 = vmatpush1.xpose.msra.mxu0 0.0
    %3583 = vmatprep.subr.mxu0 0.0
    %3584 = vmatpush1.xpose.msra.mxu0 0.0
    %3585 = vmatprep.subr.mxu0 0.0
    %3586 = vmatpush1.xpose.msra.mxu0 0.0
    %3587 = vmatprep.subr.mxu0 0.0
    %3588 = vmatpush1.xpose.msra.mxu0 0.0
    %3589 = vmatprep.subr.mxu0 0.0
    %3590 = vmatpush1.xpose.msra.mxu0 0.0
    %3591 = vmatprep.subr.mxu0 0.0
    %3592 = vmatpush1.xpose.msra.mxu0 0.0
    %3593 = vmatprep.subr.mxu0 0.0
    %3594 = vmatpush1.xpose.msra.mxu0 0.0
    %3595 = vmatprep.subr.mxu0 0.0
    %3596 = vmatpush1.xpose.msra.mxu0 0.0
    %3597 = vmatprep.subr.mxu0 0.0
    %3598 = vmatpush1.xpose.msra.mxu0 0.0
    %3599 = vmatprep.subr.mxu0 0.0
    %3600 = vmatpush1.xpose.msra.mxu0 0.0
    %3601 = vmatprep.subr.mxu0 0.0
    %3602 = vmatpush1.xpose.msra.mxu0 0.0
    %3603 = vmatprep.subr.mxu0 0.0
    %3604 = vmatpush1.xpose.msra.mxu0 0.0
    %3605 = vmatprep.mubr.f32.mxu0 0.0
    %3606 = vmatmul.mubr.f32.gmra.mrb[0].mxu0 %v3537
    %v3607 = vpop.f32.mrb[0].mxu0
    %v3608 = vadd.f32 0.0, %v3607
    %v3609 = vpop.f32.mrb[0].mxu0
    %3610 = vdwg.mxu0
    %3611 = vrot.lane.b32.xlu0 %v3198, 112
    %v3612 = vpop.permute.xlu0 %3611
    %3613 = vrot.lane.b32.xlu0 %v3198, 80
    %v3614 = vpop.permute.xlu0 %3613
    %v3615 = vsel %vm1037, %v3612, 0
    %v3617 = vsel %vm1037, %v3614, 0
    %3619 = vmatprep.subr.mxu0 0.0
    %3620 = vmatpush1.xpose.msra.mxu0 %v3617
    %3621 = vmatprep.subr.mxu0 0.0
    %3622 = vmatpush1.xpose.msra.mxu0 0.0
    %3623 = vmatprep.subr.mxu0 0.0
    %3624 = vmatpush1.xpose.msra.mxu0 0.0
    %3625 = vmatprep.subr.mxu0 0.0
    %3626 = vmatpush1.xpose.msra.mxu0 0.0
    %3627 = vmatprep.subr.mxu0 0.0
    %3628 = vmatpush1.xpose.msra.mxu0 0.0
    %3629 = vmatprep.subr.mxu0 0.0
    %3630 = vmatpush1.xpose.msra.mxu0 0.0
    %3631 = vmatprep.subr.mxu0 0.0
    %3632 = vmatpush1.xpose.msra.mxu0 0.0
    %3633 = vmatprep.subr.mxu0 0.0
    %3634 = vmatpush1.xpose.msra.mxu0 0.0
    %3635 = vmatprep.subr.mxu0 0.0
    %3636 = vmatpush1.xpose.msra.mxu0 0.0
    %3637 = vmatprep.subr.mxu0 0.0
    %3638 = vmatpush1.xpose.msra.mxu0 0.0
    %3639 = vmatprep.subr.mxu0 0.0
    %3640 = vmatpush1.xpose.msra.mxu0 0.0
    %3641 = vmatprep.subr.mxu0 0.0
    %3642 = vmatpush1.xpose.msra.mxu0 0.0
    %3643 = vmatprep.subr.mxu0 0.0
    %3644 = vmatpush1.xpose.msra.mxu0 0.0
    %3645 = vmatprep.subr.mxu0 0.0
    %3646 = vmatpush1.xpose.msra.mxu0 0.0
    %3647 = vmatprep.subr.mxu0 0.0
    %3648 = vmatpush1.xpose.msra.mxu0 0.0
    %3649 = vmatprep.subr.mxu0 0.0
    %3650 = vmatpush1.xpose.msra.mxu0 0.0
    %3651 = vmatprep.subr.mxu0 0.0
    %3652 = vmatpush1.xpose.msra.mxu0 0.0
    %3653 = vmatprep.subr.mxu0 0.0
    %3654 = vmatpush1.xpose.msra.mxu0 0.0
    %3655 = vmatprep.subr.mxu0 0.0
    %3656 = vmatpush1.xpose.msra.mxu0 0.0
    %3657 = vmatprep.subr.mxu0 0.0
    %3658 = vmatpush1.xpose.msra.mxu0 0.0
    %3659 = vmatprep.subr.mxu0 0.0
    %3660 = vmatpush1.xpose.msra.mxu0 0.0
    %3661 = vmatprep.subr.mxu0 0.0
    %3662 = vmatpush1.xpose.msra.mxu0 0.0
    %3663 = vmatprep.subr.mxu0 0.0
    %3664 = vmatpush1.xpose.msra.mxu0 0.0
    %3665 = vmatprep.subr.mxu0 0.0
    %3666 = vmatpush1.xpose.msra.mxu0 0.0
    %3667 = vmatprep.subr.mxu0 0.0
    %3668 = vmatpush1.xpose.msra.mxu0 0.0
    %3669 = vmatprep.subr.mxu0 0.0
    %3670 = vmatpush1.xpose.msra.mxu0 0.0
    %3671 = vmatprep.subr.mxu0 0.0
    %3672 = vmatpush1.xpose.msra.mxu0 0.0
    %3673 = vmatprep.subr.mxu0 0.0
    %3674 = vmatpush1.xpose.msra.mxu0 0.0
    %3675 = vmatprep.subr.mxu0 0.0
    %3676 = vmatpush1.xpose.msra.mxu0 0.0
    %3677 = vmatprep.subr.mxu0 0.0
    %3678 = vmatpush1.xpose.msra.mxu0 0.0
    %3679 = vmatprep.subr.mxu0 0.0
    %3680 = vmatpush1.xpose.msra.mxu0 0.0
    %3681 = vmatprep.subr.mxu0 0.0
    %3682 = vmatpush1.xpose.msra.mxu0 0.0
    %3683 = vmatprep.mubr.f32.mxu0 0.0
    %3684 = vmatmul.mubr.f32.gmra.mrb[0].mxu0 %v3615
    %v3685 = vpop.f32.mrb[0].mxu0
    %v3686 = vadd.f32 0.0, %v3685
    %v3687 = vpop.f32.mrb[0].mxu0
    %3688 = vdwg.mxu0
    %v3689 = vmul.f32 %v3608, 0.25
    %v3690 = vmul.f32 %v3686, 0.25
    %v3691 = vsel %vm1229, %v3689, -inf
    %3692 = vmax.xlane.f32.xlu0 %v3691
    %v3693 = vpop.xlane.xlu0 %3692
    %v3694 = vsel %vm1229, %v3690, -inf
    %3695 = vmax.xlane.f32.xlu0 %v3694
    %v3696 = vpop.xlane.xlu0 %3695
    %v3697 = vsub.f32 %v3689, %v3693
    %v3698 = vsub.f32 %v3690, %v3696
    %v3699 = vmul.f32 %v3697, 1.442695
    %v3700 = vpow.pop %v3699
    %v3701 = vmul.f32 %v3698, 1.442695
    %v3702 = vpow.pop %v3701
    %v3703 = vsel %vm1229, %v3700, 0.0
    %3704 = vadd.xlane.f32.xlu0 %v3703
    %v3705 = vpop.xlane.xlu0 %3704
    %v3706 = vsel %vm1229, %v3702, 0.0
    %3707 = vadd.xlane.f32.xlu0 %v3706
    %v3708 = vpop.xlane.xlu0 %3707
    %v3709 = vrcp.pop %v3705
    %v3710 = vrcp.pop %v3708
    %v3711 = vmul.f32 %v3700, %v3709
    %v3712 = vmul.f32 %v3702, %v3710
    %3713 = vrot.lane.b32.xlu0 %v3083, 48
    %v3714 = vpop.permute.xlu0 %3713
    %v3716 = vsel %vm1254, %v3711, 0
    %v3718 = vsel %vm1258, %v3714, 0
    %3720 = vmatprep.subr.mxu0 0.0
    %3721 = vmatpush1.msra.mxu0 %v3718
    %3722 = vmatprep.subr.mxu0 0.0
    %3723 = vmatpush1.msra.mxu0 0.0
    %3724 = vmatprep.subr.mxu0 0.0
    %3725 = vmatpush1.msra.mxu0 0.0
    %3726 = vmatprep.subr.mxu0 0.0
    %3727 = vmatpush1.msra.mxu0 0.0
    %3728 = vmatprep.subr.mxu0 0.0
    %3729 = vmatpush1.msra.mxu0 0.0
    %3730 = vmatprep.subr.mxu0 0.0
    %3731 = vmatpush1.msra.mxu0 0.0
    %3732 = vmatprep.subr.mxu0 0.0
    %3733 = vmatpush1.msra.mxu0 0.0
    %3734 = vmatprep.subr.mxu0 0.0
    %3735 = vmatpush1.msra.mxu0 0.0
    %3736 = vmatprep.subr.mxu0 0.0
    %3737 = vmatpush1.msra.mxu0 0.0
    %3738 = vmatprep.subr.mxu0 0.0
    %3739 = vmatpush1.msra.mxu0 0.0
    %3740 = vmatprep.subr.mxu0 0.0
    %3741 = vmatpush1.msra.mxu0 0.0
    %3742 = vmatprep.subr.mxu0 0.0
    %3743 = vmatpush1.msra.mxu0 0.0
    %3744 = vmatprep.subr.mxu0 0.0
    %3745 = vmatpush1.msra.mxu0 0.0
    %3746 = vmatprep.subr.mxu0 0.0
    %3747 = vmatpush1.msra.mxu0 0.0
    %3748 = vmatprep.subr.mxu0 0.0
    %3749 = vmatpush1.msra.mxu0 0.0
    %3750 = vmatprep.subr.mxu0 0.0
    %3751 = vmatpush1.msra.mxu0 0.0
    %3752 = vmatprep.subr.mxu0 0.0
    %3753 = vmatpush1.msra.mxu0 0.0
    %3754 = vmatprep.subr.mxu0 0.0
    %3755 = vmatpush1.msra.mxu0 0.0
    %3756 = vmatprep.subr.mxu0 0.0
    %3757 = vmatpush1.msra.mxu0 0.0
    %3758 = vmatprep.subr.mxu0 0.0
    %3759 = vmatpush1.msra.mxu0 0.0
    %3760 = vmatprep.subr.mxu0 0.0
    %3761 = vmatpush1.msra.mxu0 0.0
    %3762 = vmatprep.subr.mxu0 0.0
    %3763 = vmatpush1.msra.mxu0 0.0
    %3764 = vmatprep.subr.mxu0 0.0
    %3765 = vmatpush1.msra.mxu0 0.0
    %3766 = vmatprep.subr.mxu0 0.0
    %3767 = vmatpush1.msra.mxu0 0.0
    %3768 = vmatprep.subr.mxu0 0.0
    %3769 = vmatpush1.msra.mxu0 0.0
    %3770 = vmatprep.subr.mxu0 0.0
    %3771 = vmatpush1.msra.mxu0 0.0
    %3772 = vmatprep.subr.mxu0 0.0
    %3773 = vmatpush1.msra.mxu0 0.0
    %3774 = vmatprep.subr.mxu0 0.0
    %3775 = vmatpush1.msra.mxu0 0.0
    %3776 = vmatprep.subr.mxu0 0.0
    %3777 = vmatpush1.msra.mxu0 0.0
    %3778 = vmatprep.subr.mxu0 0.0
    %3779 = vmatpush1.msra.mxu0 0.0
    %3780 = vmatprep.subr.mxu0 0.0
    %3781 = vmatpush1.msra.mxu0 0.0
    %3782 = vmatprep.subr.mxu0 0.0
    %3783 = vmatpush1.msra.mxu0 0.0
    %3784 = vmatprep.mubr.f32.mxu0 0.0
    %3785 = vmatmul.mubr.f32.gmra.mrb[0].mxu0 %v3716
    %v3786 = vpop.f32.mrb[0].mxu0
    %v3787 = vadd.f32 0.0, %v3786
    %v3788 = vpop.f32.mrb[0].mxu0
    %3789 = vdwg.mxu0
    %3790 = vrot.lane.b32.xlu0 %v3198, 48
    %v3791 = vpop.permute.xlu0 %3790
    %v3793 = vsel %vm1254, %v3712, 0
    %v3795 = vsel %vm1258, %v3791, 0
    %3797 = vmatprep.subr.mxu0 0.0
    %3798 = vmatpush1.msra.mxu0 %v3795
    %3799 = vmatprep.subr.mxu0 0.0
    %3800 = vmatpush1.msra.mxu0 0.0
    %3801 = vmatprep.subr.mxu0 0.0
    %3802 = vmatpush1.msra.mxu0 0.0
    %3803 = vmatprep.subr.mxu0 0.0
    %3804 = vmatpush1.msra.mxu0 0.0
    %3805 = vmatprep.subr.mxu0 0.0
    %3806 = vmatpush1.msra.mxu0 0.0
    %3807 = vmatprep.subr.mxu0 0.0
    %3808 = vmatpush1.msra.mxu0 0.0
    %3809 = vmatprep.subr.mxu0 0.0
    %3810 = vmatpush1.msra.mxu0 0.0
    %3811 = vmatprep.subr.mxu0 0.0
    %3812 = vmatpush1.msra.mxu0 0.0
    %3813 = vmatprep.subr.mxu0 0.0
    %3814 = vmatpush1.msra.mxu0 0.0
    %3815 = vmatprep.subr.mxu0 0.0
    %3816 = vmatpush1.msra.mxu0 0.0
    %3817 = vmatprep.subr.mxu0 0.0
    %3818 = vmatpush1.msra.mxu0 0.0
    %3819 = vmatprep.subr.mxu0 0.0
    %3820 = vmatpush1.msra.mxu0 0.0
    %3821 = vmatprep.subr.mxu0 0.0
    %3822 = vmatpush1.msra.mxu0 0.0
    %3823 = vmatprep.subr.mxu0 0.0
    %3824 = vmatpush1.msra.mxu0 0.0
    %3825 = vmatprep.subr.mxu0 0.0
    %3826 = vmatpush1.msra.mxu0 0.0
    %3827 = vmatprep.subr.mxu0 0.0
    %3828 = vmatpush1.msra.mxu0 0.0
    %3829 = vmatprep.subr.mxu0 0.0
    %3830 = vmatpush1.msra.mxu0 0.0
    %3831 = vmatprep.subr.mxu0 0.0
    %3832 = vmatpush1.msra.mxu0 0.0
    %3833 = vmatprep.subr.mxu0 0.0
    %3834 = vmatpush1.msra.mxu0 0.0
    %3835 = vmatprep.subr.mxu0 0.0
    %3836 = vmatpush1.msra.mxu0 0.0
    %3837 = vmatprep.subr.mxu0 0.0
    %3838 = vmatpush1.msra.mxu0 0.0
    %3839 = vmatprep.subr.mxu0 0.0
    %3840 = vmatpush1.msra.mxu0 0.0
    %3841 = vmatprep.subr.mxu0 0.0
    %3842 = vmatpush1.msra.mxu0 0.0
    %3843 = vmatprep.subr.mxu0 0.0
    %3844 = vmatpush1.msra.mxu0 0.0
    %3845 = vmatprep.subr.mxu0 0.0
    %3846 = vmatpush1.msra.mxu0 0.0
    %3847 = vmatprep.subr.mxu0 0.0
    %3848 = vmatpush1.msra.mxu0 0.0
    %3849 = vmatprep.subr.mxu0 0.0
    %3850 = vmatpush1.msra.mxu0 0.0
    %3851 = vmatprep.subr.mxu0 0.0
    %3852 = vmatpush1.msra.mxu0 0.0
    %3853 = vmatprep.subr.mxu0 0.0
    %3854 = vmatpush1.msra.mxu0 0.0
    %3855 = vmatprep.subr.mxu0 0.0
    %3856 = vmatpush1.msra.mxu0 0.0
    %3857 = vmatprep.subr.mxu0 0.0
    %3858 = vmatpush1.msra.mxu0 0.0
    %3859 = vmatprep.subr.mxu0 0.0
    %3860 = vmatpush1.msra.mxu0 0.0
    %3861 = vmatprep.mubr.f32.mxu0 0.0
    %3862 = vmatmul.mubr.f32.gmra.mrb[0].mxu0 %v3793
    %v3863 = vpop.f32.mrb[0].mxu0
    %v3864 = vadd.f32 0.0, %v3863
    %v3865 = vpop.f32.mrb[0].mxu0
    %3866 = vdwg.mxu0
    %v3869 = vcombine.high %v3787, %v3787
    %v3871 = vunpack.c.l.s4 1966171168
    %v3872 = vunpack.c.0.s8 %v3871
    %v3873 = vlaneseq
    %v3874 = vshrl.u32 %v3873, 7
    %v3875 = vsub.s32 %v3872, %v3874
    %v3876 = vrot.slane %v3787, %v3875
    %v3878 = vunpack.c.l.s4 1966171168
    %v3879 = vunpack.c.0.s8 %v3878
    %v3880 = vlaneseq
    %v3881 = vshrl.u32 %v3880, 7
    %v3882 = vsub.s32 %v3879, %v3881
    %v3883 = vrot.slane %v3869, %v3882
    %v3884 = vcombine.high %v3876, %v3876
    %v3886 = vunpack.c.l.s4 1966171168
    %v3887 = vunpack.c.0.s8 %v3886
    %v3888 = vlaneseq
    %v3889 = vshrl.u32 %v3888, 7
    %v3890 = vsub.s32 %v3887, %v3889
    %v3891 = vrot.slane %v3876, %v3890
    %v3893 = vunpack.c.l.s4 1966171168
    %v3894 = vunpack.c.0.s8 %v3893
    %v3895 = vlaneseq
    %v3896 = vshrl.u32 %v3895, 7
    %v3897 = vsub.s32 %v3894, %v3896
    %v3898 = vrot.slane %v3883, %v3897
    %v3900 = vunpack.c.l.s4 1966171168
    %v3901 = vunpack.c.0.s8 %v3900
    %v3902 = vlaneseq
    %v3903 = vshrl.u32 %v3902, 7
    %v3904 = vsub.s32 %v3901, %v3903
    %v3905 = vrot.slane %v3884, %v3904
    %v3906 = vcombine.high %v3891, %v3891
    %v3907 = vcombine.high %v3905, %v3905
    %v3908 = vcombine.high %v3864, %v3864
    %v3910 = vunpack.c.l.s4 1966171168
    %v3911 = vunpack.c.0.s8 %v3910
    %v3912 = vlaneseq
    %v3913 = vshrl.u32 %v3912, 7
    %v3914 = vsub.s32 %v3911, %v3913
    %v3915 = vrot.slane %v3864, %v3914
    %v3917 = vunpack.c.l.s4 1966171168
    %v3918 = vunpack.c.0.s8 %v3917
    %v3919 = vlaneseq
    %v3920 = vshrl.u32 %v3919, 7
    %v3921 = vsub.s32 %v3918, %v3920
    %v3922 = vrot.slane %v3908, %v3921
    %v3923 = vcombine.high %v3915, %v3915
    %v3925 = vunpack.c.l.s4 1966171168
    %v3926 = vunpack.c.0.s8 %v3925
    %v3927 = vlaneseq
    %v3928 = vshrl.u32 %v3927, 7
    %v3929 = vsub.s32 %v3926, %v3928
    %v3930 = vrot.slane %v3915, %v3929
    %v3932 = vunpack.c.l.s4 1966171168
    %v3933 = vunpack.c.0.s8 %v3932
    %v3934 = vlaneseq
    %v3935 = vshrl.u32 %v3934, 7
    %v3936 = vsub.s32 %v3933, %v3935
    %v3937 = vrot.slane %v3922, %v3936
    %v3939 = vunpack.c.l.s4 1966171168
    %v3940 = vunpack.c.0.s8 %v3939
    %v3941 = vlaneseq
    %v3942 = vshrl.u32 %v3941, 7
    %v3943 = vsub.s32 %v3940, %v3942
    %v3944 = vrot.slane %v3923, %v3943
    %v3945 = vcombine.high %v3930, %v3930
    %v3946 = vcombine.high %v3944, %v3944
    %v3947 = vcombine.low %v3891, %v3905
    %v3948 = vcombine.low %v3906, %v3907
    %v3949 = vcombine.low %v3898, %v3930
    %v3950 = vcombine.low %v3944, %v3945
    %v3952 = vunpack.c.l.s4 1966171168
    %v3953 = vunpack.c.0.s8 %v3952
    %v3954 = vlaneseq
    %v3955 = vshrl.u32 %v3954, 7
    %v3956 = vsub.s32 %v3953, %v3955
    %v3957 = vrot.slane %v3947, %v3956
    %v3959 = vunpack.c.l.s4 1966171168
    %v3960 = vunpack.c.0.s8 %v3959
    %v3961 = vlaneseq
    %v3962 = vshrl.u32 %v3961, 7
    %v3963 = vsub.s32 %v3960, %v3962
    %v3964 = vrot.slane %v3948, %v3963
    %v3966 = vunpack.c.l.s4 1966171168
    %v3967 = vunpack.c.0.s8 %v3966
    %v3968 = vlaneseq
    %v3969 = vshrl.u32 %v3968, 7
    %v3970 = vsub.s32 %v3967, %v3969
    %v3971 = vrot.slane %v3949, %v3970
    %v3973 = vunpack.c.l.s4 1966171168
    %v3974 = vunpack.c.0.s8 %v3973
    %v3975 = vlaneseq
    %v3976 = vshrl.u32 %v3975, 7
    %v3977 = vsub.s32 %v3974, %v3976
    %v3978 = vrot.slane %v3950, %v3977
    %v3979 = vcombine.low %v3957, %v3964
    %v3980 = vcombine.low %v3971, %v3978
    %v3982 = vunpack.c.l.s4 1966171168
    %v3983 = vunpack.c.0.s8 %v3982
    %v3984 = vlaneseq
    %v3985 = vshrl.u32 %v3984, 7
    %v3986 = vsub.s32 %v3983, %v3985
    %v3987 = vrot.slane %v3979, %v3986
    %v3989 = vunpack.c.l.s4 1966171168
    %v3990 = vunpack.c.0.s8 %v3989
    %v3991 = vlaneseq
    %v3992 = vshrl.u32 %v3991, 7
    %v3993 = vsub.s32 %v3990, %v3992
    %v3994 = vrot.slane %v3980, %v3993
    %v3995 = vcombine.low %v3987, %v3994
    %v3996 = vcombine.low %v3946, %v3937
    %v3998 = vunpack.c.l.s4 1966171168
    %v3999 = vunpack.c.0.s8 %v3998
    %v4000 = vlaneseq
    %v4001 = vshrl.u32 %v4000, 7
    %v4002 = vsub.s32 %v3999, %v4001
    %v4003 = vrot.slane %v3996, %v4002
    %v4005 = vunpack.c.l.s4 1966171168
    %v4006 = vunpack.c.0.s8 %v4005
    %v4007 = vlaneseq
    %v4008 = vshrl.u32 %v4007, 7
    %v4009 = vsub.s32 %v4006, %v4008
    %v4010 = vrot.slane %v4003, %v4009
    %v4011 = vsel %vm1037, %v3995, 0
    %v4013 = vsel %vm1037, %v4010, 0
    %4015 = vmatprep.subr.mxu0 0.0
    %4016 = vmatpush1.msra.mxu0 %v3043
    %4017 = vmatprep.subr.mxu0 0.0
    %4018 = vmatpush1.msra.mxu0 %v3044
    %4019 = vmatprep.subr.mxu0 0.0
    %4020 = vmatpush1.msra.mxu0 0.0
    %4021 = vmatprep.subr.mxu0 0.0
    %4022 = vmatpush1.msra.mxu0 0.0
    %4023 = vmatprep.subr.mxu0 0.0
    %4024 = vmatpush1.msra.mxu0 0.0
    %4025 = vmatprep.subr.mxu0 0.0
    %4026 = vmatpush1.msra.mxu0 0.0
    %4027 = vmatprep.subr.mxu0 0.0
    %4028 = vmatpush1.msra.mxu0 0.0
    %4029 = vmatprep.subr.mxu0 0.0
    %4030 = vmatpush1.msra.mxu0 0.0
    %4031 = vmatprep.subr.mxu0 0.0
    %4032 = vmatpush1.msra.mxu0 0.0
    %4033 = vmatprep.subr.mxu0 0.0
    %4034 = vmatpush1.msra.mxu0 0.0
    %4035 = vmatprep.subr.mxu0 0.0
    %4036 = vmatpush1.msra.mxu0 0.0
    %4037 = vmatprep.subr.mxu0 0.0
    %4038 = vmatpush1.msra.mxu0 0.0
    %4039 = vmatprep.subr.mxu0 0.0
    %4040 = vmatpush1.msra.mxu0 0.0
    %4041 = vmatprep.subr.mxu0 0.0
    %4042 = vmatpush1.msra.mxu0 0.0
    %4043 = vmatprep.subr.mxu0 0.0
    %4044 = vmatpush1.msra.mxu0 0.0
    %4045 = vmatprep.subr.mxu0 0.0
    %4046 = vmatpush1.msra.mxu0 0.0
    %4047 = vmatprep.subr.mxu0 0.0
    %4048 = vmatpush1.msra.mxu0 0.0
    %4049 = vmatprep.subr.mxu0 0.0
    %4050 = vmatpush1.msra.mxu0 0.0
    %4051 = vmatprep.subr.mxu0 0.0
    %4052 = vmatpush1.msra.mxu0 0.0
    %4053 = vmatprep.subr.mxu0 0.0
    %4054 = vmatpush1.msra.mxu0 0.0
    %4055 = vmatprep.subr.mxu0 0.0
    %4056 = vmatpush1.msra.mxu0 0.0
    %4057 = vmatprep.subr.mxu0 0.0
    %4058 = vmatpush1.msra.mxu0 0.0
    %4059 = vmatprep.subr.mxu0 0.0
    %4060 = vmatpush1.msra.mxu0 0.0
    %4061 = vmatprep.subr.mxu0 0.0
    %4062 = vmatpush1.msra.mxu0 0.0
    %4063 = vmatprep.subr.mxu0 0.0
    %4064 = vmatpush1.msra.mxu0 0.0
    %4065 = vmatprep.subr.mxu0 0.0
    %4066 = vmatpush1.msra.mxu0 0.0
    %4067 = vmatprep.subr.mxu0 0.0
    %4068 = vmatpush1.msra.mxu0 0.0
    %4069 = vmatprep.subr.mxu0 0.0
    %4070 = vmatpush1.msra.mxu0 0.0
    %4071 = vmatprep.subr.mxu0 0.0
    %4072 = vmatpush1.msra.mxu0 0.0
    %4073 = vmatprep.subr.mxu0 0.0
    %4074 = vmatpush1.msra.mxu0 0.0
    %4075 = vmatprep.subr.mxu0 0.0
    %4076 = vmatpush1.msra.mxu0 0.0
    %4077 = vmatprep.subr.mxu0 0.0
    %4078 = vmatpush1.msra.mxu0 0.0
    %4079 = vmatprep.mubr.f32.mxu0 0.0
    %4080 = vmatmul.mubr.f32.gmra.mrb[0].mxu0 %v4011
    %v4081 = vpop.f32.mrb[0].mxu0
    %v4082 = vadd.f32 0.0, %v4081
    %v4083 = vpop.f32.mrb[0].mxu0
    %4084 = vmatprep.mubr.f32.mxu0 0.0
    %4085 = vmatmul.mubr.f32.gmra.mrb[0].mxu0 %v4013
    %v4086 = vpop.f32.mrb[0].mxu0
    %v4087 = vadd.f32 0.0, %v4086
    %v4088 = vpop.f32.mrb[0].mxu0
    %4089 = vdwg.mxu0
    %v4090 = vcombine.low %v3477, %v3491
    %v4091 = vcombine.low %v3492, %v3493
    %v4092 = vcombine.low %v3484, %v3516
    %v4093 = vcombine.low %v3530, %v3531
    %v4095 = vunpack.c.l.s4 1966171168
    %v4096 = vunpack.c.0.s8 %v4095
    %v4097 = vlaneseq
    %v4098 = vshrl.u32 %v4097, 7
    %v4099 = vsub.s32 %v4096, %v4098
    %v4100 = vrot.slane %v4090, %v4099
    %v4102 = vunpack.c.l.s4 1966171168
    %v4103 = vunpack.c.0.s8 %v4102
    %v4104 = vlaneseq
    %v4105 = vshrl.u32 %v4104, 7
    %v4106 = vsub.s32 %v4103, %v4105
    %v4107 = vrot.slane %v4091, %v4106
    %v4109 = vunpack.c.l.s4 1966171168
    %v4110 = vunpack.c.0.s8 %v4109
    %v4111 = vlaneseq
    %v4112 = vshrl.u32 %v4111, 7
    %v4113 = vsub.s32 %v4110, %v4112
    %v4114 = vrot.slane %v4092, %v4113
    %v4116 = vunpack.c.l.s4 1966171168
    %v4117 = vunpack.c.0.s8 %v4116
    %v4118 = vlaneseq
    %v4119 = vshrl.u32 %v4118, 7
    %v4120 = vsub.s32 %v4117, %v4119
    %v4121 = vrot.slane %v4093, %v4120
    %v4122 = vcombine.low %v4100, %v4107
    %v4123 = vcombine.low %v4114, %v4121
    %v4125 = vunpack.c.l.s4 1966171168
    %v4126 = vunpack.c.0.s8 %v4125
    %v4127 = vlaneseq
    %v4128 = vshrl.u32 %v4127, 7
    %v4129 = vsub.s32 %v4126, %v4128
    %v4130 = vrot.slane %v4122, %v4129
    %v4132 = vunpack.c.l.s4 1966171168
    %v4133 = vunpack.c.0.s8 %v4132
    %v4134 = vlaneseq
    %v4135 = vshrl.u32 %v4134, 7
    %v4136 = vsub.s32 %v4133, %v4135
    %v4137 = vrot.slane %v4123, %v4136
    %v4138 = vcombine.low %v4130, %v4137
    %v4139 = vcombine.low %v3532, %v3523
    %v4141 = vunpack.c.l.s4 1966171168
    %v4142 = vunpack.c.0.s8 %v4141
    %v4143 = vlaneseq
    %v4144 = vshrl.u32 %v4143, 7
    %v4145 = vsub.s32 %v4142, %v4144
    %v4146 = vrot.slane %v4139, %v4145
    %v4148 = vunpack.c.l.s4 1966171168
    %v4149 = vunpack.c.0.s8 %v4148
    %v4150 = vlaneseq
    %v4151 = vshrl.u32 %v4150, 7
    %v4152 = vsub.s32 %v4149, %v4151
    %v4153 = vrot.slane %v4146, %v4152
    %v4154 = vsel %vm1037, %v4138, 0
    %v4156 = vsel %vm1037, %v4153, 0
    %4158 = vmatprep.subr.mxu0 0.0
    %4159 = vmatpush1.msra.mxu0 %v3041
    %4160 = vmatprep.subr.mxu0 0.0
    %4161 = vmatpush1.msra.mxu0 %v3042
    %4162 = vmatprep.subr.mxu0 0.0
    %4163 = vmatpush1.msra.mxu0 0.0
    %4164 = vmatprep.subr.mxu0 0.0
    %4165 = vmatpush1.msra.mxu0 0.0
    %4166 = vmatprep.subr.mxu0 0.0
    %4167 = vmatpush1.msra.mxu0 0.0
    %4168 = vmatprep.subr.mxu0 0.0
    %4169 = vmatpush1.msra.mxu0 0.0
    %4170 = vmatprep.subr.mxu0 0.0
    %4171 = vmatpush1.msra.mxu0 0.0
    %4172 = vmatprep.subr.mxu0 0.0
    %4173 = vmatpush1.msra.mxu0 0.0
    %4174 = vmatprep.subr.mxu0 0.0
    %4175 = vmatpush1.msra.mxu0 0.0
    %4176 = vmatprep.subr.mxu0 0.0
    %4177 = vmatpush1.msra.mxu0 0.0
    %4178 = vmatprep.subr.mxu0 0.0
    %4179 = vmatpush1.msra.mxu0 0.0
    %4180 = vmatprep.subr.mxu0 0.0
    %4181 = vmatpush1.msra.mxu0 0.0
    %4182 = vmatprep.subr.mxu0 0.0
    %4183 = vmatpush1.msra.mxu0 0.0
    %4184 = vmatprep.subr.mxu0 0.0
    %4185 = vmatpush1.msra.mxu0 0.0
    %4186 = vmatprep.subr.mxu0 0.0
    %4187 = vmatpush1.msra.mxu0 0.0
    %4188 = vmatprep.subr.mxu0 0.0
    %4189 = vmatpush1.msra.mxu0 0.0
    %4190 = vmatprep.subr.mxu0 0.0
    %4191 = vmatpush1.msra.mxu0 0.0
    %4192 = vmatprep.subr.mxu0 0.0
    %4193 = vmatpush1.msra.mxu0 0.0
    %4194 = vmatprep.subr.mxu0 0.0
    %4195 = vmatpush1.msra.mxu0 0.0
    %4196 = vmatprep.subr.mxu0 0.0
    %4197 = vmatpush1.msra.mxu0 0.0
    %4198 = vmatprep.subr.mxu0 0.0
    %4199 = vmatpush1.msra.mxu0 0.0
    %4200 = vmatprep.subr.mxu0 0.0
    %4201 = vmatpush1.msra.mxu0 0.0
    %4202 = vmatprep.subr.mxu0 0.0
    %4203 = vmatpush1.msra.mxu0 0.0
    %4204 = vmatprep.subr.mxu0 0.0
    %4205 = vmatpush1.msra.mxu0 0.0
    %4206 = vmatprep.subr.mxu0 0.0
    %4207 = vmatpush1.msra.mxu0 0.0
    %4208 = vmatprep.subr.mxu0 0.0
    %4209 = vmatpush1.msra.mxu0 0.0
    %4210 = vmatprep.subr.mxu0 0.0
    %4211 = vmatpush1.msra.mxu0 0.0
    %4212 = vmatprep.subr.mxu0 0.0
    %4213 = vmatpush1.msra.mxu0 0.0
    %4214 = vmatprep.subr.mxu0 0.0
    %4215 = vmatpush1.msra.mxu0 0.0
    %4216 = vmatprep.subr.mxu0 0.0
    %4217 = vmatpush1.msra.mxu0 0.0
    %4218 = vmatprep.subr.mxu0 0.0
    %4219 = vmatpush1.msra.mxu0 0.0
    %4220 = vmatprep.subr.mxu0 0.0
    %4221 = vmatpush1.msra.mxu0 0.0
    %4222 = vmatprep.mubr.f32.mxu0 0.0
    %4223 = vmatmul.mubr.f32.gmra.mrb[0].mxu0 %v4154
    %v4224 = vpop.f32.mrb[0].mxu0
    %v4225 = vadd.f32 %v4082, %v4224
    %v4226 = vpop.f32.mrb[0].mxu0
    %4227 = vmatprep.mubr.f32.mxu0 0.0
    %4228 = vmatmul.mubr.f32.gmra.mrb[0].mxu0 %v4156
    %v4229 = vpop.f32.mrb[0].mxu0
    %v4230 = vadd.f32 %v4087, %v4229
    %v4231 = vpop.f32.mrb[0].mxu0
    %4232 = vdwg.mxu0
    %v4233 = vlaneseq
    %v4234 = vshrl.u32 %v4233, 7
    %v4235 = vsub.s32 2, %v4234
    %v4236 = vrot.slane %v2833, %v4235
    %v4237 = vadd.f32 %v4225, %v4236
    %v4238 = vadd.f32 %v4230, %v4236
    %s4239 = scalar_lea.vmem %s10, 64
    %v4240 = vld [vmem:[%s4239] sm:$0xff]
    %v4241 = vld [vmem:[%s4239 + $0x8] sm:$0xff]
    %v4242 = vld [vmem:[%s4239 + $0x10] sm:$0xff]
    %v4243 = vld [vmem:[%s4239 + $0x18] sm:$0xff]
    %v4244 = vlaneseq
    %v4245 = vshrl.u32 %v4244, 7
    %v4246 = vsub.s32 3, %v4245
    %v4247 = vrot.slane %v2833, %v4246
    %v4249 = vsel %vm378, %v4237, 0
    %v4252 = vsel %vm378, %v4238, 0
    %4254 = vmatprep.subr.mxu0 0.0
    %4255 = vmatpush1.msra.mxu0 %v4240
    %4256 = vmatprep.subr.mxu0 0.0
    %4257 = vmatpush1.msra.mxu0 %v4241
    %4258 = vmatprep.subr.mxu0 0.0
    %4259 = vmatpush1.msra.mxu0 %v4242
    %4260 = vmatprep.subr.mxu0 0.0
    %4261 = vmatpush1.msra.mxu0 %v4243
    %4262 = vmatprep.subr.mxu0 0.0
    %4263 = vmatpush1.msra.mxu0 0.0
    %4264 = vmatprep.subr.mxu0 0.0
    %4265 = vmatpush1.msra.mxu0 0.0
    %4266 = vmatprep.subr.mxu0 0.0
    %4267 = vmatpush1.msra.mxu0 0.0
    %4268 = vmatprep.subr.mxu0 0.0
    %4269 = vmatpush1.msra.mxu0 0.0
    %4270 = vmatprep.subr.mxu0 0.0
    %4271 = vmatpush1.msra.mxu0 0.0
    %4272 = vmatprep.subr.mxu0 0.0
    %4273 = vmatpush1.msra.mxu0 0.0
    %4274 = vmatprep.subr.mxu0 0.0
    %4275 = vmatpush1.msra.mxu0 0.0
    %4276 = vmatprep.subr.mxu0 0.0
    %4277 = vmatpush1.msra.mxu0 0.0
    %4278 = vmatprep.subr.mxu0 0.0
    %4279 = vmatpush1.msra.mxu0 0.0
    %4280 = vmatprep.subr.mxu0 0.0
    %4281 = vmatpush1.msra.mxu0 0.0
    %4282 = vmatprep.subr.mxu0 0.0
    %4283 = vmatpush1.msra.mxu0 0.0
    %4284 = vmatprep.subr.mxu0 0.0
    %4285 = vmatpush1.msra.mxu0 0.0
    %4286 = vmatprep.subr.mxu0 0.0
    %4287 = vmatpush1.msra.mxu0 0.0
    %4288 = vmatprep.subr.mxu0 0.0
    %4289 = vmatpush1.msra.mxu0 0.0
    %4290 = vmatprep.subr.mxu0 0.0
    %4291 = vmatpush1.msra.mxu0 0.0
    %4292 = vmatprep.subr.mxu0 0.0
    %4293 = vmatpush1.msra.mxu0 0.0
    %4294 = vmatprep.subr.mxu0 0.0
    %4295 = vmatpush1.msra.mxu0 0.0
    %4296 = vmatprep.subr.mxu0 0.0
    %4297 = vmatpush1.msra.mxu0 0.0
    %4298 = vmatprep.subr.mxu0 0.0
    %4299 = vmatpush1.msra.mxu0 0.0
    %4300 = vmatprep.subr.mxu0 0.0
    %4301 = vmatpush1.msra.mxu0 0.0
    %4302 = vmatprep.subr.mxu0 0.0
    %4303 = vmatpush1.msra.mxu0 0.0
    %4304 = vmatprep.subr.mxu0 0.0
    %4305 = vmatpush1.msra.mxu0 0.0
    %4306 = vmatprep.subr.mxu0 0.0
    %4307 = vmatpush1.msra.mxu0 0.0
    %4308 = vmatprep.subr.mxu0 0.0
    %4309 = vmatpush1.msra.mxu0 0.0
    %4310 = vmatprep.subr.mxu0 0.0
    %4311 = vmatpush1.msra.mxu0 0.0
    %4312 = vmatprep.subr.mxu0 0.0
    %4313 = vmatpush1.msra.mxu0 0.0
    %4314 = vmatprep.subr.mxu0 0.0
    %4315 = vmatpush1.msra.mxu0 0.0
    %4316 = vmatprep.subr.mxu0 0.0
    %4317 = vmatpush1.msra.mxu0 0.0
    %4318 = vmatprep.mubr.f32.mxu0 0.0
    %4319 = vmatmul.mubr.f32.gmra.mrb[0].mxu0 %v4249
    %v4320 = vpop.f32.mrb[0].mxu0
    %v4321 = vadd.f32 %v4247, %v4320
    %v4322 = vpop.f32.mrb[0].mxu0
    %4323 = vmatprep.mubr.f32.mxu0 0.0
    %4324 = vmatmul.mubr.f32.gmra.mrb[0].mxu0 %v4252
    %v4325 = vpop.f32.mrb[0].mxu0
    %v4326 = vadd.f32 %v4247, %v4325
    %v4327 = vpop.f32.mrb[0].mxu0
    %4328 = vdwg.mxu0
    %v4329 = vmul.f32 %v4321, %v4321
    %v4330 = vmul.f32 %v4326, %v4326
    %v4331 = vmul.f32 %v4321, %v4329
    %v4332 = vmul.f32 %v4326, %v4330
    %v4333 = vmul.f32 %v4331, 0.044715
    %v4334 = vmul.f32 %v4332, 0.044715
    %v4335 = vadd.f32 %v4321, %v4333
    %v4336 = vadd.f32 %v4326, %v4334
    %v4337 = vmul.f32 %v4335, 0.7978846
    %v4338 = vmul.f32 %v4336, 0.7978846
    %v4339 = vtanh.pop %v4337
    %v4340 = vtanh.pop %v4338
    %v4341 = vadd.f32 %v4339, 1.0
    %v4342 = vadd.f32 %v4340, 1.0
    %v4343 = vmul.f32 %v4341, 0.5
    %v4344 = vmul.f32 %v4342, 0.5
    %v4345 = vmul.f32 %v4321, %v4343
    %v4346 = vmul.f32 %v4326, %v4344
    %s4347 = scalar_lea.vmem %s11, 16
    %v4348 = vld [vmem:[%s4347] sm:$0xff]
    %v4349 = vlaneseq
    %v4350 = vshrl.u32 %v4349, 7
    %v4351 = vsub.s32 4, %v4350
    %v4352 = vrot.slane %v2833, %v4351
    %v4354 = vsel %vm2306, %v4345, 0
    %v4357 = vsel %vm2306, %v4346, 0
    %4359 = vmatprep.subr.mxu0 0.0
    %4360 = vmatpush1.msra.mxu0 %v4348
    %4361 = vmatprep.subr.mxu0 0.0
    %4362 = vmatpush1.msra.mxu0 0.0
    %4363 = vmatprep.subr.mxu0 0.0
    %4364 = vmatpush1.msra.mxu0 0.0
    %4365 = vmatprep.subr.mxu0 0.0
    %4366 = vmatpush1.msra.mxu0 0.0
    %4367 = vmatprep.subr.mxu0 0.0
    %4368 = vmatpush1.msra.mxu0 0.0
    %4369 = vmatprep.subr.mxu0 0.0
    %4370 = vmatpush1.msra.mxu0 0.0
    %4371 = vmatprep.subr.mxu0 0.0
    %4372 = vmatpush1.msra.mxu0 0.0
    %4373 = vmatprep.subr.mxu0 0.0
    %4374 = vmatpush1.msra.mxu0 0.0
    %4375 = vmatprep.subr.mxu0 0.0
    %4376 = vmatpush1.msra.mxu0 0.0
    %4377 = vmatprep.subr.mxu0 0.0
    %4378 = vmatpush1.msra.mxu0 0.0
    %4379 = vmatprep.subr.mxu0 0.0
    %4380 = vmatpush1.msra.mxu0 0.0
    %4381 = vmatprep.subr.mxu0 0.0
    %4382 = vmatpush1.msra.mxu0 0.0
    %4383 = vmatprep.subr.mxu0 0.0
    %4384 = vmatpush1.msra.mxu0 0.0
    %4385 = vmatprep.subr.mxu0 0.0
    %4386 = vmatpush1.msra.mxu0 0.0
    %4387 = vmatprep.subr.mxu0 0.0
    %4388 = vmatpush1.msra.mxu0 0.0
    %4389 = vmatprep.subr.mxu0 0.0
    %4390 = vmatpush1.msra.mxu0 0.0
    %4391 = vmatprep.subr.mxu0 0.0
    %4392 = vmatpush1.msra.mxu0 0.0
    %4393 = vmatprep.subr.mxu0 0.0
    %4394 = vmatpush1.msra.mxu0 0.0
    %4395 = vmatprep.subr.mxu0 0.0
    %4396 = vmatpush1.msra.mxu0 0.0
    %4397 = vmatprep.subr.mxu0 0.0
    %4398 = vmatpush1.msra.mxu0 0.0
    %4399 = vmatprep.subr.mxu0 0.0
    %4400 = vmatpush1.msra.mxu0 0.0
    %4401 = vmatprep.subr.mxu0 0.0
    %4402 = vmatpush1.msra.mxu0 0.0
    %4403 = vmatprep.subr.mxu0 0.0
    %4404 = vmatpush1.msra.mxu0 0.0
    %4405 = vmatprep.subr.mxu0 0.0
    %4406 = vmatpush1.msra.mxu0 0.0
    %4407 = vmatprep.subr.mxu0 0.0
    %4408 = vmatpush1.msra.mxu0 0.0
    %4409 = vmatprep.subr.mxu0 0.0
    %4410 = vmatpush1.msra.mxu0 0.0
    %4411 = vmatprep.subr.mxu0 0.0
    %4412 = vmatpush1.msra.mxu0 0.0
    %4413 = vmatprep.subr.mxu0 0.0
    %4414 = vmatpush1.msra.mxu0 0.0
    %4415 = vmatprep.subr.mxu0 0.0
    %4416 = vmatpush1.msra.mxu0 0.0
    %4417 = vmatprep.subr.mxu0 0.0
    %4418 = vmatpush1.msra.mxu0 0.0
    %4419 = vmatprep.subr.mxu0 0.0
    %4420 = vmatpush1.msra.mxu0 0.0
    %4421 = vmatprep.subr.mxu0 0.0
    %4422 = vmatpush1.msra.mxu0 0.0
    %4423 = vmatprep.mubr.f32.mxu0 0.0
    %4424 = vmatmul.mubr.f32.gmra.mrb[0].mxu0 %v4354
    %v4425 = vpop.f32.mrb[0].mxu0
    %v4426 = vadd.f32 %v4352, %v4425
    %v4427 = vpop.f32.mrb[0].mxu0
    %4428 = vmatprep.mubr.f32.mxu0 0.0
    %4429 = vmatmul.mubr.f32.gmra.mrb[0].mxu0 %v4357
    %v4430 = vpop.f32.mrb[0].mxu0
    %v4431 = vadd.f32 %v4352, %v4430
    %v4432 = vpop.f32.mrb[0].mxu0
    %4433 = vdwg.mxu0
    %v4434 = vadd.f32 %v4426, %v4237
    %v4435 = vadd.f32 %v4431, %v4238
    %v4436 = vadd.f32 %v4434, %v2830
    %v4437 = vadd.f32 %v4435, %v2831
    %v4438 = vsel %vm378, %v4436, 0.0
    %4439 = vadd.xlane.f32.xlu0 %v4438
    %v4440 = vpop.xlane.xlu0 %4439
    %v4441 = vsel %vm382, %v4437, 0.0
    %4442 = vadd.xlane.f32.xlu0 %v4441
    %v4443 = vpop.xlane.xlu0 %4442
    %v4444 = vmul.f32 %v4440, %v386
    %v4445 = vmul.f32 %v4443, %v386
    %v4446 = vsub.f32 %v4436, %v4444
    %v4447 = vsub.f32 %v4437, %v4445
    %v4448 = vmul.f32 %v4446, %v4446
    %v4449 = vmul.f32 %v4447, %v4447
    %v4450 = vsel %vm378, %v4448, 0.0
    %4451 = vadd.xlane.f32.xlu0 %v4450
    %v4452 = vpop.xlane.xlu0 %4451
    %v4453 = vsel %vm382, %v4449, 0.0
    %4454 = vadd.xlane.f32.xlu0 %v4453
    %v4455 = vpop.xlane.xlu0 %4454
    %v4456 = vmul.f32 %v4452, %v386
    %v4457 = vmul.f32 %v4455, %v386
    %v4458 = vadd.f32 %v4456, 1e-12
    %v4459 = vadd.f32 %v4457, 1e-12
    %v4460 = vrsqrt.pop %v4458
    %v4461 = vrsqrt.pop %v4459
    %v4462 = vmul.f32 %v4446, %v4460
    %v4463 = vmul.f32 %v4447, %v4461
    %v4464 = vlaneseq
    %v4465 = vshrl.u32 %v4464, 7
    %v4466 = vsub.s32 5, %v4465
    %v4467 = vrot.slane %v2833, %v4466
    %v4468 = vmul.f32 %v4462, %v4467
    %v4469 = vmul.f32 %v4463, %v4467
    %v4470 = vlaneseq
    %v4471 = vshrl.u32 %v4470, 7
    %v4472 = vsub.s32 6, %v4471
    %v4473 = vrot.slane %v2833, %v4472
    %v4474 = vadd.f32 %v4468, %v4473
    %v4475 = vadd.f32 %v4469, %v4473
    %s4476 = scalar_lea.vmem %s7, 32
    %v4477 = vld [vmem:[%s4476] sm:$0xff]
    %v4478 = vld [vmem:[%s4476 + $0x8] sm:$0xff]
    %v4479 = vld [vmem:[%s4476 + $0x10] sm:$0xff]
    %v4480 = vld [vmem:[%s4476 + $0x18] sm:$0xff]
    %s4481 = scalar_lea.vmem %s8, 1
    %v4482 = vld [vmem:[%s4481] sm:$0x1]
    %v4484 = vlaneseq
    %v4485 = vshrl.u32 %v4484, 7
    %v4486 = vsub.s32 0, %v4485
    %v4487 = vrot.slane %v4482, %v4486
    %v4490 = vsel %vm378, %v4474, 0
    %v4493 = vsel %vm378, %v4475, 0
    %4495 = vmatprep.subr.mxu0 0.0
    %4496 = vmatpush1.msra.mxu0 %v4477
    %4497 = vmatprep.subr.mxu0 0.0
    %4498 = vmatpush1.msra.mxu0 %v4478
    %4499 = vmatprep.subr.mxu0 0.0
    %4500 = vmatpush1.msra.mxu0 %v4479
    %4501 = vmatprep.subr.mxu0 0.0
    %4502 = vmatpush1.msra.mxu0 %v4480
    %4503 = vmatprep.subr.mxu0 0.0
    %4504 = vmatpush1.msra.mxu0 0.0
    %4505 = vmatprep.subr.mxu0 0.0
    %4506 = vmatpush1.msra.mxu0 0.0
    %4507 = vmatprep.subr.mxu0 0.0
    %4508 = vmatpush1.msra.mxu0 0.0
    %4509 = vmatprep.subr.mxu0 0.0
    %4510 = vmatpush1.msra.mxu0 0.0
    %4511 = vmatprep.subr.mxu0 0.0
    %4512 = vmatpush1.msra.mxu0 0.0
    %4513 = vmatprep.subr.mxu0 0.0
    %4514 = vmatpush1.msra.mxu0 0.0
    %4515 = vmatprep.subr.mxu0 0.0
    %4516 = vmatpush1.msra.mxu0 0.0
    %4517 = vmatprep.subr.mxu0 0.0
    %4518 = vmatpush1.msra.mxu0 0.0
    %4519 = vmatprep.subr.mxu0 0.0
    %4520 = vmatpush1.msra.mxu0 0.0
    %4521 = vmatprep.subr.mxu0 0.0
    %4522 = vmatpush1.msra.mxu0 0.0
    %4523 = vmatprep.subr.mxu0 0.0
    %4524 = vmatpush1.msra.mxu0 0.0
    %4525 = vmatprep.subr.mxu0 0.0
    %4526 = vmatpush1.msra.mxu0 0.0
    %4527 = vmatprep.subr.mxu0 0.0
    %4528 = vmatpush1.msra.mxu0 0.0
    %4529 = vmatprep.subr.mxu0 0.0
    %4530 = vmatpush1.msra.mxu0 0.0
    %4531 = vmatprep.subr.mxu0 0.0
    %4532 = vmatpush1.msra.mxu0 0.0
    %4533 = vmatprep.subr.mxu0 0.0
    %4534 = vmatpush1.msra.mxu0 0.0
    %4535 = vmatprep.subr.mxu0 0.0
    %4536 = vmatpush1.msra.mxu0 0.0
    %4537 = vmatprep.subr.mxu0 0.0
    %4538 = vmatpush1.msra.mxu0 0.0
    %4539 = vmatprep.subr.mxu0 0.0
    %4540 = vmatpush1.msra.mxu0 0.0
    %4541 = vmatprep.subr.mxu0 0.0
    %4542 = vmatpush1.msra.mxu0 0.0
    %4543 = vmatprep.subr.mxu0 0.0
    %4544 = vmatpush1.msra.mxu0 0.0
    %4545 = vmatprep.subr.mxu0 0.0
    %4546 = vmatpush1.msra.mxu0 0.0
    %4547 = vmatprep.subr.mxu0 0.0
    %4548 = vmatpush1.msra.mxu0 0.0
    %4549 = vmatprep.subr.mxu0 0.0
    %4550 = vmatpush1.msra.mxu0 0.0
    %4551 = vmatprep.subr.mxu0 0.0
    %4552 = vmatpush1.msra.mxu0 0.0
    %4553 = vmatprep.subr.mxu0 0.0
    %4554 = vmatpush1.msra.mxu0 0.0
    %4555 = vmatprep.subr.mxu0 0.0
    %4556 = vmatpush1.msra.mxu0 0.0
    %4557 = vmatprep.subr.mxu0 0.0
    %4558 = vmatpush1.msra.mxu0 0.0
    %4559 = vmatprep.mubr.f32.mxu0 0.0
    %4560 = vmatmul.mubr.f32.gmra.mrb[0].mxu0 %v4490
    %v4561 = vpop.f32.mrb[0].mxu0
    %v4562 = vadd.f32 %v4487, %v4561
    %v4563 = vpop.f32.mrb[0].mxu0
    %4564 = vmatprep.mubr.f32.mxu0 0.0
    %4565 = vmatmul.mubr.f32.gmra.mrb[0].mxu0 %v4493
    %v4566 = vpop.f32.mrb[0].mxu0
    %v4567 = vadd.f32 %v4487, %v4566
    %v4568 = vpop.f32.mrb[0].mxu0
    %4569 = vdwg.mxu0
    %v4570 = vmul.f32 %v4562, %v4562
    %v4571 = vmul.f32 %v4567, %v4567
    %v4572 = vmul.f32 %v4562, %v4570
    %v4573 = vmul.f32 %v4567, %v4571
    %v4574 = vmul.f32 %v4572, 0.044715
    %v4575 = vmul.f32 %v4573, 0.044715
    %v4576 = vadd.f32 %v4562, %v4574
    %v4577 = vadd.f32 %v4567, %v4575
    %v4578 = vmul.f32 %v4576, 0.7978846
    %v4579 = vmul.f32 %v4577, 0.7978846
    %v4580 = vtanh.pop %v4578
    %v4581 = vtanh.pop %v4579
    %v4582 = vadd.f32 %v4580, 1.0
    %v4583 = vadd.f32 %v4581, 1.0
    %v4584 = vmul.f32 %v4582, 0.5
    %v4585 = vmul.f32 %v4583, 0.5
    %v4586 = vmul.f32 %v4562, %v4584
    %v4587 = vmul.f32 %v4567, %v4585
    %s4588 = scalar_lea.vmem %s9, 64
    %v4589 = vld [vmem:[%s4588] sm:$0xff]
    %v4590 = vld [vmem:[%s4588 + $0x8] sm:$0xff]
    %v4591 = vld [vmem:[%s4588 + $0x10] sm:$0xff]
    %v4592 = vld [vmem:[%s4588 + $0x18] sm:$0xff]
    %v4593 = vld [vmem:[%s4588 + $0x20] sm:$0xff]
    %v4594 = vld [vmem:[%s4588 + $0x28] sm:$0xff]
    %v4595 = vld [vmem:[%s4588 + $0x30] sm:$0xff]
    %v4596 = vld [vmem:[%s4588 + $0x38] sm:$0xff]
    %v4597 = vlaneseq
    %v4598 = vshrl.u32 %v4597, 7
    %v4599 = vsub.s32 7, %v4598
    %v4600 = vrot.slane %v2833, %v4599
    %v4602 = vsel %vm79, %v4586, 0
    %v4605 = vsel %vm79, %v4587, 0
    %4607 = vmatprep.subr.mxu0 0.0
    %4608 = vmatpush1.msra.mxu0 %v4589
    %4609 = vmatprep.subr.mxu0 0.0
    %4610 = vmatpush1.msra.mxu0 %v4590
    %4611 = vmatprep.subr.mxu0 0.0
    %4612 = vmatpush1.msra.mxu0 %v4591
    %4613 = vmatprep.subr.mxu0 0.0
    %4614 = vmatpush1.msra.mxu0 %v4592
    %4615 = vmatprep.subr.mxu0 0.0
    %4616 = vmatpush1.msra.mxu0 %v4593
    %4617 = vmatprep.subr.mxu0 0.0
    %4618 = vmatpush1.msra.mxu0 %v4594
    %4619 = vmatprep.subr.mxu0 0.0
    %4620 = vmatpush1.msra.mxu0 %v4595
    %4621 = vmatprep.subr.mxu0 0.0
    %4622 = vmatpush1.msra.mxu0 %v4596
    %4623 = vmatprep.subr.mxu0 0.0
    %4624 = vmatpush1.msra.mxu0 0.0
    %4625 = vmatprep.subr.mxu0 0.0
    %4626 = vmatpush1.msra.mxu0 0.0
    %4627 = vmatprep.subr.mxu0 0.0
    %4628 = vmatpush1.msra.mxu0 0.0
    %4629 = vmatprep.subr.mxu0 0.0
    %4630 = vmatpush1.msra.mxu0 0.0
    %4631 = vmatprep.subr.mxu0 0.0
    %4632 = vmatpush1.msra.mxu0 0.0
    %4633 = vmatprep.subr.mxu0 0.0
    %4634 = vmatpush1.msra.mxu0 0.0
    %4635 = vmatprep.subr.mxu0 0.0
    %4636 = vmatpush1.msra.mxu0 0.0
    %4637 = vmatprep.subr.mxu0 0.0
    %4638 = vmatpush1.msra.mxu0 0.0
    %4639 = vmatprep.subr.mxu0 0.0
    %4640 = vmatpush1.msra.mxu0 0.0
    %4641 = vmatprep.subr.mxu0 0.0
    %4642 = vmatpush1.msra.mxu0 0.0
    %4643 = vmatprep.subr.mxu0 0.0
    %4644 = vmatpush1.msra.mxu0 0.0
    %4645 = vmatprep.subr.mxu0 0.0
    %4646 = vmatpush1.msra.mxu0 0.0
    %4647 = vmatprep.subr.mxu0 0.0
    %4648 = vmatpush1.msra.mxu0 0.0
    %4649 = vmatprep.subr.mxu0 0.0
    %4650 = vmatpush1.msra.mxu0 0.0
    %4651 = vmatprep.subr.mxu0 0.0
    %4652 = vmatpush1.msra.mxu0 0.0
    %4653 = vmatprep.subr.mxu0 0.0
    %4654 = vmatpush1.msra.mxu0 0.0
    %4655 = vmatprep.subr.mxu0 0.0
    %4656 = vmatpush1.msra.mxu0 0.0
    %4657 = vmatprep.subr.mxu0 0.0
    %4658 = vmatpush1.msra.mxu0 0.0
    %4659 = vmatprep.subr.mxu0 0.0
    %4660 = vmatpush1.msra.mxu0 0.0
    %4661 = vmatprep.subr.mxu0 0.0
    %4662 = vmatpush1.msra.mxu0 0.0
    %4663 = vmatprep.subr.mxu0 0.0
    %4664 = vmatpush1.msra.mxu0 0.0
    %4665 = vmatprep.subr.mxu0 0.0
    %4666 = vmatpush1.msra.mxu0 0.0
    %4667 = vmatprep.subr.mxu0 0.0
    %4668 = vmatpush1.msra.mxu0 0.0
    %4669 = vmatprep.subr.mxu0 0.0
    %4670 = vmatpush1.msra.mxu0 0.0
    %4671 = vmatprep.mubr.f32.mxu0 0.0
    %4672 = vmatmul.mubr.f32.gmra.mrb[0].mxu0 %v4602
    %v4673 = vpop.f32.mrb[0].mxu0
    %v4674 = vadd.f32 %v4600, %v4673
    %v4675 = vpop.f32.mrb[0].mxu0
    %4676 = vmatprep.mubr.f32.mxu0 0.0
    %4677 = vmatmul.mubr.f32.gmra.mrb[0].mxu0 %v4605
    %v4678 = vpop.f32.mrb[0].mxu0
    %v4679 = vadd.f32 %v4600, %v4678
    %v4680 = vpop.f32.mrb[0].mxu0
    %4681 = vdwg.mxu0
    %s4682 = scalar_lea.vmem %s10, 96
    %v4683 = vld [vmem:[%s4682] sm:$0xff]
    %v4684 = vld [vmem:[%s4682 + $0x8] sm:$0xff]
    %v4685 = vld [vmem:[%s4682 + $0x10] sm:$0xff]
    %v4686 = vld [vmem:[%s4682 + $0x18] sm:$0xff]
    %v4687 = vlaneseq
    %v4688 = vshrl.u32 %v4687, 7
    %v4689 = vsub.s32 0, %v4688
    %v4690 = vrot.slane %v2834, %v4689
    %v4692 = vsel %vm378, %v4674, 0
    %v4695 = vsel %vm378, %v4679, 0
    %4697 = vmatprep.subr.mxu0 0.0
    %4698 = vmatpush1.msra.mxu0 %v4683
    %4699 = vmatprep.subr.mxu0 0.0
    %4700 = vmatpush1.msra.mxu0 %v4684
    %4701 = vmatprep.subr.mxu0 0.0
    %4702 = vmatpush1.msra.mxu0 %v4685
    %4703 = vmatprep.subr.mxu0 0.0
    %4704 = vmatpush1.msra.mxu0 %v4686
    %4705 = vmatprep.subr.mxu0 0.0
    %4706 = vmatpush1.msra.mxu0 0.0
    %4707 = vmatprep.subr.mxu0 0.0
    %4708 = vmatpush1.msra.mxu0 0.0
    %4709 = vmatprep.subr.mxu0 0.0
    %4710 = vmatpush1.msra.mxu0 0.0
    %4711 = vmatprep.subr.mxu0 0.0
    %4712 = vmatpush1.msra.mxu0 0.0
    %4713 = vmatprep.subr.mxu0 0.0
    %4714 = vmatpush1.msra.mxu0 0.0
    %4715 = vmatprep.subr.mxu0 0.0
    %4716 = vmatpush1.msra.mxu0 0.0
    %4717 = vmatprep.subr.mxu0 0.0
    %4718 = vmatpush1.msra.mxu0 0.0
    %4719 = vmatprep.subr.mxu0 0.0
    %4720 = vmatpush1.msra.mxu0 0.0
    %4721 = vmatprep.subr.mxu0 0.0
    %4722 = vmatpush1.msra.mxu0 0.0
    %4723 = vmatprep.subr.mxu0 0.0
    %4724 = vmatpush1.msra.mxu0 0.0
    %4725 = vmatprep.subr.mxu0 0.0
    %4726 = vmatpush1.msra.mxu0 0.0
    %4727 = vmatprep.subr.mxu0 0.0
    %4728 = vmatpush1.msra.mxu0 0.0
    %4729 = vmatprep.subr.mxu0 0.0
    %4730 = vmatpush1.msra.mxu0 0.0
    %4731 = vmatprep.subr.mxu0 0.0
    %4732 = vmatpush1.msra.mxu0 0.0
    %4733 = vmatprep.subr.mxu0 0.0
    %4734 = vmatpush1.msra.mxu0 0.0
    %4735 = vmatprep.subr.mxu0 0.0
    %4736 = vmatpush1.msra.mxu0 0.0
    %4737 = vmatprep.subr.mxu0 0.0
    %4738 = vmatpush1.msra.mxu0 0.0
    %4739 = vmatprep.subr.mxu0 0.0
    %4740 = vmatpush1.msra.mxu0 0.0
    %4741 = vmatprep.subr.mxu0 0.0
    %4742 = vmatpush1.msra.mxu0 0.0
    %4743 = vmatprep.subr.mxu0 0.0
    %4744 = vmatpush1.msra.mxu0 0.0
    %4745 = vmatprep.subr.mxu0 0.0
    %4746 = vmatpush1.msra.mxu0 0.0
    %4747 = vmatprep.subr.mxu0 0.0
    %4748 = vmatpush1.msra.mxu0 0.0
    %4749 = vmatprep.subr.mxu0 0.0
    %4750 = vmatpush1.msra.mxu0 0.0
    %4751 = vmatprep.subr.mxu0 0.0
    %4752 = vmatpush1.msra.mxu0 0.0
    %4753 = vmatprep.subr.mxu0 0.0
    %4754 = vmatpush1.msra.mxu0 0.0
    %4755 = vmatprep.subr.mxu0 0.0
    %4756 = vmatpush1.msra.mxu0 0.0
    %4757 = vmatprep.subr.mxu0 0.0
    %4758 = vmatpush1.msra.mxu0 0.0
    %4759 = vmatprep.subr.mxu0 0.0
    %4760 = vmatpush1.msra.mxu0 0.0
    %4761 = vmatprep.mubr.f32.mxu0 0.0
    %4762 = vmatmul.mubr.f32.gmra.mrb[0].mxu0 %v4692
    %v4763 = vpop.f32.mrb[0].mxu0
    %v4764 = vadd.f32 %v4690, %v4763
    %v4765 = vpop.f32.mrb[0].mxu0
    %4766 = vmatprep.mubr.f32.mxu0 0.0
    %4767 = vmatmul.mubr.f32.gmra.mrb[0].mxu0 %v4695
    %v4768 = vpop.f32.mrb[0].mxu0
    %v4769 = vadd.f32 %v4690, %v4768
    %v4770 = vpop.f32.mrb[0].mxu0
    %4771 = vdwg.mxu0
    %v4772 = vmul.f32 %v4764, %v4764
    %v4773 = vmul.f32 %v4769, %v4769
    %v4774 = vmul.f32 %v4764, %v4772
    %v4775 = vmul.f32 %v4769, %v4773
    %v4776 = vmul.f32 %v4774, 0.044715
    %v4777 = vmul.f32 %v4775, 0.044715
    %v4778 = vadd.f32 %v4764, %v4776
    %v4779 = vadd.f32 %v4769, %v4777
    %v4780 = vmul.f32 %v4778, 0.7978846
    %v4781 = vmul.f32 %v4779, 0.7978846
    %v4782 = vtanh.pop %v4780
    %v4783 = vtanh.pop %v4781
    %v4784 = vadd.f32 %v4782, 1.0
    %v4785 = vadd.f32 %v4783, 1.0
    %v4786 = vmul.f32 %v4784, 0.5
    %v4787 = vmul.f32 %v4785, 0.5
    %v4788 = vmul.f32 %v4764, %v4786
    %v4789 = vmul.f32 %v4769, %v4787
    %s4790 = scalar_lea.vmem %s11, 24
    %v4791 = vld [vmem:[%s4790] sm:$0xff]
    %v4792 = vlaneseq
    %v4793 = vshrl.u32 %v4792, 7
    %v4794 = vsub.s32 1, %v4793
    %v4795 = vrot.slane %v2834, %v4794
    %v4797 = vsel %vm2306, %v4788, 0
    %v4800 = vsel %vm2306, %v4789, 0
    %4802 = vmatprep.subr.mxu0 0.0
    %4803 = vmatpush1.msra.mxu0 %v4791
    %4804 = vmatprep.subr.mxu0 0.0
    %4805 = vmatpush1.msra.mxu0 0.0
    %4806 = vmatprep.subr.mxu0 0.0
    %4807 = vmatpush1.msra.mxu0 0.0
    %4808 = vmatprep.subr.mxu0 0.0
    %4809 = vmatpush1.msra.mxu0 0.0
    %4810 = vmatprep.subr.mxu0 0.0
    %4811 = vmatpush1.msra.mxu0 0.0
    %4812 = vmatprep.subr.mxu0 0.0
    %4813 = vmatpush1.msra.mxu0 0.0
    %4814 = vmatprep.subr.mxu0 0.0
    %4815 = vmatpush1.msra.mxu0 0.0
    %4816 = vmatprep.subr.mxu0 0.0
    %4817 = vmatpush1.msra.mxu0 0.0
    %4818 = vmatprep.subr.mxu0 0.0
    %4819 = vmatpush1.msra.mxu0 0.0
    %4820 = vmatprep.subr.mxu0 0.0
    %4821 = vmatpush1.msra.mxu0 0.0
    %4822 = vmatprep.subr.mxu0 0.0
    %4823 = vmatpush1.msra.mxu0 0.0
    %4824 = vmatprep.subr.mxu0 0.0
    %4825 = vmatpush1.msra.mxu0 0.0
    %4826 = vmatprep.subr.mxu0 0.0
    %4827 = vmatpush1.msra.mxu0 0.0
    %4828 = vmatprep.subr.mxu0 0.0
    %4829 = vmatpush1.msra.mxu0 0.0
    %4830 = vmatprep.subr.mxu0 0.0
    %4831 = vmatpush1.msra.mxu0 0.0
    %4832 = vmatprep.subr.mxu0 0.0
    %4833 = vmatpush1.msra.mxu0 0.0
    %4834 = vmatprep.subr.mxu0 0.0
    %4835 = vmatpush1.msra.mxu0 0.0
    %4836 = vmatprep.subr.mxu0 0.0
    %4837 = vmatpush1.msra.mxu0 0.0
    %4838 = vmatprep.subr.mxu0 0.0
    %4839 = vmatpush1.msra.mxu0 0.0
    %4840 = vmatprep.subr.mxu0 0.0
    %4841 = vmatpush1.msra.mxu0 0.0
    %4842 = vmatprep.subr.mxu0 0.0
    %4843 = vmatpush1.msra.mxu0 0.0
    %4844 = vmatprep.subr.mxu0 0.0
    %4845 = vmatpush1.msra.mxu0 0.0
    %4846 = vmatprep.subr.mxu0 0.0
    %4847 = vmatpush1.msra.mxu0 0.0
    %4848 = vmatprep.subr.mxu0 0.0
    %4849 = vmatpush1.msra.mxu0 0.0
    %4850 = vmatprep.subr.mxu0 0.0
    %4851 = vmatpush1.msra.mxu0 0.0
    %4852 = vmatprep.subr.mxu0 0.0
    %4853 = vmatpush1.msra.mxu0 0.0
    %4854 = vmatprep.subr.mxu0 0.0
    %4855 = vmatpush1.msra.mxu0 0.0
    %4856 = vmatprep.subr.mxu0 0.0
    %4857 = vmatpush1.msra.mxu0 0.0
    %4858 = vmatprep.subr.mxu0 0.0
    %4859 = vmatpush1.msra.mxu0 0.0
    %4860 = vmatprep.subr.mxu0 0.0
    %4861 = vmatpush1.msra.mxu0 0.0
    %4862 = vmatprep.subr.mxu0 0.0
    %4863 = vmatpush1.msra.mxu0 0.0
    %4864 = vmatprep.subr.mxu0 0.0
    %4865 = vmatpush1.msra.mxu0 0.0
    %4866 = vmatprep.mubr.f32.mxu0 0.0
    %4867 = vmatmul.mubr.f32.gmra.mrb[0].mxu0 %v4797
    %v4868 = vpop.f32.mrb[0].mxu0
    %v4869 = vadd.f32 %v4795, %v4868
    %v4870 = vpop.f32.mrb[0].mxu0
    %4871 = vmatprep.mubr.f32.mxu0 0.0
    %4872 = vmatmul.mubr.f32.gmra.mrb[0].mxu0 %v4800
    %v4873 = vpop.f32.mrb[0].mxu0
    %v4874 = vadd.f32 %v4795, %v4873
    %v4875 = vpop.f32.mrb[0].mxu0
    %4876 = vdwg.mxu0
    %v4877 = vadd.f32 %v4869, %v4674
    %v4878 = vadd.f32 %v4874, %v4679
    %v4879 = vadd.f32 %v4877, %v4436
    %v4880 = vadd.f32 %v4878, %v4437
    %v4881 = vsel %vm378, %v4879, 0.0
    %4882 = vadd.xlane.f32.xlu0 %v4881
    %v4883 = vpop.xlane.xlu0 %4882
    %v4884 = vsel %vm382, %v4880, 0.0
    %4885 = vadd.xlane.f32.xlu0 %v4884
    %v4886 = vpop.xlane.xlu0 %4885
    %v4887 = vmul.f32 %v4883, %v386
    %v4888 = vmul.f32 %v4886, %v386
    %v4889 = vsub.f32 %v4879, %v4887
    %v4890 = vsub.f32 %v4880, %v4888
    %v4891 = vmul.f32 %v4889, %v4889
    %v4892 = vmul.f32 %v4890, %v4890
    %v4893 = vsel %vm378, %v4891, 0.0
    %4894 = vadd.xlane.f32.xlu0 %v4893
    %v4895 = vpop.xlane.xlu0 %4894
    %v4896 = vsel %vm382, %v4892, 0.0
    %4897 = vadd.xlane.f32.xlu0 %v4896
    %v4898 = vpop.xlane.xlu0 %4897
    %v4899 = vmul.f32 %v4895, %v386
    %v4900 = vmul.f32 %v4898, %v386
    %v4901 = vadd.f32 %v4899, 1e-12
    %v4902 = vadd.f32 %v4900, 1e-12
    %v4903 = vrsqrt.pop %v4901
    %v4904 = vrsqrt.pop %v4902
    %v4905 = vmul.f32 %v4889, %v4903
    %v4906 = vmul.f32 %v4890, %v4904
    %v4907 = vlaneseq
    %v4908 = vshrl.u32 %v4907, 7
    %v4909 = vsub.s32 0, %v4908
    %v4910 = vrot.slane %v50, %v4909
    %v4911 = vmul.f32 %v4905, %v4910
    %v4912 = vmul.f32 %v4906, %v4910
    %v4913 = vlaneseq
    %v4914 = vshrl.u32 %v4913, 7
    %v4915 = vsub.s32 1, %v4914
    %v4916 = vrot.slane %v50, %v4915
    %v4917 = vadd.f32 %v4911, %v4916
    %v4918 = vadd.f32 %v4912, %v4916
    %v4921 = vcombine.high %v4917, %v4917
    %v4923 = vunpack.c.l.s4 1966171168
    %v4924 = vunpack.c.0.s8 %v4923
    %v4925 = vlaneseq
    %v4926 = vshrl.u32 %v4925, 7
    %v4927 = vsub.s32 %v4924, %v4926
    %v4928 = vrot.slane %v4917, %v4927
    %v4930 = vunpack.c.l.s4 1966171168
    %v4931 = vunpack.c.0.s8 %v4930
    %v4932 = vlaneseq
    %v4933 = vshrl.u32 %v4932, 7
    %v4934 = vsub.s32 %v4931, %v4933
    %v4935 = vrot.slane %v4921, %v4934
    %v4936 = vcombine.high %v4928, %v4928
    %v4937 = vcombine.high %v4935, %v4935
    %v4939 = vunpack.c.l.s4 1966171168
    %v4940 = vunpack.c.0.s8 %v4939
    %v4941 = vlaneseq
    %v4942 = vshrl.u32 %v4941, 7
    %v4943 = vsub.s32 %v4940, %v4942
    %v4944 = vrot.slane %v4928, %v4943
    %v4946 = vunpack.c.l.s4 1966171168
    %v4947 = vunpack.c.0.s8 %v4946
    %v4948 = vlaneseq
    %v4949 = vshrl.u32 %v4948, 7
    %v4950 = vsub.s32 %v4947, %v4949
    %v4951 = vrot.slane %v4935, %v4950
    %v4953 = vunpack.c.l.s4 1966171168
    %v4954 = vunpack.c.0.s8 %v4953
    %v4955 = vlaneseq
    %v4956 = vshrl.u32 %v4955, 7
    %v4957 = vsub.s32 %v4954, %v4956
    %v4958 = vrot.slane %v4936, %v4957
    %v4960 = vunpack.c.l.s4 1966171168
    %v4961 = vunpack.c.0.s8 %v4960
    %v4962 = vlaneseq
    %v4963 = vshrl.u32 %v4962, 7
    %v4964 = vsub.s32 %v4961, %v4963
    %v4965 = vrot.slane %v4937, %v4964
    %v4966 = vcombine.high %v4944, %v4944
    %v4967 = vcombine.high %v4951, %v4951
    %v4968 = vcombine.high %v4958, %v4958
    %v4969 = vcombine.high %v4965, %v4965
    %v4971 = vunpack.c.l.s4 1966171168
    %v4972 = vunpack.c.0.s8 %v4971
    %v4973 = vlaneseq
    %v4974 = vshrl.u32 %v4973, 7
    %v4975 = vsub.s32 %v4972, %v4974
    %v4976 = vrot.slane %v4918, %v4975
    %v4977 = vcombine.high %v4976, %v4976
    %v4979 = vunpack.c.l.s4 1966171168
    %v4980 = vunpack.c.0.s8 %v4979
    %v4981 = vlaneseq
    %v4982 = vshrl.u32 %v4981, 7
    %v4983 = vsub.s32 %v4980, %v4982
    %v4984 = vrot.slane %v4976, %v4983
    %v4986 = vunpack.c.l.s4 1966171168
    %v4987 = vunpack.c.0.s8 %v4986
    %v4988 = vlaneseq
    %v4989 = vshrl.u32 %v4988, 7
    %v4990 = vsub.s32 %v4987, %v4989
    %v4991 = vrot.slane %v4977, %v4990
    %v4992 = vcombine.low %v4944, %v4958
    %v4993 = vcombine.low %v4966, %v4968
    %v4995 = vunpack.c.l.s4 1966171168
    %v4996 = vunpack.c.0.s8 %v4995
    %v4997 = vlaneseq
    %v4998 = vshrl.u32 %v4997, 7
    %v4999 = vsub.s32 %v4996, %v4998
    %v5000 = vrot.slane %v4992, %v4999
    %v5002 = vunpack.c.l.s4 1966171168
    %v5003 = vunpack.c.0.s8 %v5002
    %v5004 = vlaneseq
    %v5005 = vshrl.u32 %v5004, 7
    %v5006 = vsub.s32 %v5003, %v5005
    %v5007 = vrot.slane %v4993, %v5006
    %v5009 = vunpack.c.l.s4 1966171168
    %v5010 = vunpack.c.0.s8 %v5009
    %v5011 = vlaneseq
    %v5012 = vshrl.u32 %v5011, 7
    %v5013 = vsub.s32 %v5010, %v5012
    %v5014 = vrot.slane %v4951, %v5013
    %v5015 = vcombine.low %v5000, %v5007
    %v5017 = vunpack.c.l.s4 1966171168
    %v5018 = vunpack.c.0.s8 %v5017
    %v5019 = vlaneseq
    %v5020 = vshrl.u32 %v5019, 7
    %v5021 = vsub.s32 %v5018, %v5020
    %v5022 = vrot.slane %v5015, %v5021
    %v5024 = vunpack.c.l.s4 1966171168
    %v5025 = vunpack.c.0.s8 %v5024
    %v5026 = vlaneseq
    %v5027 = vshrl.u32 %v5026, 7
    %v5028 = vsub.s32 %v5025, %v5027
    %v5029 = vrot.slane %v5014, %v5028
    %v5030 = vcombine.low %v5022, %v5029
    %v5031 = vcombine.low %v4965, %v4967
    %v5032 = vcombine.low %v4969, %v4984
    %v5034 = vunpack.c.l.s4 1966171168
    %v5035 = vunpack.c.0.s8 %v5034
    %v5036 = vlaneseq
    %v5037 = vshrl.u32 %v5036, 7
    %v5038 = vsub.s32 %v5035, %v5037
    %v5039 = vrot.slane %v5031, %v5038
    %v5041 = vunpack.c.l.s4 1966171168
    %v5042 = vunpack.c.0.s8 %v5041
    %v5043 = vlaneseq
    %v5044 = vshrl.u32 %v5043, 7
    %v5045 = vsub.s32 %v5042, %v5044
    %v5046 = vrot.slane %v5032, %v5045
    %v5048 = vunpack.c.l.s4 1966171168
    %v5049 = vunpack.c.0.s8 %v5048
    %v5050 = vlaneseq
    %v5051 = vshrl.u32 %v5050, 7
    %v5052 = vsub.s32 %v5049, %v5051
    %v5053 = vrot.slane %v4991, %v5052
    %v5054 = vcombine.low %v5039, %v5046
    %v5056 = vunpack.c.l.s4 1966171168
    %v5057 = vunpack.c.0.s8 %v5056
    %v5058 = vlaneseq
    %v5059 = vshrl.u32 %v5058, 7
    %v5060 = vsub.s32 %v5057, %v5059
    %v5061 = vrot.slane %v5054, %v5060
    %v5063 = vunpack.c.l.s4 1966171168
    %v5064 = vunpack.c.0.s8 %v5063
    %v5065 = vlaneseq
    %v5066 = vshrl.u32 %v5065, 7
    %v5067 = vsub.s32 %v5064, %v5066
    %v5068 = vrot.slane %v5053, %v5067
    %v5069 = vcombine.low %v5061, %v5068
    %vm5072 = vcmask 258048
    %5073 = vst.msk [vmem:[%s14] sm:$0x1f] %vm5072, %v5030
    %5074 = vst.msk [vmem:[%s14 + $0x8] sm:$0x1f] %vm5072, %v5069
    %v5075 = vld [vmem:[%s13] sm:$0xff]
    %v5076 = vld [vmem:[%s13 + $0x8] sm:$0xff]
    %v5077 = vld [vmem:[%s13 + $0x10] sm:$0xff]
    %v5078 = vld [vmem:[%s13 + $0x18] sm:$0xff]
    %v5079 = vlaneseq
    %v5080 = vshrl.u32 %v5079, 7
    %v5081 = vsub.s32 2, %v5080
    %v5082 = vrot.slane %v50, %v5081
    %v5083 = vcombine.low %v4944, %v4965
    %v5085 = vunpack.c.l.s4 1966171168
    %v5086 = vunpack.c.0.s8 %v5085
    %v5087 = vlaneseq
    %v5088 = vshrl.u32 %v5087, 7
    %v5089 = vsub.s32 %v5086, %v5088
    %v5090 = vrot.slane %v5083, %v5089
    %v5092 = vunpack.c.l.s4 1966171168
    %v5093 = vunpack.c.0.s8 %v5092
    %v5094 = vlaneseq
    %v5095 = vshrl.u32 %v5094, 7
    %v5096 = vsub.s32 %v5093, %v5095
    %v5097 = vrot.slane %v5090, %v5096
    %v5098 = vsel %vm378, %v5097, 0
    %5100 = vmatprep.subr.mxu0 0.0
    %5101 = vmatpush1.msra.mxu0 %v5075
    %5102 = vmatprep.subr.mxu0 0.0
    %5103 = vmatpush1.msra.mxu0 %v5076
    %5104 = vmatprep.subr.mxu0 0.0
    %5105 = vmatpush1.msra.mxu0 %v5077
    %5106 = vmatprep.subr.mxu0 0.0
    %5107 = vmatpush1.msra.mxu0 %v5078
    %5108 = vmatprep.subr.mxu0 0.0
    %5109 = vmatpush1.msra.mxu0 0.0
    %5110 = vmatprep.subr.mxu0 0.0
    %5111 = vmatpush1.msra.mxu0 0.0
    %5112 = vmatprep.subr.mxu0 0.0
    %5113 = vmatpush1.msra.mxu0 0.0
    %5114 = vmatprep.subr.mxu0 0.0
    %5115 = vmatpush1.msra.mxu0 0.0
    %5116 = vmatprep.subr.mxu0 0.0
    %5117 = vmatpush1.msra.mxu0 0.0
    %5118 = vmatprep.subr.mxu0 0.0
    %5119 = vmatpush1.msra.mxu0 0.0
    %5120 = vmatprep.subr.mxu0 0.0
    %5121 = vmatpush1.msra.mxu0 0.0
    %5122 = vmatprep.subr.mxu0 0.0
    %5123 = vmatpush1.msra.mxu0 0.0
    %5124 = vmatprep.subr.mxu0 0.0
    %5125 = vmatpush1.msra.mxu0 0.0
    %5126 = vmatprep.subr.mxu0 0.0
    %5127 = vmatpush1.msra.mxu0 0.0
    %5128 = vmatprep.subr.mxu0 0.0
    %5129 = vmatpush1.msra.mxu0 0.0
    %5130 = vmatprep.subr.mxu0 0.0
    %5131 = vmatpush1.msra.mxu0 0.0
    %5132 = vmatprep.subr.mxu0 0.0
    %5133 = vmatpush1.msra.mxu0 0.0
    %5134 = vmatprep.subr.mxu0 0.0
    %5135 = vmatpush1.msra.mxu0 0.0
    %5136 = vmatprep.subr.mxu0 0.0
    %5137 = vmatpush1.msra.mxu0 0.0
    %5138 = vmatprep.subr.mxu0 0.0
    %5139 = vmatpush1.msra.mxu0 0.0
    %5140 = vmatprep.subr.mxu0 0.0
    %5141 = vmatpush1.msra.mxu0 0.0
    %5142 = vmatprep.subr.mxu0 0.0
    %5143 = vmatpush1.msra.mxu0 0.0
    %5144 = vmatprep.subr.mxu0 0.0
    %5145 = vmatpush1.msra.mxu0 0.0
    %5146 = vmatprep.subr.mxu0 0.0
    %5147 = vmatpush1.msra.mxu0 0.0
    %5148 = vmatprep.subr.mxu0 0.0
    %5149 = vmatpush1.msra.mxu0 0.0
    %5150 = vmatprep.subr.mxu0 0.0
    %5151 = vmatpush1.msra.mxu0 0.0
    %5152 = vmatprep.subr.mxu0 0.0
    %5153 = vmatpush1.msra.mxu0 0.0
    %5154 = vmatprep.subr.mxu0 0.0
    %5155 = vmatpush1.msra.mxu0 0.0
    %5156 = vmatprep.subr.mxu0 0.0
    %5157 = vmatpush1.msra.mxu0 0.0
    %5158 = vmatprep.subr.mxu0 0.0
    %5159 = vmatpush1.msra.mxu0 0.0
    %5160 = vmatprep.subr.mxu0 0.0
    %5161 = vmatpush1.msra.mxu0 0.0
    %5162 = vmatprep.subr.mxu0 0.0
    %5163 = vmatpush1.msra.mxu0 0.0
    %5164 = vmatprep.mubr.f32.mxu0 0.0
    %5165 = vmatmul.mubr.f32.gmra.mrb[0].mxu0 %v5098
    %v5166 = vpop.f32.mrb[0].mxu0
    %v5167 = vadd.f32 %v5082, %v5166
    %v5168 = vpop.f32.mrb[0].mxu0
    %5169 = vdwg.mxu0
    %v5170 = vtanh.pop %v5167
    %5171 = vst.msk [vmem:[#allocation2] sm:$0x3] %vm382, %v5170
    // Predicated region
    $region58: #{vit_with_adapter_forward.1} parent=1 // pred_check
      _
    $region59: #{vit_with_adapter_forward.1} parent=1 // pred_check_branch
      %5173 = sbr.rel (0) target = $region61
    $region60: #{vit_with_adapter_forward.1} parent=1 // pred_region
      _
    $region61: #{vit_with_adapter_forward.1} parent=1 // pred_fallthru
      _
    // Predicated region
    $region62: #{vit_with_adapter_forward.1} parent=1 // pred_check
      _
    $region63: #{vit_with_adapter_forward.1} parent=1 // pred_check_branch
      %5175 = sbr.rel (0) target = $region65
    $region64: #{vit_with_adapter_forward.1} parent=1 // pred_region
      %s5177 = ssub.s32 32, 32
      %5178 = vsyncadd [#allocation3], %s5177
      %s5180 = sshll.u32 [#allocation2], 4
      %s5181 = int_to_ptr.vmem [resolvable:$true] %s5180
      %5183 = dma.vmem_to_hbm [thread:$0]  %s5181, 32, %s15, [#allocation3]
    $region65: #{vit_with_adapter_forward.1} parent=1 // pred_fallthru
      _
    // Predicated region
    $region66: #{vit_with_adapter_forward.1} parent=1 // pred_check
      _
    $region67: #{vit_with_adapter_forward.1} parent=1 // pred_check_branch
      %5185 = sbr.rel (0) target = $region69
    $region68: #{vit_with_adapter_forward.1} parent=1 // pred_region
      _
    $region69: #{vit_with_adapter_forward.1} parent=1 // pred_fallthru
      _
    // Predicated region
    $region70: #{vit_with_adapter_forward.1} parent=1 // pred_check
      _
    $region71: #{vit_with_adapter_forward.1} parent=1 // pred_check_branch
      %5187 = sbr.rel (0) target = $region73
    $region72: #{vit_with_adapter_forward.1} parent=1 // pred_region
      %5188 = dma.done [#allocation3], 32
    $region73: #{vit_with_adapter_forward.1} parent=1 // pred_fallthru
      _
    %5189 = vsyncpa [#allocation3], 1

</llo_original>
